<compile_context>
chip_gen: v6e
topology: v6e:2x2x1
jax: 0.10.0
libtpu: 0.0.40
codegen_flags: <defaults>
</compile_context>

<pallas_src>
import functools

import jax
import jax.numpy as jnp
from jax import lax
from jax.experimental import pallas as pl
from jax.experimental.pallas import tpu as pltpu


def _round_up(x, m):
    return ((x + m - 1) // m) * m


def _mcts_gru_kernel(num_layers, H, T, bt, B_total,
                     ids_ref,                       # SMEM (T*B,) int32 (prefetch)
                     seq_ref,                       # VMEM (bt, L) f32
                     emb_hbm,                       # HBM  (V, E) f32 (pl.ANY)
                     w0a_ref, w0b_ref, b0_ref, w1_ref, b1_ref, w2_ref, b2_ref,
                     *rest):
    # rest = [wih_r, wih_z, wih_n, whh_r, whh_z, whh_n, b_r, b_z, b_in, b_hn] * L
    #        + [wc, bc, wv1, bv1, wv2, bv2]          (inputs)
    #        + [policy, value]                       (outputs)
    #        + [xs0, xsh, gi_r, gi_z, gi_n, sem]     (scratch)
    n_gru = 10 * num_layers
    gru_refs = rest[:n_gru]
    (wc_ref, bc_ref, wv1_ref, bv1_ref,
     wv2_ref, bv2_ref) = rest[n_gru:n_gru + 6]
    policy_ref, value_ref = rest[n_gru + 6:n_gru + 8]
    xs0_ref, xsh_ref, gr_ref, gz_ref, gn_ref, sem = rest[n_gru + 8:]

    f32 = jnp.float32
    S = T + 1
    i = pl.program_id(0)

    def mm(a, w_ref):
        # MXU matmul: activation cast to the (bf16) weight dtype, f32 accumulation.
        return jnp.dot(a.astype(w_ref.dtype), w_ref[...],
                       preferred_element_type=f32)

    # ---- 1) Embedding row gather (HBM -> xs0 rows [bt : (T+1)*bt)) ------------
    # Issued first so the DMAs overlap the encoder MLP compute; exact f32 rows.
    # TODO(synk): for large T*bt use a bounded semaphore ring / row-block gather
    # instead of one semaphore per gathered row.
    copies = []
    for t in range(T):
        for b in range(bt):
            tok = ids_ref[t * B_total + i * bt + b]
            cp = pltpu.make_async_copy(emb_hbm.at[tok],
                                       xs0_ref.at[(t + 1) * bt + b],
                                       sem.at[t * bt + b])
            cp.start()
            copies.append(cp)

    # ---- 2) SequenceEncoder (use_attention=False, use_sliding_window=False) ---
    seq = seq_ref[...].astype(f32)
    ssq = jnp.sum(seq * seq, axis=-1, keepdims=True)
    normed = seq * lax.rsqrt(jnp.maximum(ssq, 1e-24))      # F.normalize(p=2)
    safelog = jnp.log(jnp.abs(seq) + 1e-7)                  # safe_log(|x|)
    # w0 split in wrapper -> no lane-dim concatenate of [normed | safelog]
    h = jnp.maximum(mm(normed, w0a_ref) + mm(safelog, w0b_ref) + b0_ref[...], 0.0)
    h = jnp.maximum(mm(h, w1_ref) + b1_ref[...], 0.0)
    enc = mm(h, w2_ref) + b2_ref[...]                        # (bt, E)
    xs0_ref[pl.ds(0, bt), :] = enc                           # timestep 0 input

    # ---- 3) Wait for gathered embedding rows ----------------------------------
    for cp in copies:
        cp.wait()

    # ---- 4) Stacked GRU (batch_first); keep last layer's last-step hidden -----
    h_final = jnp.zeros((bt, H), f32)
    for l in range(num_layers):
        (wr, wz, wn, ur, uz, un,
         br, bz, bin_, bhn) = gru_refs[10 * l:10 * l + 10]

        # Hoisted input projection for all S timesteps (off the recurrence chain),
        # one per gate so the per-step slices are whole (bt, H) row blocks.
        xs_in = xs0_ref if l == 0 else xsh_ref
        xs = xs_in[...]                                      # (S*bt, in_f) f32
        gr_ref[...] = mm(xs, wr) + br[...]                   # includes b_ir + b_hr
        gz_ref[...] = mm(xs, wz) + bz[...]                   # includes b_iz + b_hz
        gn_ref[...] = mm(xs, wn) + bin_[...]                 # b_in only
        bhn_v = bhn[...]

        def step(s, h_t, ur=ur, uz=uz, un=un, bhn_v=bhn_v):
            row = s * bt
            if bt % 8 == 0:
                row = pl.multiple_of(row, 8)
            gh_r = mm(h_t, ur)                               # (bt, H)
            gh_z = mm(h_t, uz)
            gh_n = mm(h_t, un) + bhn_v
            r = jax.nn.sigmoid(gr_ref[pl.ds(row, bt), :] + gh_r)
            z = jax.nn.sigmoid(gz_ref[pl.ds(row, bt), :] + gh_z)
            n = jnp.tanh(gn_ref[pl.ds(row, bt), :] + r * gh_n)
            h_new = z * (h_t - n) + n                        # (1-z)*n + z*h_prev
            xsh_ref[pl.ds(row, bt), :] = h_new               # feed next layer
            return h_new

        h_final = lax.fori_loop(0, S, step, jnp.zeros((bt, H), f32),
                                unroll=(S <= 16))
    # TODO(synk): for num_layers >= 2 a cross-layer wavefront (interleave the
    # independent gh matmuls of (l, s) and (l+1, s-1)) would shorten the serial
    # MXU chain further; omitted for clarity/robustness.

    # ---- 5) Heads (lane-dense padded outputs) ----------------------------------
    # wc is padded to Vp columns (pad bias = -1e30 so padded lanes get exp()=0).
    logits = mm(h_final, wc_ref) + bc_ref[...]               # (bt, Vp)
    m = jnp.max(logits, axis=-1, keepdims=True)
    e = jnp.exp(logits - m)
    denom = jnp.sum(e, axis=-1, keepdims=True)
    r0 = pl.reciprocal(denom, approx=True)                   # EUP approx recip
    inv = r0 * (2.0 - denom * r0)                            # + one Newton step
    policy_ref[...] = e * inv                                # rows sum to ~1 (<=1e-3 err)

    v = jnp.maximum(mm(h_final, wv1_ref) + bv1_ref[...], 0.0)
    value_ref[...] = mm(v, wv2_ref) + bv2_ref[...]           # col 0 = value, rest 0


def init_params(key, vocab_size, embed_size, hidden_size, num_layers, input_seq_size):
    """Deterministic synthetic parameters matching MCTS_GRU.__init__ shapes."""
    def nxt():
        nonlocal key
        key, sub = jax.random.split(key)
        return sub

    def lin(in_f, out_f):
        w = jax.random.normal(nxt(), (in_f, out_f), jnp.float32) * 0.1
        b = jax.random.normal(nxt(), (1, out_f), jnp.float32) * 0.1
        return w, b

    p = {}
    # SequenceEncoder MLP: Linear(2L,E), ReLU, Linear(E,E), ReLU, Linear(E,E)
    p["enc_w0"], p["enc_b0"] = lin(2 * input_seq_size, embed_size)
    p["enc_w1"], p["enc_b1"] = lin(embed_size, embed_size)
    p["enc_w2"], p["enc_b2"] = lin(embed_size, embed_size)
    # Embedding(vocab, embed)
    p["emb"] = jax.random.normal(nxt(), (vocab_size, embed_size), jnp.float32) * 0.1
    # GRU(embed, hidden, num_layers), gates packed [r | z | n]
    p["gru"] = []
    for l in range(num_layers):
        in_f = embed_size if l == 0 else hidden_size
        wih, bih = lin(in_f, 3 * hidden_size)
        whh, bhh = lin(hidden_size, 3 * hidden_size)
        p["gru"].append((wih, whh, bih, bhh))
    # choice head + value head
    p["wc"], p["bc"] = lin(hidden_size, vocab_size)
    p["wv1"], p["bv1"] = lin(hidden_size, hidden_size)
    p["wv2"], p["bv2"] = lin(hidden_size, 1)
    return p


def _pick_bt(B, batch_tile=None):
    if batch_tile is not None:
        assert B % batch_tile == 0, "batch_tile must divide batch"
        return batch_tile
    if B <= 8:
        return B
    # Prefer >=2 grid steps (v7x has 2 TensorCores) with tiles as large as
    # possible (v5e/v6e: serial grid, amortize per-step overhead); cap at 512.
    for cand in (512, 256, 128, 64, 32, 16, 8):
        if B % cand == 0 and B // cand >= 2:
            return cand
    return B


def mcts_gru_forward(seq, x, params, *, vocab_size, embed_size, hidden_size,
                     num_layers, input_seq_size, weight_dtype=jnp.bfloat16,
                     batch_tile=None):
    if seq.ndim != 2:
        seq = seq.reshape(-1, input_seq_size)
    if x.ndim == 1:
        x = x.reshape(1, -1)
    assert seq.shape[-1] == input_seq_size
    B, T = x.shape
    assert seq.shape[0] == B

    f32 = jnp.float32
    H, E, V, L = hidden_size, embed_size, vocab_size, input_seq_size
    Vp = _round_up(V, 128)          # lane-dense policy slab
    VALP = 128                      # lane-dense value slab
    S = T + 1

    def w(a):
        return a.astype(weight_dtype)

    # Token ids: time-major, flattened (T*B,) int32 -> SMEM scalar prefetch.
    ids_flat = jnp.asarray(x, jnp.int32).T.reshape(-1)

    # Encoder: split w0 along its input rows (normed | safelog halves).
    w0 = params["enc_w0"]
    enc_inputs = [w(w0[:L]), w(w0[L:]), params["enc_b0"].astype(f32),
                  w(params["enc_w1"]), params["enc_b1"].astype(f32),
                  w(params["enc_w2"]), params["enc_b2"].astype(f32)]

    # GRU: per-gate weight split; merge b_ih+b_hh for r/z; keep b_hn separate.
    gru_inputs = []
    for (wih, whh, bih, bhh) in params["gru"]:
        gru_inputs += [w(wih[:, :H]), w(wih[:, H:2 * H]), w(wih[:, 2 * H:]),
                       w(whh[:, :H]), w(whh[:, H:2 * H]), w(whh[:, 2 * H:]),
                       (bih[:, :H] + bhh[:, :H]).astype(f32),
                       (bih[:, H:2 * H] + bhh[:, H:2 * H]).astype(f32),
                       bih[:, 2 * H:].astype(f32),
                       bhh[:, 2 * H:].astype(f32)]

    # Heads: pad to lane-dense output widths (sliced back below).
    wc_p = w(jnp.pad(params["wc"], ((0, 0), (0, Vp - V))))
    bc_p = jnp.pad(params["bc"].astype(f32), ((0, 0), (0, Vp - V)),
                   constant_values=-1e30)
    wv2_p = w(jnp.pad(params["wv2"], ((0, 0), (0, VALP - 1))))
    bv2_p = jnp.pad(params["bv2"].astype(f32), ((0, 0), (0, VALP - 1)))
    head_inputs = [wc_p, bc_p, w(params["wv1"]), params["bv1"].astype(f32),
                   wv2_p, bv2_p]

    inputs = ([ids_flat, seq.astype(f32), params["emb"].astype(f32)]
              + enc_inputs + gru_inputs + head_inputs)

    bt = _pick_bt(B, batch_tile)
    grid = (B // bt,)

    seq_spec = pl.BlockSpec((bt, L), lambda i, ids: (i, 0))
    emb_spec = pl.BlockSpec(memory_space=pl.ANY)   # table stays in HBM, row-gathered

    def full2d(a):
        return pl.BlockSpec(a.shape, lambda i, ids: (0, 0))
    # TODO(synk): pl.Buffered(1) on these constant-index weight specs would halve
    # their VMEM footprint; left at the pipeline default for compatibility.
    in_specs = [seq_spec, emb_spec] + [full2d(a) for a in inputs[3:]]

    out_specs = (pl.BlockSpec((bt, Vp), lambda i, ids: (i, 0)),
                 pl.BlockSpec((bt, VALP), lambda i, ids: (i, 0)))

    scratch_shapes = [
        pltpu.VMEM((S * bt, E), f32),       # layer-0 GRU input (enc + emb rows)
        pltpu.VMEM((S * bt, H), f32),       # inter-layer activations
        pltpu.VMEM((S * bt, H), f32),       # hoisted gi_r
        pltpu.VMEM((S * bt, H), f32),       # hoisted gi_z
        pltpu.VMEM((S * bt, H), f32),       # hoisted gi_n
        pltpu.SemaphoreType.DMA((T * bt,)),  # one sem per gathered row
    ]

    # Explicit VMEM budget (v7x has only 64 MiB / TensorCore).
    vmem_est = sum(2 * a.size * a.dtype.itemsize for a in inputs[3:])
    vmem_est += 2 * bt * L * 4 + 2 * bt * (Vp + VALP) * 4
    vmem_est += S * bt * (E + 4 * H) * 4
    vmem_limit = int(min(max(2 * vmem_est, 32 << 20), 64 << 20))

    kernel = functools.partial(_mcts_gru_kernel, num_layers, H, T, bt, B)
    policy_p, value_p = pl.pallas_call(
        kernel,
        grid_spec=pltpu.PrefetchScalarGridSpec(
            num_scalar_prefetch=1,
            grid=grid,
            in_specs=in_specs,
            out_specs=out_specs,
            scratch_shapes=scratch_shapes),
        out_shape=(jax.ShapeDtypeStruct((B, Vp), f32),
                   jax.ShapeDtypeStruct((B, VALP), f32)),
        compiler_params=pltpu.CompilerParams(
            dimension_semantics=("parallel",),
            vmem_limit_bytes=vmem_limit),
    )(*inputs)
    return policy_p[:, :V], value_p[:, :1]


if __name__ == "__main__":
    VOCAB, EMBED, HIDDEN, GRU_LAYERS, SEQ_LEN = 16, 32, 32, 2, 8
    B, T = 2, 4

    key = jax.random.PRNGKey(0)
    k_p, k_seq, k_x = jax.random.split(key, 3)
    params = init_params(k_p, VOCAB, EMBED, HIDDEN, GRU_LAYERS, SEQ_LEN)
    seq = jax.random.normal(k_seq, (B, SEQ_LEN), jnp.float32)
    x = jax.random.randint(k_x, (B, T), 0, VOCAB, dtype=jnp.int32)

    policy, value = mcts_gru_forward(
        seq, x, params, vocab_size=VOCAB, embed_size=EMBED,
        hidden_size=HIDDEN, num_layers=GRU_LAYERS, input_seq_size=SEQ_LEN)
    jax.block_until_ready((policy, value))

    assert policy.shape == (B, VOCAB) and value.shape == (B, 1)
    assert bool(jnp.all(jnp.isfinite(policy))) and bool(jnp.all(jnp.isfinite(value)))
    # softmax rows must sum to ~1 (approx reciprocal + 1 Newton step tolerance)
    assert bool(jnp.all(jnp.abs(jnp.sum(policy, axis=-1) - 1.0) < 1e-3))
    print("KERNEL_OK")
</pallas_src>

<mosaic_0001>
module attributes {stable_mosaic.version = 11 : i64} {
  func.func @_mcts_gru_kernel(%arg0: i32, %arg1: memref<8xi32, #tpu.memory_space<smem>>, %arg2: memref<2x8xf32, #tpu.memory_space<vmem>>, %arg3: memref<16x32xf32, #tpu.memory_space<any>>, %arg4: memref<8x32xbf16, #tpu.memory_space<vmem>>, %arg5: memref<8x32xbf16, #tpu.memory_space<vmem>>, %arg6: memref<1x32xf32, #tpu.memory_space<vmem>>, %arg7: memref<32x32xbf16, #tpu.memory_space<vmem>>, %arg8: memref<1x32xf32, #tpu.memory_space<vmem>>, %arg9: memref<32x32xbf16, #tpu.memory_space<vmem>>, %arg10: memref<1x32xf32, #tpu.memory_space<vmem>>, %arg11: memref<32x32xbf16, #tpu.memory_space<vmem>>, %arg12: memref<32x32xbf16, #tpu.memory_space<vmem>>, %arg13: memref<32x32xbf16, #tpu.memory_space<vmem>>, %arg14: memref<32x32xbf16, #tpu.memory_space<vmem>>, %arg15: memref<32x32xbf16, #tpu.memory_space<vmem>>, %arg16: memref<32x32xbf16, #tpu.memory_space<vmem>>, %arg17: memref<1x32xf32, #tpu.memory_space<vmem>>, %arg18: memref<1x32xf32, #tpu.memory_space<vmem>>, %arg19: memref<1x32xf32, #tpu.memory_space<vmem>>, %arg20: memref<1x32xf32, #tpu.memory_space<vmem>>, %arg21: memref<32x32xbf16, #tpu.memory_space<vmem>>, %arg22: memref<32x32xbf16, #tpu.memory_space<vmem>>, %arg23: memref<32x32xbf16, #tpu.memory_space<vmem>>, %arg24: memref<32x32xbf16, #tpu.memory_space<vmem>>, %arg25: memref<32x32xbf16, #tpu.memory_space<vmem>>, %arg26: memref<32x32xbf16, #tpu.memory_space<vmem>>, %arg27: memref<1x32xf32, #tpu.memory_space<vmem>>, %arg28: memref<1x32xf32, #tpu.memory_space<vmem>>, %arg29: memref<1x32xf32, #tpu.memory_space<vmem>>, %arg30: memref<1x32xf32, #tpu.memory_space<vmem>>, %arg31: memref<32x128xbf16, #tpu.memory_space<vmem>>, %arg32: memref<1x128xf32, #tpu.memory_space<vmem>>, %arg33: memref<32x32xbf16, #tpu.memory_space<vmem>>, %arg34: memref<1x32xf32, #tpu.memory_space<vmem>>, %arg35: memref<32x128xbf16, #tpu.memory_space<vmem>>, %arg36: memref<1x128xf32, #tpu.memory_space<vmem>>, %arg37: memref<2x128xf32, #tpu.memory_space<vmem>>, %arg38: memref<2x128xf32, #tpu.memory_space<vmem>>, %arg39: memref<10x32xf32, #tpu.memory_space<vmem>>, %arg40: memref<10x32xf32, #tpu.memory_space<vmem>>, %arg41: memref<10x32xf32, #tpu.memory_space<vmem>>, %arg42: memref<10x32xf32, #tpu.memory_space<vmem>>, %arg43: memref<10x32xf32, #tpu.memory_space<vmem>>, %arg44: memref<8x!tpu.dma_semaphore, #tpu.memory_space<semaphore_mem>>) attributes {dimension_semantics = [#tpu.dimension_semantics<parallel>], iteration_bounds = array<i64: 1>, scalar_prefetch = 1 : i64, scratch_operands = 6 : i64, tpu.core_type = #tpu.core_type<tc>, window_params = [{transform_indices = @transform_0, window_bounds = array<i64: 2, 8>}, {}, {pipeline_mode = #tpu.pipeline_mode<synchronous>, transform_indices = @transform_2, window_bounds = array<i64: 8, 32>}, {pipeline_mode = #tpu.pipeline_mode<synchronous>, transform_indices = @transform_3, window_bounds = array<i64: 8, 32>}, {pipeline_mode = #tpu.pipeline_mode<synchronous>, transform_indices = @transform_4, window_bounds = array<i64: 1, 32>}, {pipeline_mode = #tpu.pipeline_mode<synchronous>, transform_indices = @transform_5, window_bounds = array<i64: 32, 32>}, {pipeline_mode = #tpu.pipeline_mode<synchronous>, transform_indices = @transform_6, window_bounds = array<i64: 1, 32>}, {pipeline_mode = #tpu.pipeline_mode<synchronous>, transform_indices = @transform_7, window_bounds = array<i64: 32, 32>}, {pipeline_mode = #tpu.pipeline_mode<synchronous>, transform_indices = @transform_8, window_bounds = array<i64: 1, 32>}, {pipeline_mode = #tpu.pipeline_mode<synchronous>, transform_indices = @transform_9, window_bounds = array<i64: 32, 32>}, {pipeline_mode = #tpu.pipeline_mode<synchronous>, transform_indices = @transform_10, window_bounds = array<i64: 32, 32>}, {pipeline_mode = #tpu.pipeline_mode<synchronous>, transform_indices = @transform_11, window_bounds = array<i64: 32, 32>}, {pipeline_mode = #tpu.pipeline_mode<synchronous>, transform_indices = @transform_12, window_bounds = array<i64: 32, 32>}, {pipeline_mode = #tpu.pipeline_mode<synchronous>, transform_indices = @transform_13, window_bounds = array<i64: 32, 32>}, {pipeline_mode = #tpu.pipeline_mode<synchronous>, transform_indices = @transform_14, window_bounds = array<i64: 32, 32>}, {pipeline_mode = #tpu.pipeline_mode<synchronous>, transform_indices = @transform_15, window_bounds = array<i64: 1, 32>}, {pipeline_mode = #tpu.pipeline_mode<synchronous>, transform_indices = @transform_16, window_bounds = array<i64: 1, 32>}, {pipeline_mode = #tpu.pipeline_mode<synchronous>, transform_indices = @transform_17, window_bounds = array<i64: 1, 32>}, {pipeline_mode = #tpu.pipeline_mode<synchronous>, transform_indices = @transform_18, window_bounds = array<i64: 1, 32>}, {pipeline_mode = #tpu.pipeline_mode<synchronous>, transform_indices = @transform_19, window_bounds = array<i64: 32, 32>}, {pipeline_mode = #tpu.pipeline_mode<synchronous>, transform_indices = @transform_20, window_bounds = array<i64: 32, 32>}, {pipeline_mode = #tpu.pipeline_mode<synchronous>, transform_indices = @transform_21, window_bounds = array<i64: 32, 32>}, {pipeline_mode = #tpu.pipeline_mode<synchronous>, transform_indices = @transform_22, window_bounds = array<i64: 32, 32>}, {pipeline_mode = #tpu.pipeline_mode<synchronous>, transform_indices = @transform_23, window_bounds = array<i64: 32, 32>}, {pipeline_mode = #tpu.pipeline_mode<synchronous>, transform_indices = @transform_24, window_bounds = array<i64: 32, 32>}, {pipeline_mode = #tpu.pipeline_mode<synchronous>, transform_indices = @transform_25, window_bounds = array<i64: 1, 32>}, {pipeline_mode = #tpu.pipeline_mode<synchronous>, transform_indices = @transform_26, window_bounds = array<i64: 1, 32>}, {pipeline_mode = #tpu.pipeline_mode<synchronous>, transform_indices = @transform_27, window_bounds = array<i64: 1, 32>}, {pipeline_mode = #tpu.pipeline_mode<synchronous>, transform_indices = @transform_28, window_bounds = array<i64: 1, 32>}, {pipeline_mode = #tpu.pipeline_mode<synchronous>, transform_indices = @transform_29, window_bounds = array<i64: 32, 128>}, {pipeline_mode = #tpu.pipeline_mode<synchronous>, transform_indices = @transform_30, window_bounds = array<i64: 1, 128>}, {pipeline_mode = #tpu.pipeline_mode<synchronous>, transform_indices = @transform_31, window_bounds = array<i64: 32, 32>}, {pipeline_mode = #tpu.pipeline_mode<synchronous>, transform_indices = @transform_32, window_bounds = array<i64: 1, 32>}, {pipeline_mode = #tpu.pipeline_mode<synchronous>, transform_indices = @transform_33, window_bounds = array<i64: 32, 128>}, {pipeline_mode = #tpu.pipeline_mode<synchronous>, transform_indices = @transform_34, window_bounds = array<i64: 1, 128>}, {transform_indices = @transform_35, window_bounds = array<i64: 2, 128>}, {transform_indices = @transform_36, window_bounds = array<i64: 2, 128>}]} {
    %c2_i32 = arith.constant 2 : i32
    %0 = arith.muli %arg0, %c2_i32 : i32
    %c0_i32 = arith.constant 0 : i32
    %1 = arith.addi %c0_i32, %0 : i32
    %c0_i32_0 = arith.constant 0 : i32
    %2 = arith.addi %1, %c0_i32_0 : i32
    %3 = arith.index_cast %2 : i32 to index
    %4 = memref.load %arg1[%3] : memref<8xi32, #tpu.memory_space<smem>>
    %c2_i32_1 = arith.constant 2 : i32
    %c0_i32_2 = arith.constant 0 : i32
    %c0_i32_3 = arith.constant 0 : i32
    %5 = tpu.memref_slice %arg3[%4, %c0_i32_3] : memref<16x32xf32, #tpu.memory_space<any>> -> memref<1x32xf32, #tpu.memory_space<any>>
    %6 = tpu.memref_squeeze %5 : memref<1x32xf32, #tpu.memory_space<any>> -> memref<32xf32, #tpu.memory_space<any>>
    %c0_i32_4 = arith.constant 0 : i32
    %7 = tpu.memref_slice %arg39[%c2_i32_1, %c0_i32_4] : memref<10x32xf32, #tpu.memory_space<vmem>> -> memref<1x32xf32, #tpu.memory_space<vmem>>
    %8 = tpu.memref_squeeze %7 : memref<1x32xf32, #tpu.memory_space<vmem>> -> memref<32xf32, #tpu.memory_space<vmem>>
    %9 = tpu.memref_slice %arg44[%c0_i32_2] : memref<8x!tpu.dma_semaphore, #tpu.memory_space<semaphore_mem>> -> memref<1x!tpu.dma_semaphore, #tpu.memory_space<semaphore_mem>>
    %10 = tpu.memref_squeeze %9 : memref<1x!tpu.dma_semaphore, #tpu.memory_space<semaphore_mem>> -> memref<!tpu.dma_semaphore, #tpu.memory_space<semaphore_mem>>
    tpu.enqueue_dma source(%6 : memref<32xf32, #tpu.memory_space<any>>) target(%8 : memref<32xf32, #tpu.memory_space<vmem>>) target_semaphore(%10 : memref<!tpu.dma_semaphore, #tpu.memory_space<semaphore_mem>>)
    %c2_i32_5 = arith.constant 2 : i32
    %11 = arith.muli %arg0, %c2_i32_5 : i32
    %c0_i32_6 = arith.constant 0 : i32
    %12 = arith.addi %c0_i32_6, %11 : i32
    %c1_i32 = arith.constant 1 : i32
    %13 = arith.addi %12, %c1_i32 : i32
    %14 = arith.index_cast %13 : i32 to index
    %15 = memref.load %arg1[%14] : memref<8xi32, #tpu.memory_space<smem>>
    %c3_i32 = arith.constant 3 : i32
    %c1_i32_7 = arith.constant 1 : i32
    %c0_i32_8 = arith.constant 0 : i32
    %16 = tpu.memref_slice %arg3[%15, %c0_i32_8] : memref<16x32xf32, #tpu.memory_space<any>> -> memref<1x32xf32, #tpu.memory_space<any>>
    %17 = tpu.memref_squeeze %16 : memref<1x32xf32, #tpu.memory_space<any>> -> memref<32xf32, #tpu.memory_space<any>>
    %c0_i32_9 = arith.constant 0 : i32
    %18 = tpu.memref_slice %arg39[%c3_i32, %c0_i32_9] : memref<10x32xf32, #tpu.memory_space<vmem>> -> memref<1x32xf32, #tpu.memory_space<vmem>>
    %19 = tpu.memref_squeeze %18 : memref<1x32xf32, #tpu.memory_space<vmem>> -> memref<32xf32, #tpu.memory_space<vmem>>
    %20 = tpu.memref_slice %arg44[%c1_i32_7] : memref<8x!tpu.dma_semaphore, #tpu.memory_space<semaphore_mem>> -> memref<1x!tpu.dma_semaphore, #tpu.memory_space<semaphore_mem>>
    %21 = tpu.memref_squeeze %20 : memref<1x!tpu.dma_semaphore, #tpu.memory_space<semaphore_mem>> -> memref<!tpu.dma_semaphore, #tpu.memory_space<semaphore_mem>>
    tpu.enqueue_dma source(%17 : memref<32xf32, #tpu.memory_space<any>>) target(%19 : memref<32xf32, #tpu.memory_space<vmem>>) target_semaphore(%21 : memref<!tpu.dma_semaphore, #tpu.memory_space<semaphore_mem>>)
    %c2_i32_10 = arith.constant 2 : i32
    %22 = arith.muli %arg0, %c2_i32_10 : i32
    %c2_i32_11 = arith.constant 2 : i32
    %23 = arith.addi %c2_i32_11, %22 : i32
    %c0_i32_12 = arith.constant 0 : i32
    %24 = arith.addi %23, %c0_i32_12 : i32
    %25 = arith.index_cast %24 : i32 to index
    %26 = memref.load %arg1[%25] : memref<8xi32, #tpu.memory_space<smem>>
    %c4_i32 = arith.constant 4 : i32
    %c2_i32_13 = arith.constant 2 : i32
    %c0_i32_14 = arith.constant 0 : i32
    %27 = tpu.memref_slice %arg3[%26, %c0_i32_14] : memref<16x32xf32, #tpu.memory_space<any>> -> memref<1x32xf32, #tpu.memory_space<any>>
    %28 = tpu.memref_squeeze %27 : memref<1x32xf32, #tpu.memory_space<any>> -> memref<32xf32, #tpu.memory_space<any>>
    %c0_i32_15 = arith.constant 0 : i32
    %29 = tpu.memref_slice %arg39[%c4_i32, %c0_i32_15] : memref<10x32xf32, #tpu.memory_space<vmem>> -> memref<1x32xf32, #tpu.memory_space<vmem>>
    %30 = tpu.memref_squeeze %29 : memref<1x32xf32, #tpu.memory_space<vmem>> -> memref<32xf32, #tpu.memory_space<vmem>>
    %31 = tpu.memref_slice %arg44[%c2_i32_13] : memref<8x!tpu.dma_semaphore, #tpu.memory_space<semaphore_mem>> -> memref<1x!tpu.dma_semaphore, #tpu.memory_space<semaphore_mem>>
    %32 = tpu.memref_squeeze %31 : memref<1x!tpu.dma_semaphore, #tpu.memory_space<semaphore_mem>> -> memref<!tpu.dma_semaphore, #tpu.memory_space<semaphore_mem>>
    tpu.enqueue_dma source(%28 : memref<32xf32, #tpu.memory_space<any>>) target(%30 : memref<32xf32, #tpu.memory_space<vmem>>) target_semaphore(%32 : memref<!tpu.dma_semaphore, #tpu.memory_space<semaphore_mem>>)
    %c2_i32_16 = arith.constant 2 : i32
    %33 = arith.muli %arg0, %c2_i32_16 : i32
    %c2_i32_17 = arith.constant 2 : i32
    %34 = arith.addi %c2_i32_17, %33 : i32
    %c1_i32_18 = arith.constant 1 : i32
    %35 = arith.addi %34, %c1_i32_18 : i32
    %36 = arith.index_cast %35 : i32 to index
    %37 = memref.load %arg1[%36] : memref<8xi32, #tpu.memory_space<smem>>
    %c5_i32 = arith.constant 5 : i32
    %c3_i32_19 = arith.constant 3 : i32
    %c0_i32_20 = arith.constant 0 : i32
    %38 = tpu.memref_slice %arg3[%37, %c0_i32_20] : memref<16x32xf32, #tpu.memory_space<any>> -> memref<1x32xf32, #tpu.memory_space<any>>
    %39 = tpu.memref_squeeze %38 : memref<1x32xf32, #tpu.memory_space<any>> -> memref<32xf32, #tpu.memory_space<any>>
    %c0_i32_21 = arith.constant 0 : i32
    %40 = tpu.memref_slice %arg39[%c5_i32, %c0_i32_21] : memref<10x32xf32, #tpu.memory_space<vmem>> -> memref<1x32xf32, #tpu.memory_space<vmem>>
    %41 = tpu.memref_squeeze %40 : memref<1x32xf32, #tpu.memory_space<vmem>> -> memref<32xf32, #tpu.memory_space<vmem>>
    %42 = tpu.memref_slice %arg44[%c3_i32_19] : memref<8x!tpu.dma_semaphore, #tpu.memory_space<semaphore_mem>> -> memref<1x!tpu.dma_semaphore, #tpu.memory_space<semaphore_mem>>
    %43 = tpu.memref_squeeze %42 : memref<1x!tpu.dma_semaphore, #tpu.memory_space<semaphore_mem>> -> memref<!tpu.dma_semaphore, #tpu.memory_space<semaphore_mem>>
    tpu.enqueue_dma source(%39 : memref<32xf32, #tpu.memory_space<any>>) target(%41 : memref<32xf32, #tpu.memory_space<vmem>>) target_semaphore(%43 : memref<!tpu.dma_semaphore, #tpu.memory_space<semaphore_mem>>)
    %c2_i32_22 = arith.constant 2 : i32
    %44 = arith.muli %arg0, %c2_i32_22 : i32
    %c4_i32_23 = arith.constant 4 : i32
    %45 = arith.addi %c4_i32_23, %44 : i32
    %c0_i32_24 = arith.constant 0 : i32
    %46 = arith.addi %45, %c0_i32_24 : i32
    %47 = arith.index_cast %46 : i32 to index
    %48 = memref.load %arg1[%47] : memref<8xi32, #tpu.memory_space<smem>>
    %c6_i32 = arith.constant 6 : i32
    %c4_i32_25 = arith.constant 4 : i32
    %c0_i32_26 = arith.constant 0 : i32
    %49 = tpu.memref_slice %arg3[%48, %c0_i32_26] : memref<16x32xf32, #tpu.memory_space<any>> -> memref<1x32xf32, #tpu.memory_space<any>>
    %50 = tpu.memref_squeeze %49 : memref<1x32xf32, #tpu.memory_space<any>> -> memref<32xf32, #tpu.memory_space<any>>
    %c0_i32_27 = arith.constant 0 : i32
    %51 = tpu.memref_slice %arg39[%c6_i32, %c0_i32_27] : memref<10x32xf32, #tpu.memory_space<vmem>> -> memref<1x32xf32, #tpu.memory_space<vmem>>
    %52 = tpu.memref_squeeze %51 : memref<1x32xf32, #tpu.memory_space<vmem>> -> memref<32xf32, #tpu.memory_space<vmem>>
    %53 = tpu.memref_slice %arg44[%c4_i32_25] : memref<8x!tpu.dma_semaphore, #tpu.memory_space<semaphore_mem>> -> memref<1x!tpu.dma_semaphore, #tpu.memory_space<semaphore_mem>>
    %54 = tpu.memref_squeeze %53 : memref<1x!tpu.dma_semaphore, #tpu.memory_space<semaphore_mem>> -> memref<!tpu.dma_semaphore, #tpu.memory_space<semaphore_mem>>
    tpu.enqueue_dma source(%50 : memref<32xf32, #tpu.memory_space<any>>) target(%52 : memref<32xf32, #tpu.memory_space<vmem>>) target_semaphore(%54 : memref<!tpu.dma_semaphore, #tpu.memory_space<semaphore_mem>>)
    %c2_i32_28 = arith.constant 2 : i32
    %55 = arith.muli %arg0, %c2_i32_28 : i32
    %c4_i32_29 = arith.constant 4 : i32
    %56 = arith.addi %c4_i32_29, %55 : i32
    %c1_i32_30 = arith.constant 1 : i32
    %57 = arith.addi %56, %c1_i32_30 : i32
    %58 = arith.index_cast %57 : i32 to index
    %59 = memref.load %arg1[%58] : memref<8xi32, #tpu.memory_space<smem>>
    %c7_i32 = arith.constant 7 : i32
    %c5_i32_31 = arith.constant 5 : i32
    %c0_i32_32 = arith.constant 0 : i32
    %60 = tpu.memref_slice %arg3[%59, %c0_i32_32] : memref<16x32xf32, #tpu.memory_space<any>> -> memref<1x32xf32, #tpu.memory_space<any>>
    %61 = tpu.memref_squeeze %60 : memref<1x32xf32, #tpu.memory_space<any>> -> memref<32xf32, #tpu.memory_space<any>>
    %c0_i32_33 = arith.constant 0 : i32
    %62 = tpu.memref_slice %arg39[%c7_i32, %c0_i32_33] : memref<10x32xf32, #tpu.memory_space<vmem>> -> memref<1x32xf32, #tpu.memory_space<vmem>>
    %63 = tpu.memref_squeeze %62 : memref<1x32xf32, #tpu.memory_space<vmem>> -> memref<32xf32, #tpu.memory_space<vmem>>
    %64 = tpu.memref_slice %arg44[%c5_i32_31] : memref<8x!tpu.dma_semaphore, #tpu.memory_space<semaphore_mem>> -> memref<1x!tpu.dma_semaphore, #tpu.memory_space<semaphore_mem>>
    %65 = tpu.memref_squeeze %64 : memref<1x!tpu.dma_semaphore, #tpu.memory_space<semaphore_mem>> -> memref<!tpu.dma_semaphore, #tpu.memory_space<semaphore_mem>>
    tpu.enqueue_dma source(%61 : memref<32xf32, #tpu.memory_space<any>>) target(%63 : memref<32xf32, #tpu.memory_space<vmem>>) target_semaphore(%65 : memref<!tpu.dma_semaphore, #tpu.memory_space<semaphore_mem>>)
    %c2_i32_34 = arith.constant 2 : i32
    %66 = arith.muli %arg0, %c2_i32_34 : i32
    %c6_i32_35 = arith.constant 6 : i32
    %67 = arith.addi %c6_i32_35, %66 : i32
    %c0_i32_36 = arith.constant 0 : i32
    %68 = arith.addi %67, %c0_i32_36 : i32
    %69 = arith.index_cast %68 : i32 to index
    %70 = memref.load %arg1[%69] : memref<8xi32, #tpu.memory_space<smem>>
    %c8_i32 = arith.constant 8 : i32
    %c6_i32_37 = arith.constant 6 : i32
    %c0_i32_38 = arith.constant 0 : i32
    %71 = tpu.memref_slice %arg3[%70, %c0_i32_38] : memref<16x32xf32, #tpu.memory_space<any>> -> memref<1x32xf32, #tpu.memory_space<any>>
    %72 = tpu.memref_squeeze %71 : memref<1x32xf32, #tpu.memory_space<any>> -> memref<32xf32, #tpu.memory_space<any>>
    %c0_i32_39 = arith.constant 0 : i32
    %73 = tpu.memref_slice %arg39[%c8_i32, %c0_i32_39] : memref<10x32xf32, #tpu.memory_space<vmem>> -> memref<1x32xf32, #tpu.memory_space<vmem>>
    %74 = tpu.memref_squeeze %73 : memref<1x32xf32, #tpu.memory_space<vmem>> -> memref<32xf32, #tpu.memory_space<vmem>>
    %75 = tpu.memref_slice %arg44[%c6_i32_37] : memref<8x!tpu.dma_semaphore, #tpu.memory_space<semaphore_mem>> -> memref<1x!tpu.dma_semaphore, #tpu.memory_space<semaphore_mem>>
    %76 = tpu.memref_squeeze %75 : memref<1x!tpu.dma_semaphore, #tpu.memory_space<semaphore_mem>> -> memref<!tpu.dma_semaphore, #tpu.memory_space<semaphore_mem>>
    tpu.enqueue_dma source(%72 : memref<32xf32, #tpu.memory_space<any>>) target(%74 : memref<32xf32, #tpu.memory_space<vmem>>) target_semaphore(%76 : memref<!tpu.dma_semaphore, #tpu.memory_space<semaphore_mem>>)
    %c2_i32_40 = arith.constant 2 : i32
    %77 = arith.muli %arg0, %c2_i32_40 : i32
    %c6_i32_41 = arith.constant 6 : i32
    %78 = arith.addi %c6_i32_41, %77 : i32
    %c1_i32_42 = arith.constant 1 : i32
    %79 = arith.addi %78, %c1_i32_42 : i32
    %80 = arith.index_cast %79 : i32 to index
    %81 = memref.load %arg1[%80] : memref<8xi32, #tpu.memory_space<smem>>
    %c9_i32 = arith.constant 9 : i32
    %c7_i32_43 = arith.constant 7 : i32
    %c0_i32_44 = arith.constant 0 : i32
    %82 = tpu.memref_slice %arg3[%81, %c0_i32_44] : memref<16x32xf32, #tpu.memory_space<any>> -> memref<1x32xf32, #tpu.memory_space<any>>
    %83 = tpu.memref_squeeze %82 : memref<1x32xf32, #tpu.memory_space<any>> -> memref<32xf32, #tpu.memory_space<any>>
    %c0_i32_45 = arith.constant 0 : i32
    %84 = tpu.memref_slice %arg39[%c9_i32, %c0_i32_45] : memref<10x32xf32, #tpu.memory_space<vmem>> -> memref<1x32xf32, #tpu.memory_space<vmem>>
    %85 = tpu.memref_squeeze %84 : memref<1x32xf32, #tpu.memory_space<vmem>> -> memref<32xf32, #tpu.memory_space<vmem>>
    %86 = tpu.memref_slice %arg44[%c7_i32_43] : memref<8x!tpu.dma_semaphore, #tpu.memory_space<semaphore_mem>> -> memref<1x!tpu.dma_semaphore, #tpu.memory_space<semaphore_mem>>
    %87 = tpu.memref_squeeze %86 : memref<1x!tpu.dma_semaphore, #tpu.memory_space<semaphore_mem>> -> memref<!tpu.dma_semaphore, #tpu.memory_space<semaphore_mem>>
    tpu.enqueue_dma source(%83 : memref<32xf32, #tpu.memory_space<any>>) target(%85 : memref<32xf32, #tpu.memory_space<vmem>>) target_semaphore(%87 : memref<!tpu.dma_semaphore, #tpu.memory_space<semaphore_mem>>)
    %c0 = arith.constant 0 : index
    %c0_46 = arith.constant 0 : index
    %88 = vector.load %arg2[%c0, %c0_46] : memref<2x8xf32, #tpu.memory_space<vmem>>, vector<2x8xf32>
    %89 = arith.mulf %88, %88 : vector<2x8xf32>
    %cst = arith.constant dense<0.000000e+00> : vector<2xf32>
    %90 = vector.multi_reduction <add>, %89, %cst [1] : vector<2x8xf32> to vector<2xf32>
    %91 = vector.shape_cast %90 : vector<2xf32> to vector<2x1xf32>
    %cst_47 = arith.constant 1.000000e-24 : f32
    %92 = vector.broadcast %cst_47 : f32 to vector<2x1xf32>
    %93 = arith.maximumf %91, %92 : vector<2x1xf32>
    %94 = math.rsqrt %93 : vector<2x1xf32>
    %95 = vector.broadcast %94 : vector<2x1xf32> to vector<2x8xf32>
    %96 = arith.mulf %88, %95 : vector<2x8xf32>
    %97 = math.absf %88 : vector<2x8xf32>
    %cst_48 = arith.constant 1.000000e-07 : f32
    %98 = vector.broadcast %cst_48 : f32 to vector<2x8xf32>
    %99 = arith.addf %97, %98 : vector<2x8xf32>
    %100 = math.log %99 : vector<2x8xf32>
    %101 = arith.truncf %96 : vector<2x8xf32> to vector<2x8xbf16>
    %c0_49 = arith.constant 0 : index
    %c0_50 = arith.constant 0 : index
    %102 = vector.load %arg4[%c0_49, %c0_50] : memref<8x32xbf16, #tpu.memory_space<vmem>>, vector<8x32xbf16>
    %cst_51 = arith.constant dense<0.000000e+00> : vector<2x32xf32>
    %103 = tpu.matmul %101, %102, %cst_51 {dimension_numbers = #tpu.dot_dimension_numbers<[1], [0], [0], [1], [0, 0, 1, 1], [], []>} : vector<2x8xbf16>, vector<8x32xbf16>, vector<2x32xf32> -> vector<2x32xf32>
    %104 = arith.truncf %100 : vector<2x8xf32> to vector<2x8xbf16>
    %c0_52 = arith.constant 0 : index
    %c0_53 = arith.constant 0 : index
    %105 = vector.load %arg5[%c0_52, %c0_53] : memref<8x32xbf16, #tpu.memory_space<vmem>>, vector<8x32xbf16>
    %cst_54 = arith.constant dense<0.000000e+00> : vector<2x32xf32>
    %106 = tpu.matmul %104, %105, %cst_54 {dimension_numbers = #tpu.dot_dimension_numbers<[1], [0], [0], [1], [0, 0, 1, 1], [], []>} : vector<2x8xbf16>, vector<8x32xbf16>, vector<2x32xf32> -> vector<2x32xf32>
    %107 = arith.addf %103, %106 : vector<2x32xf32>
    %c0_55 = arith.constant 0 : index
    %c0_56 = arith.constant 0 : index
    %108 = vector.load %arg6[%c0_55, %c0_56] : memref<1x32xf32, #tpu.memory_space<vmem>>, vector<1x32xf32>
    %109 = vector.broadcast %108 : vector<1x32xf32> to vector<2x32xf32>
    %110 = arith.addf %107, %109 : vector<2x32xf32>
    %cst_57 = arith.constant 0.000000e+00 : f32
    %111 = vector.broadcast %cst_57 : f32 to vector<2x32xf32>
    %112 = arith.maximumf %110, %111 : vector<2x32xf32>
    %113 = arith.truncf %112 : vector<2x32xf32> to vector<2x32xbf16>
    %c0_58 = arith.constant 0 : index
    %c0_59 = arith.constant 0 : index
    %114 = vector.load %arg7[%c0_58, %c0_59] : memref<32x32xbf16, #tpu.memory_space<vmem>>, vector<32x32xbf16>
    %cst_60 = arith.constant dense<0.000000e+00> : vector<2x32xf32>
    %115 = tpu.matmul %113, %114, %cst_60 {dimension_numbers = #tpu.dot_dimension_numbers<[1], [0], [0], [1], [0, 0, 1, 1], [], []>} : vector<2x32xbf16>, vector<32x32xbf16>, vector<2x32xf32> -> vector<2x32xf32>
    %c0_61 = arith.constant 0 : index
    %c0_62 = arith.constant 0 : index
    %116 = vector.load %arg8[%c0_61, %c0_62] : memref<1x32xf32, #tpu.memory_space<vmem>>, vector<1x32xf32>
    %117 = vector.broadcast %116 : vector<1x32xf32> to vector<2x32xf32>
    %118 = arith.addf %115, %117 : vector<2x32xf32>
    %cst_63 = arith.constant 0.000000e+00 : f32
    %119 = vector.broadcast %cst_63 : f32 to vector<2x32xf32>
    %120 = arith.maximumf %118, %119 : vector<2x32xf32>
    %121 = arith.truncf %120 : vector<2x32xf32> to vector<2x32xbf16>
    %c0_64 = arith.constant 0 : index
    %c0_65 = arith.constant 0 : index
    %122 = vector.load %arg9[%c0_64, %c0_65] : memref<32x32xbf16, #tpu.memory_space<vmem>>, vector<32x32xbf16>
    %cst_66 = arith.constant dense<0.000000e+00> : vector<2x32xf32>
    %123 = tpu.matmul %121, %122, %cst_66 {dimension_numbers = #tpu.dot_dimension_numbers<[1], [0], [0], [1], [0, 0, 1, 1], [], []>} : vector<2x32xbf16>, vector<32x32xbf16>, vector<2x32xf32> -> vector<2x32xf32>
    %c0_67 = arith.constant 0 : index
    %c0_68 = arith.constant 0 : index
    %124 = vector.load %arg10[%c0_67, %c0_68] : memref<1x32xf32, #tpu.memory_space<vmem>>, vector<1x32xf32>
    %125 = vector.broadcast %124 : vector<1x32xf32> to vector<2x32xf32>
    %126 = arith.addf %123, %125 : vector<2x32xf32>
    %c0_69 = arith.constant 0 : index
    %c0_70 = arith.constant 0 : index
    %127 = vector.load %arg39[%c0_69, %c0_70] : memref<10x32xf32, #tpu.memory_space<vmem>>, vector<2x32xf32>
    tpu.vector_store %arg39[%c0_69, %c0_70], %126 {strides = array<i32>} : memref<10x32xf32, #tpu.memory_space<vmem>>, vector<2x32xf32>,
    %c2_i32_71 = arith.constant 2 : i32
    %c0_i32_72 = arith.constant 0 : i32
    %c0_i32_73 = arith.constant 0 : i32
    %128 = tpu.memref_slice %arg3[%4, %c0_i32_73] : memref<16x32xf32, #tpu.memory_space<any>> -> memref<1x32xf32, #tpu.memory_space<any>>
    %129 = tpu.memref_squeeze %128 : memref<1x32xf32, #tpu.memory_space<any>> -> memref<32xf32, #tpu.memory_space<any>>
    %c0_i32_74 = arith.constant 0 : i32
    %130 = tpu.memref_slice %arg39[%c2_i32_71, %c0_i32_74] : memref<10x32xf32, #tpu.memory_space<vmem>> -> memref<1x32xf32, #tpu.memory_space<vmem>>
    %131 = tpu.memref_squeeze %130 : memref<1x32xf32, #tpu.memory_space<vmem>> -> memref<32xf32, #tpu.memory_space<vmem>>
    %132 = tpu.memref_slice %arg44[%c0_i32_72] : memref<8x!tpu.dma_semaphore, #tpu.memory_space<semaphore_mem>> -> memref<1x!tpu.dma_semaphore, #tpu.memory_space<semaphore_mem>>
    %133 = tpu.memref_squeeze %132 : memref<1x!tpu.dma_semaphore, #tpu.memory_space<semaphore_mem>> -> memref<!tpu.dma_semaphore, #tpu.memory_space<semaphore_mem>>
    tpu.wait_dma2 semaphore(%133 : memref<!tpu.dma_semaphore, #tpu.memory_space<semaphore_mem>>) src(%129 : memref<32xf32, #tpu.memory_space<any>>) dst(%131 : memref<32xf32, #tpu.memory_space<vmem>>)
    %c3_i32_75 = arith.constant 3 : i32
    %c1_i32_76 = arith.constant 1 : i32
    %c0_i32_77 = arith.constant 0 : i32
    %134 = tpu.memref_slice %arg3[%15, %c0_i32_77] : memref<16x32xf32, #tpu.memory_space<any>> -> memref<1x32xf32, #tpu.memory_space<any>>
    %135 = tpu.memref_squeeze %134 : memref<1x32xf32, #tpu.memory_space<any>> -> memref<32xf32, #tpu.memory_space<any>>
    %c0_i32_78 = arith.constant 0 : i32
    %136 = tpu.memref_slice %arg39[%c3_i32_75, %c0_i32_78] : memref<10x32xf32, #tpu.memory_space<vmem>> -> memref<1x32xf32, #tpu.memory_space<vmem>>
    %137 = tpu.memref_squeeze %136 : memref<1x32xf32, #tpu.memory_space<vmem>> -> memref<32xf32, #tpu.memory_space<vmem>>
    %138 = tpu.memref_slice %arg44[%c1_i32_76] : memref<8x!tpu.dma_semaphore, #tpu.memory_space<semaphore_mem>> -> memref<1x!tpu.dma_semaphore, #tpu.memory_space<semaphore_mem>>
    %139 = tpu.memref_squeeze %138 : memref<1x!tpu.dma_semaphore, #tpu.memory_space<semaphore_mem>> -> memref<!tpu.dma_semaphore, #tpu.memory_space<semaphore_mem>>
    tpu.wait_dma2 semaphore(%139 : memref<!tpu.dma_semaphore, #tpu.memory_space<semaphore_mem>>) src(%135 : memref<32xf32, #tpu.memory_space<any>>) dst(%137 : memref<32xf32, #tpu.memory_space<vmem>>)
    %c4_i32_79 = arith.constant 4 : i32
    %c2_i32_80 = arith.constant 2 : i32
    %c0_i32_81 = arith.constant 0 : i32
    %140 = tpu.memref_slice %arg3[%26, %c0_i32_81] : memref<16x32xf32, #tpu.memory_space<any>> -> memref<1x32xf32, #tpu.memory_space<any>>
    %141 = tpu.memref_squeeze %140 : memref<1x32xf32, #tpu.memory_space<any>> -> memref<32xf32, #tpu.memory_space<any>>
    %c0_i32_82 = arith.constant 0 : i32
    %142 = tpu.memref_slice %arg39[%c4_i32_79, %c0_i32_82] : memref<10x32xf32, #tpu.memory_space<vmem>> -> memref<1x32xf32, #tpu.memory_space<vmem>>
    %143 = tpu.memref_squeeze %142 : memref<1x32xf32, #tpu.memory_space<vmem>> -> memref<32xf32, #tpu.memory_space<vmem>>
    %144 = tpu.memref_slice %arg44[%c2_i32_80] : memref<8x!tpu.dma_semaphore, #tpu.memory_space<semaphore_mem>> -> memref<1x!tpu.dma_semaphore, #tpu.memory_space<semaphore_mem>>
    %145 = tpu.memref_squeeze %144 : memref<1x!tpu.dma_semaphore, #tpu.memory_space<semaphore_mem>> -> memref<!tpu.dma_semaphore, #tpu.memory_space<semaphore_mem>>
    tpu.wait_dma2 semaphore(%145 : memref<!tpu.dma_semaphore, #tpu.memory_space<semaphore_mem>>) src(%141 : memref<32xf32, #tpu.memory_space<any>>) dst(%143 : memref<32xf32, #tpu.memory_space<vmem>>)
    %c5_i32_83 = arith.constant 5 : i32
    %c3_i32_84 = arith.constant 3 : i32
    %c0_i32_85 = arith.constant 0 : i32
    %146 = tpu.memref_slice %arg3[%37, %c0_i32_85] : memref<16x32xf32, #tpu.memory_space<any>> -> memref<1x32xf32, #tpu.memory_space<any>>
    %147 = tpu.memref_squeeze %146 : memref<1x32xf32, #tpu.memory_space<any>> -> memref<32xf32, #tpu.memory_space<any>>
    %c0_i32_86 = arith.constant 0 : i32
    %148 = tpu.memref_slice %arg39[%c5_i32_83, %c0_i32_86] : memref<10x32xf32, #tpu.memory_space<vmem>> -> memref<1x32xf32, #tpu.memory_space<vmem>>
    %149 = tpu.memref_squeeze %148 : memref<1x32xf32, #tpu.memory_space<vmem>> -> memref<32xf32, #tpu.memory_space<vmem>>
    %150 = tpu.memref_slice %arg44[%c3_i32_84] : memref<8x!tpu.dma_semaphore, #tpu.memory_space<semaphore_mem>> -> memref<1x!tpu.dma_semaphore, #tpu.memory_space<semaphore_mem>>
    %151 = tpu.memref_squeeze %150 : memref<1x!tpu.dma_semaphore, #tpu.memory_space<semaphore_mem>> -> memref<!tpu.dma_semaphore, #tpu.memory_space<semaphore_mem>>
    tpu.wait_dma2 semaphore(%151 : memref<!tpu.dma_semaphore, #tpu.memory_space<semaphore_mem>>) src(%147 : memref<32xf32, #tpu.memory_space<any>>) dst(%149 : memref<32xf32, #tpu.memory_space<vmem>>)
    %c6_i32_87 = arith.constant 6 : i32
    %c4_i32_88 = arith.constant 4 : i32
    %c0_i32_89 = arith.constant 0 : i32
    %152 = tpu.memref_slice %arg3[%48, %c0_i32_89] : memref<16x32xf32, #tpu.memory_space<any>> -> memref<1x32xf32, #tpu.memory_space<any>>
    %153 = tpu.memref_squeeze %152 : memref<1x32xf32, #tpu.memory_space<any>> -> memref<32xf32, #tpu.memory_space<any>>
    %c0_i32_90 = arith.constant 0 : i32
    %154 = tpu.memref_slice %arg39[%c6_i32_87, %c0_i32_90] : memref<10x32xf32, #tpu.memory_space<vmem>> -> memref<1x32xf32, #tpu.memory_space<vmem>>
    %155 = tpu.memref_squeeze %154 : memref<1x32xf32, #tpu.memory_space<vmem>> -> memref<32xf32, #tpu.memory_space<vmem>>
    %156 = tpu.memref_slice %arg44[%c4_i32_88] : memref<8x!tpu.dma_semaphore, #tpu.memory_space<semaphore_mem>> -> memref<1x!tpu.dma_semaphore, #tpu.memory_space<semaphore_mem>>
    %157 = tpu.memref_squeeze %156 : memref<1x!tpu.dma_semaphore, #tpu.memory_space<semaphore_mem>> -> memref<!tpu.dma_semaphore, #tpu.memory_space<semaphore_mem>>
    tpu.wait_dma2 semaphore(%157 : memref<!tpu.dma_semaphore, #tpu.memory_space<semaphore_mem>>) src(%153 : memref<32xf32, #tpu.memory_space<any>>) dst(%155 : memref<32xf32, #tpu.memory_space<vmem>>)
    %c7_i32_91 = arith.constant 7 : i32
    %c5_i32_92 = arith.constant 5 : i32
    %c0_i32_93 = arith.constant 0 : i32
    %158 = tpu.memref_slice %arg3[%59, %c0_i32_93] : memref<16x32xf32, #tpu.memory_space<any>> -> memref<1x32xf32, #tpu.memory_space<any>>
    %159 = tpu.memref_squeeze %158 : memref<1x32xf32, #tpu.memory_space<any>> -> memref<32xf32, #tpu.memory_space<any>>
    %c0_i32_94 = arith.constant 0 : i32
    %160 = tpu.memref_slice %arg39[%c7_i32_91, %c0_i32_94] : memref<10x32xf32, #tpu.memory_space<vmem>> -> memref<1x32xf32, #tpu.memory_space<vmem>>
    %161 = tpu.memref_squeeze %160 : memref<1x32xf32, #tpu.memory_space<vmem>> -> memref<32xf32, #tpu.memory_space<vmem>>
    %162 = tpu.memref_slice %arg44[%c5_i32_92] : memref<8x!tpu.dma_semaphore, #tpu.memory_space<semaphore_mem>> -> memref<1x!tpu.dma_semaphore, #tpu.memory_space<semaphore_mem>>
    %163 = tpu.memref_squeeze %162 : memref<1x!tpu.dma_semaphore, #tpu.memory_space<semaphore_mem>> -> memref<!tpu.dma_semaphore, #tpu.memory_space<semaphore_mem>>
    tpu.wait_dma2 semaphore(%163 : memref<!tpu.dma_semaphore, #tpu.memory_space<semaphore_mem>>) src(%159 : memref<32xf32, #tpu.memory_space<any>>) dst(%161 : memref<32xf32, #tpu.memory_space<vmem>>)
    %c8_i32_95 = arith.constant 8 : i32
    %c6_i32_96 = arith.constant 6 : i32
    %c0_i32_97 = arith.constant 0 : i32
    %164 = tpu.memref_slice %arg3[%70, %c0_i32_97] : memref<16x32xf32, #tpu.memory_space<any>> -> memref<1x32xf32, #tpu.memory_space<any>>
    %165 = tpu.memref_squeeze %164 : memref<1x32xf32, #tpu.memory_space<any>> -> memref<32xf32, #tpu.memory_space<any>>
    %c0_i32_98 = arith.constant 0 : i32
    %166 = tpu.memref_slice %arg39[%c8_i32_95, %c0_i32_98] : memref<10x32xf32, #tpu.memory_space<vmem>> -> memref<1x32xf32, #tpu.memory_space<vmem>>
    %167 = tpu.memref_squeeze %166 : memref<1x32xf32, #tpu.memory_space<vmem>> -> memref<32xf32, #tpu.memory_space<vmem>>
    %168 = tpu.memref_slice %arg44[%c6_i32_96] : memref<8x!tpu.dma_semaphore, #tpu.memory_space<semaphore_mem>> -> memref<1x!tpu.dma_semaphore, #tpu.memory_space<semaphore_mem>>
    %169 = tpu.memref_squeeze %168 : memref<1x!tpu.dma_semaphore, #tpu.memory_space<semaphore_mem>> -> memref<!tpu.dma_semaphore, #tpu.memory_space<semaphore_mem>>
    tpu.wait_dma2 semaphore(%169 : memref<!tpu.dma_semaphore, #tpu.memory_space<semaphore_mem>>) src(%165 : memref<32xf32, #tpu.memory_space<any>>) dst(%167 : memref<32xf32, #tpu.memory_space<vmem>>)
    %c9_i32_99 = arith.constant 9 : i32
    %c7_i32_100 = arith.constant 7 : i32
    %c0_i32_101 = arith.constant 0 : i32
    %170 = tpu.memref_slice %arg3[%81, %c0_i32_101] : memref<16x32xf32, #tpu.memory_space<any>> -> memref<1x32xf32, #tpu.memory_space<any>>
    %171 = tpu.memref_squeeze %170 : memref<1x32xf32, #tpu.memory_space<any>> -> memref<32xf32, #tpu.memory_space<any>>
    %c0_i32_102 = arith.constant 0 : i32
    %172 = tpu.memref_slice %arg39[%c9_i32_99, %c0_i32_102] : memref<10x32xf32, #tpu.memory_space<vmem>> -> memref<1x32xf32, #tpu.memory_space<vmem>>
    %173 = tpu.memref_squeeze %172 : memref<1x32xf32, #tpu.memory_space<vmem>> -> memref<32xf32, #tpu.memory_space<vmem>>
    %174 = tpu.memref_slice %arg44[%c7_i32_100] : memref<8x!tpu.dma_semaphore, #tpu.memory_space<semaphore_mem>> -> memref<1x!tpu.dma_semaphore, #tpu.memory_space<semaphore_mem>>
    %175 = tpu.memref_squeeze %174 : memref<1x!tpu.dma_semaphore, #tpu.memory_space<semaphore_mem>> -> memref<!tpu.dma_semaphore, #tpu.memory_space<semaphore_mem>>
    tpu.wait_dma2 semaphore(%175 : memref<!tpu.dma_semaphore, #tpu.memory_space<semaphore_mem>>) src(%171 : memref<32xf32, #tpu.memory_space<any>>) dst(%173 : memref<32xf32, #tpu.memory_space<vmem>>)
    %c0_103 = arith.constant 0 : index
    %c0_104 = arith.constant 0 : index
    %176 = vector.load %arg39[%c0_103, %c0_104] : memref<10x32xf32, #tpu.memory_space<vmem>>, vector<10x32xf32>
    %177 = arith.truncf %176 : vector<10x32xf32> to vector<10x32xbf16>
    %c0_105 = arith.constant 0 : index
    %c0_106 = arith.constant 0 : index
    %178 = vector.load %arg11[%c0_105, %c0_106] : memref<32x32xbf16, #tpu.memory_space<vmem>>, vector<32x32xbf16>
    %cst_107 = arith.constant dense<0.000000e+00> : vector<10x32xf32>
    %179 = tpu.matmul %177, %178, %cst_107 {dimension_numbers = #tpu.dot_dimension_numbers<[1], [0], [0], [1], [0, 0, 1, 1], [], []>} : vector<10x32xbf16>, vector<32x32xbf16>, vector<10x32xf32> -> vector<10x32xf32>
    %c0_108 = arith.constant 0 : index
    %c0_109 = arith.constant 0 : index
    %180 = vector.load %arg17[%c0_108, %c0_109] : memref<1x32xf32, #tpu.memory_space<vmem>>, vector<1x32xf32>
    %181 = vector.broadcast %180 : vector<1x32xf32> to vector<10x32xf32>
    %182 = arith.addf %179, %181 : vector<10x32xf32>
    %c0_110 = arith.constant 0 : index
    %c0_111 = arith.constant 0 : index
    %183 = vector.load %arg41[%c0_110, %c0_111] : memref<10x32xf32, #tpu.memory_space<vmem>>, vector<10x32xf32>
    tpu.vector_store %arg41[%c0_110, %c0_111], %182 {strides = array<i32>} : memref<10x32xf32, #tpu.memory_space<vmem>>, vector<10x32xf32>,
    %184 = arith.truncf %176 : vector<10x32xf32> to vector<10x32xbf16>
    %c0_112 = arith.constant 0 : index
    %c0_113 = arith.constant 0 : index
    %185 = vector.load %arg12[%c0_112, %c0_113] : memref<32x32xbf16, #tpu.memory_space<vmem>>, vector<32x32xbf16>
    %cst_114 = arith.constant dense<0.000000e+00> : vector<10x32xf32>
    %186 = tpu.matmul %184, %185, %cst_114 {dimension_numbers = #tpu.dot_dimension_numbers<[1], [0], [0], [1], [0, 0, 1, 1], [], []>} : vector<10x32xbf16>, vector<32x32xbf16>, vector<10x32xf32> -> vector<10x32xf32>
    %c0_115 = arith.constant 0 : index
    %c0_116 = arith.constant 0 : index
    %187 = vector.load %arg18[%c0_115, %c0_116] : memref<1x32xf32, #tpu.memory_space<vmem>>, vector<1x32xf32>
    %188 = vector.broadcast %187 : vector<1x32xf32> to vector<10x32xf32>
    %189 = arith.addf %186, %188 : vector<10x32xf32>
    %c0_117 = arith.constant 0 : index
    %c0_118 = arith.constant 0 : index
    %190 = vector.load %arg42[%c0_117, %c0_118] : memref<10x32xf32, #tpu.memory_space<vmem>>, vector<10x32xf32>
    tpu.vector_store %arg42[%c0_117, %c0_118], %189 {strides = array<i32>} : memref<10x32xf32, #tpu.memory_space<vmem>>, vector<10x32xf32>,
    %191 = arith.truncf %176 : vector<10x32xf32> to vector<10x32xbf16>
    %c0_119 = arith.constant 0 : index
    %c0_120 = arith.constant 0 : index
    %192 = vector.load %arg13[%c0_119, %c0_120] : memref<32x32xbf16, #tpu.memory_space<vmem>>, vector<32x32xbf16>
    %cst_121 = arith.constant dense<0.000000e+00> : vector<10x32xf32>
    %193 = tpu.matmul %191, %192, %cst_121 {dimension_numbers = #tpu.dot_dimension_numbers<[1], [0], [0], [1], [0, 0, 1, 1], [], []>} : vector<10x32xbf16>, vector<32x32xbf16>, vector<10x32xf32> -> vector<10x32xf32>
    %c0_122 = arith.constant 0 : index
    %c0_123 = arith.constant 0 : index
    %194 = vector.load %arg19[%c0_122, %c0_123] : memref<1x32xf32, #tpu.memory_space<vmem>>, vector<1x32xf32>
    %195 = vector.broadcast %194 : vector<1x32xf32> to vector<10x32xf32>
    %196 = arith.addf %193, %195 : vector<10x32xf32>
    %c0_124 = arith.constant 0 : index
    %c0_125 = arith.constant 0 : index
    %197 = vector.load %arg43[%c0_124, %c0_125] : memref<10x32xf32, #tpu.memory_space<vmem>>, vector<10x32xf32>
    tpu.vector_store %arg43[%c0_124, %c0_125], %196 {strides = array<i32>} : memref<10x32xf32, #tpu.memory_space<vmem>>, vector<10x32xf32>,
    %c0_126 = arith.constant 0 : index
    %c0_127 = arith.constant 0 : index
    %198 = vector.load %arg20[%c0_126, %c0_127] : memref<1x32xf32, #tpu.memory_space<vmem>>, vector<1x32xf32>
    %cst_128 = arith.constant 0.000000e+00 : f32
    %199 = vector.broadcast %cst_128 : f32 to vector<2x32xf32>
    %c0_i32_129 = arith.constant 0 : i32
    %c2_i32_130 = arith.constant 2 : i32
    %200 = arith.muli %c0_i32_129, %c2_i32_130 : i32
    %201 = arith.truncf %199 : vector<2x32xf32> to vector<2x32xbf16>
    %c0_131 = arith.constant 0 : index
    %c0_132 = arith.constant 0 : index
    %202 = vector.load %arg14[%c0_131, %c0_132] : memref<32x32xbf16, #tpu.memory_space<vmem>>, vector<32x32xbf16>
    %cst_133 = arith.constant dense<0.000000e+00> : vector<2x32xf32>
    %203 = tpu.matmul %201, %202, %cst_133 {dimension_numbers = #tpu.dot_dimension_numbers<[1], [0], [0], [1], [0, 0, 1, 1], [], []>} : vector<2x32xbf16>, vector<32x32xbf16>, vector<2x32xf32> -> vector<2x32xf32>
    %204 = arith.truncf %199 : vector<2x32xf32> to vector<2x32xbf16>
    %c0_134 = arith.constant 0 : index
    %c0_135 = arith.constant 0 : index
    %205 = vector.load %arg15[%c0_134, %c0_135] : memref<32x32xbf16, #tpu.memory_space<vmem>>, vector<32x32xbf16>
    %cst_136 = arith.constant dense<0.000000e+00> : vector<2x32xf32>
    %206 = tpu.matmul %204, %205, %cst_136 {dimension_numbers = #tpu.dot_dimension_numbers<[1], [0], [0], [1], [0, 0, 1, 1], [], []>} : vector<2x32xbf16>, vector<32x32xbf16>, vector<2x32xf32> -> vector<2x32xf32>
    %207 = arith.truncf %199 : vector<2x32xf32> to vector<2x32xbf16>
    %c0_137 = arith.constant 0 : index
    %c0_138 = arith.constant 0 : index
    %208 = vector.load %arg16[%c0_137, %c0_138] : memref<32x32xbf16, #tpu.memory_space<vmem>>, vector<32x32xbf16>
    %cst_139 = arith.constant dense<0.000000e+00> : vector<2x32xf32>
    %209 = tpu.matmul %207, %208, %cst_139 {dimension_numbers = #tpu.dot_dimension_numbers<[1], [0], [0], [1], [0, 0, 1, 1], [], []>} : vector<2x32xbf16>, vector<32x32xbf16>, vector<2x32xf32> -> vector<2x32xf32>
    %210 = vector.broadcast %198 : vector<1x32xf32> to vector<2x32xf32>
    %211 = arith.addf %209, %210 : vector<2x32xf32>
    %212 = arith.index_cast %200 : i32 to index
    %c0_140 = arith.constant 0 : index
    %213 = vector.load %arg41[%212, %c0_140] : memref<10x32xf32, #tpu.memory_space<vmem>>, vector<2x32xf32>
    %214 = arith.addf %213, %203 : vector<2x32xf32>
    %215 = arith.negf %214 : vector<2x32xf32>
    %216 = math.exp %215 : vector<2x32xf32>
    %cst_141 = arith.constant 1.000000e+00 : f32
    %217 = vector.broadcast %cst_141 : f32 to vector<2x32xf32>
    %218 = arith.addf %217, %216 : vector<2x32xf32>
    %219 = arith.divf %217, %218 : vector<2x32xf32>
    %220 = arith.index_cast %200 : i32 to index
    %c0_142 = arith.constant 0 : index
    %221 = vector.load %arg42[%220, %c0_142] : memref<10x32xf32, #tpu.memory_space<vmem>>, vector<2x32xf32>
    %222 = arith.addf %221, %206 : vector<2x32xf32>
    %223 = arith.negf %222 : vector<2x32xf32>
    %224 = math.exp %223 : vector<2x32xf32>
    %cst_143 = arith.constant 1.000000e+00 : f32
    %225 = vector.broadcast %cst_143 : f32 to vector<2x32xf32>
    %226 = arith.addf %225, %224 : vector<2x32xf32>
    %227 = arith.divf %225, %226 : vector<2x32xf32>
    %228 = arith.index_cast %200 : i32 to index
    %c0_144 = arith.constant 0 : index
    %229 = vector.load %arg43[%228, %c0_144] : memref<10x32xf32, #tpu.memory_space<vmem>>, vector<2x32xf32>
    %230 = arith.mulf %219, %211 : vector<2x32xf32>
    %231 = arith.addf %229, %230 : vector<2x32xf32>
    %232 = math.tanh %231 : vector<2x32xf32>
    %233 = arith.subf %199, %232 : vector<2x32xf32>
    %234 = arith.mulf %227, %233 : vector<2x32xf32>
    %235 = arith.addf %234, %232 : vector<2x32xf32>
    %236 = arith.index_cast %200 : i32 to index
    %c0_145 = arith.constant 0 : index
    %237 = vector.load %arg40[%236, %c0_145] : memref<10x32xf32, #tpu.memory_space<vmem>>, vector<2x32xf32>
    tpu.vector_store %arg40[%236, %c0_145], %235 {strides = array<i32>} : memref<10x32xf32, #tpu.memory_space<vmem>>, vector<2x32xf32>,
    %c1_i32_146 = arith.constant 1 : i32
    %c2_i32_147 = arith.constant 2 : i32
    %238 = arith.muli %c1_i32_146, %c2_i32_147 : i32
    %239 = arith.truncf %235 : vector<2x32xf32> to vector<2x32xbf16>
    %c0_148 = arith.constant 0 : index
    %c0_149 = arith.constant 0 : index
    %240 = vector.load %arg14[%c0_148, %c0_149] : memref<32x32xbf16, #tpu.memory_space<vmem>>, vector<32x32xbf16>
    %cst_150 = arith.constant dense<0.000000e+00> : vector<2x32xf32>
    %241 = tpu.matmul %239, %240, %cst_150 {dimension_numbers = #tpu.dot_dimension_numbers<[1], [0], [0], [1], [0, 0, 1, 1], [], []>} : vector<2x32xbf16>, vector<32x32xbf16>, vector<2x32xf32> -> vector<2x32xf32>
    %242 = arith.truncf %235 : vector<2x32xf32> to vector<2x32xbf16>
    %c0_151 = arith.constant 0 : index
    %c0_152 = arith.constant 0 : index
    %243 = vector.load %arg15[%c0_151, %c0_152] : memref<32x32xbf16, #tpu.memory_space<vmem>>, vector<32x32xbf16>
    %cst_153 = arith.constant dense<0.000000e+00> : vector<2x32xf32>
    %244 = tpu.matmul %242, %243, %cst_153 {dimension_numbers = #tpu.dot_dimension_numbers<[1], [0], [0], [1], [0, 0, 1, 1], [], []>} : vector<2x32xbf16>, vector<32x32xbf16>, vector<2x32xf32> -> vector<2x32xf32>
    %245 = arith.truncf %235 : vector<2x32xf32> to vector<2x32xbf16>
    %c0_154 = arith.constant 0 : index
    %c0_155 = arith.constant 0 : index
    %246 = vector.load %arg16[%c0_154, %c0_155] : memref<32x32xbf16, #tpu.memory_space<vmem>>, vector<32x32xbf16>
    %cst_156 = arith.constant dense<0.000000e+00> : vector<2x32xf32>
    %247 = tpu.matmul %245, %246, %cst_156 {dimension_numbers = #tpu.dot_dimension_numbers<[1], [0], [0], [1], [0, 0, 1, 1], [], []>} : vector<2x32xbf16>, vector<32x32xbf16>, vector<2x32xf32> -> vector<2x32xf32>
    %248 = vector.broadcast %198 : vector<1x32xf32> to vector<2x32xf32>
    %249 = arith.addf %247, %248 : vector<2x32xf32>
    %250 = arith.index_cast %238 : i32 to index
    %c0_157 = arith.constant 0 : index
    %251 = vector.load %arg41[%250, %c0_157] : memref<10x32xf32, #tpu.memory_space<vmem>>, vector<2x32xf32>
    %252 = arith.addf %251, %241 : vector<2x32xf32>
    %253 = arith.negf %252 : vector<2x32xf32>
    %254 = math.exp %253 : vector<2x32xf32>
    %cst_158 = arith.constant 1.000000e+00 : f32
    %255 = vector.broadcast %cst_158 : f32 to vector<2x32xf32>
    %256 = arith.addf %255, %254 : vector<2x32xf32>
    %257 = arith.divf %255, %256 : vector<2x32xf32>
    %258 = arith.index_cast %238 : i32 to index
    %c0_159 = arith.constant 0 : index
    %259 = vector.load %arg42[%258, %c0_159] : memref<10x32xf32, #tpu.memory_space<vmem>>, vector<2x32xf32>
    %260 = arith.addf %259, %244 : vector<2x32xf32>
    %261 = arith.negf %260 : vector<2x32xf32>
    %262 = math.exp %261 : vector<2x32xf32>
    %cst_160 = arith.constant 1.000000e+00 : f32
    %263 = vector.broadcast %cst_160 : f32 to vector<2x32xf32>
    %264 = arith.addf %263, %262 : vector<2x32xf32>
    %265 = arith.divf %263, %264 : vector<2x32xf32>
    %266 = arith.index_cast %238 : i32 to index
    %c0_161 = arith.constant 0 : index
    %267 = vector.load %arg43[%266, %c0_161] : memref<10x32xf32, #tpu.memory_space<vmem>>, vector<2x32xf32>
    %268 = arith.mulf %257, %249 : vector<2x32xf32>
    %269 = arith.addf %267, %268 : vector<2x32xf32>
    %270 = math.tanh %269 : vector<2x32xf32>
    %271 = arith.subf %235, %270 : vector<2x32xf32>
    %272 = arith.mulf %265, %271 : vector<2x32xf32>
    %273 = arith.addf %272, %270 : vector<2x32xf32>
    %274 = arith.index_cast %238 : i32 to index
    %c0_162 = arith.constant 0 : index
    %275 = vector.load %arg40[%274, %c0_162] : memref<10x32xf32, #tpu.memory_space<vmem>>, vector<2x32xf32>
    tpu.vector_store %arg40[%274, %c0_162], %273 {strides = array<i32>} : memref<10x32xf32, #tpu.memory_space<vmem>>, vector<2x32xf32>,
    %c2_i32_163 = arith.constant 2 : i32
    %c2_i32_164 = arith.constant 2 : i32
    %276 = arith.muli %c2_i32_163, %c2_i32_164 : i32
    %277 = arith.truncf %273 : vector<2x32xf32> to vector<2x32xbf16>
    %c0_165 = arith.constant 0 : index
    %c0_166 = arith.constant 0 : index
    %278 = vector.load %arg14[%c0_165, %c0_166] : memref<32x32xbf16, #tpu.memory_space<vmem>>, vector<32x32xbf16>
    %cst_167 = arith.constant dense<0.000000e+00> : vector<2x32xf32>
    %279 = tpu.matmul %277, %278, %cst_167 {dimension_numbers = #tpu.dot_dimension_numbers<[1], [0], [0], [1], [0, 0, 1, 1], [], []>} : vector<2x32xbf16>, vector<32x32xbf16>, vector<2x32xf32> -> vector<2x32xf32>
    %280 = arith.truncf %273 : vector<2x32xf32> to vector<2x32xbf16>
    %c0_168 = arith.constant 0 : index
    %c0_169 = arith.constant 0 : index
    %281 = vector.load %arg15[%c0_168, %c0_169] : memref<32x32xbf16, #tpu.memory_space<vmem>>, vector<32x32xbf16>
    %cst_170 = arith.constant dense<0.000000e+00> : vector<2x32xf32>
    %282 = tpu.matmul %280, %281, %cst_170 {dimension_numbers = #tpu.dot_dimension_numbers<[1], [0], [0], [1], [0, 0, 1, 1], [], []>} : vector<2x32xbf16>, vector<32x32xbf16>, vector<2x32xf32> -> vector<2x32xf32>
    %283 = arith.truncf %273 : vector<2x32xf32> to vector<2x32xbf16>
    %c0_171 = arith.constant 0 : index
    %c0_172 = arith.constant 0 : index
    %284 = vector.load %arg16[%c0_171, %c0_172] : memref<32x32xbf16, #tpu.memory_space<vmem>>, vector<32x32xbf16>
    %cst_173 = arith.constant dense<0.000000e+00> : vector<2x32xf32>
    %285 = tpu.matmul %283, %284, %cst_173 {dimension_numbers = #tpu.dot_dimension_numbers<[1], [0], [0], [1], [0, 0, 1, 1], [], []>} : vector<2x32xbf16>, vector<32x32xbf16>, vector<2x32xf32> -> vector<2x32xf32>
    %286 = vector.broadcast %198 : vector<1x32xf32> to vector<2x32xf32>
    %287 = arith.addf %285, %286 : vector<2x32xf32>
    %288 = arith.index_cast %276 : i32 to index
    %c0_174 = arith.constant 0 : index
    %289 = vector.load %arg41[%288, %c0_174] : memref<10x32xf32, #tpu.memory_space<vmem>>, vector<2x32xf32>
    %290 = arith.addf %289, %279 : vector<2x32xf32>
    %291 = arith.negf %290 : vector<2x32xf32>
    %292 = math.exp %291 : vector<2x32xf32>
    %cst_175 = arith.constant 1.000000e+00 : f32
    %293 = vector.broadcast %cst_175 : f32 to vector<2x32xf32>
    %294 = arith.addf %293, %292 : vector<2x32xf32>
    %295 = arith.divf %293, %294 : vector<2x32xf32>
    %296 = arith.index_cast %276 : i32 to index
    %c0_176 = arith.constant 0 : index
    %297 = vector.load %arg42[%296, %c0_176] : memref<10x32xf32, #tpu.memory_space<vmem>>, vector<2x32xf32>
    %298 = arith.addf %297, %282 : vector<2x32xf32>
    %299 = arith.negf %298 : vector<2x32xf32>
    %300 = math.exp %299 : vector<2x32xf32>
    %cst_177 = arith.constant 1.000000e+00 : f32
    %301 = vector.broadcast %cst_177 : f32 to vector<2x32xf32>
    %302 = arith.addf %301, %300 : vector<2x32xf32>
    %303 = arith.divf %301, %302 : vector<2x32xf32>
    %304 = arith.index_cast %276 : i32 to index
    %c0_178 = arith.constant 0 : index
    %305 = vector.load %arg43[%304, %c0_178] : memref<10x32xf32, #tpu.memory_space<vmem>>, vector<2x32xf32>
    %306 = arith.mulf %295, %287 : vector<2x32xf32>
    %307 = arith.addf %305, %306 : vector<2x32xf32>
    %308 = math.tanh %307 : vector<2x32xf32>
    %309 = arith.subf %273, %308 : vector<2x32xf32>
    %310 = arith.mulf %303, %309 : vector<2x32xf32>
    %311 = arith.addf %310, %308 : vector<2x32xf32>
    %312 = arith.index_cast %276 : i32 to index
    %c0_179 = arith.constant 0 : index
    %313 = vector.load %arg40[%312, %c0_179] : memref<10x32xf32, #tpu.memory_space<vmem>>, vector<2x32xf32>
    tpu.vector_store %arg40[%312, %c0_179], %311 {strides = array<i32>} : memref<10x32xf32, #tpu.memory_space<vmem>>, vector<2x32xf32>,
    %c3_i32_180 = arith.constant 3 : i32
    %c2_i32_181 = arith.constant 2 : i32
    %314 = arith.muli %c3_i32_180, %c2_i32_181 : i32
    %315 = arith.truncf %311 : vector<2x32xf32> to vector<2x32xbf16>
    %c0_182 = arith.constant 0 : index
    %c0_183 = arith.constant 0 : index
    %316 = vector.load %arg14[%c0_182, %c0_183] : memref<32x32xbf16, #tpu.memory_space<vmem>>, vector<32x32xbf16>
    %cst_184 = arith.constant dense<0.000000e+00> : vector<2x32xf32>
    %317 = tpu.matmul %315, %316, %cst_184 {dimension_numbers = #tpu.dot_dimension_numbers<[1], [0], [0], [1], [0, 0, 1, 1], [], []>} : vector<2x32xbf16>, vector<32x32xbf16>, vector<2x32xf32> -> vector<2x32xf32>
    %318 = arith.truncf %311 : vector<2x32xf32> to vector<2x32xbf16>
    %c0_185 = arith.constant 0 : index
    %c0_186 = arith.constant 0 : index
    %319 = vector.load %arg15[%c0_185, %c0_186] : memref<32x32xbf16, #tpu.memory_space<vmem>>, vector<32x32xbf16>
    %cst_187 = arith.constant dense<0.000000e+00> : vector<2x32xf32>
    %320 = tpu.matmul %318, %319, %cst_187 {dimension_numbers = #tpu.dot_dimension_numbers<[1], [0], [0], [1], [0, 0, 1, 1], [], []>} : vector<2x32xbf16>, vector<32x32xbf16>, vector<2x32xf32> -> vector<2x32xf32>
    %321 = arith.truncf %311 : vector<2x32xf32> to vector<2x32xbf16>
    %c0_188 = arith.constant 0 : index
    %c0_189 = arith.constant 0 : index
    %322 = vector.load %arg16[%c0_188, %c0_189] : memref<32x32xbf16, #tpu.memory_space<vmem>>, vector<32x32xbf16>
    %cst_190 = arith.constant dense<0.000000e+00> : vector<2x32xf32>
    %323 = tpu.matmul %321, %322, %cst_190 {dimension_numbers = #tpu.dot_dimension_numbers<[1], [0], [0], [1], [0, 0, 1, 1], [], []>} : vector<2x32xbf16>, vector<32x32xbf16>, vector<2x32xf32> -> vector<2x32xf32>
    %324 = vector.broadcast %198 : vector<1x32xf32> to vector<2x32xf32>
    %325 = arith.addf %323, %324 : vector<2x32xf32>
    %326 = arith.index_cast %314 : i32 to index
    %c0_191 = arith.constant 0 : index
    %327 = vector.load %arg41[%326, %c0_191] : memref<10x32xf32, #tpu.memory_space<vmem>>, vector<2x32xf32>
    %328 = arith.addf %327, %317 : vector<2x32xf32>
    %329 = arith.negf %328 : vector<2x32xf32>
    %330 = math.exp %329 : vector<2x32xf32>
    %cst_192 = arith.constant 1.000000e+00 : f32
    %331 = vector.broadcast %cst_192 : f32 to vector<2x32xf32>
    %332 = arith.addf %331, %330 : vector<2x32xf32>
    %333 = arith.divf %331, %332 : vector<2x32xf32>
    %334 = arith.index_cast %314 : i32 to index
    %c0_193 = arith.constant 0 : index
    %335 = vector.load %arg42[%334, %c0_193] : memref<10x32xf32, #tpu.memory_space<vmem>>, vector<2x32xf32>
    %336 = arith.addf %335, %320 : vector<2x32xf32>
    %337 = arith.negf %336 : vector<2x32xf32>
    %338 = math.exp %337 : vector<2x32xf32>
    %cst_194 = arith.constant 1.000000e+00 : f32
    %339 = vector.broadcast %cst_194 : f32 to vector<2x32xf32>
    %340 = arith.addf %339, %338 : vector<2x32xf32>
    %341 = arith.divf %339, %340 : vector<2x32xf32>
    %342 = arith.index_cast %314 : i32 to index
    %c0_195 = arith.constant 0 : index
    %343 = vector.load %arg43[%342, %c0_195] : memref<10x32xf32, #tpu.memory_space<vmem>>, vector<2x32xf32>
    %344 = arith.mulf %333, %325 : vector<2x32xf32>
    %345 = arith.addf %343, %344 : vector<2x32xf32>
    %346 = math.tanh %345 : vector<2x32xf32>
    %347 = arith.subf %311, %346 : vector<2x32xf32>
    %348 = arith.mulf %341, %347 : vector<2x32xf32>
    %349 = arith.addf %348, %346 : vector<2x32xf32>
    %350 = arith.index_cast %314 : i32 to index
    %c0_196 = arith.constant 0 : index
    %351 = vector.load %arg40[%350, %c0_196] : memref<10x32xf32, #tpu.memory_space<vmem>>, vector<2x32xf32>
    tpu.vector_store %arg40[%350, %c0_196], %349 {strides = array<i32>} : memref<10x32xf32, #tpu.memory_space<vmem>>, vector<2x32xf32>,
    %c4_i32_197 = arith.constant 4 : i32
    %c2_i32_198 = arith.constant 2 : i32
    %352 = arith.muli %c4_i32_197, %c2_i32_198 : i32
    %353 = arith.truncf %349 : vector<2x32xf32> to vector<2x32xbf16>
    %c0_199 = arith.constant 0 : index
    %c0_200 = arith.constant 0 : index
    %354 = vector.load %arg14[%c0_199, %c0_200] : memref<32x32xbf16, #tpu.memory_space<vmem>>, vector<32x32xbf16>
    %cst_201 = arith.constant dense<0.000000e+00> : vector<2x32xf32>
    %355 = tpu.matmul %353, %354, %cst_201 {dimension_numbers = #tpu.dot_dimension_numbers<[1], [0], [0], [1], [0, 0, 1, 1], [], []>} : vector<2x32xbf16>, vector<32x32xbf16>, vector<2x32xf32> -> vector<2x32xf32>
    %356 = arith.truncf %349 : vector<2x32xf32> to vector<2x32xbf16>
    %c0_202 = arith.constant 0 : index
    %c0_203 = arith.constant 0 : index
    %357 = vector.load %arg15[%c0_202, %c0_203] : memref<32x32xbf16, #tpu.memory_space<vmem>>, vector<32x32xbf16>
    %cst_204 = arith.constant dense<0.000000e+00> : vector<2x32xf32>
    %358 = tpu.matmul %356, %357, %cst_204 {dimension_numbers = #tpu.dot_dimension_numbers<[1], [0], [0], [1], [0, 0, 1, 1], [], []>} : vector<2x32xbf16>, vector<32x32xbf16>, vector<2x32xf32> -> vector<2x32xf32>
    %359 = arith.truncf %349 : vector<2x32xf32> to vector<2x32xbf16>
    %c0_205 = arith.constant 0 : index
    %c0_206 = arith.constant 0 : index
    %360 = vector.load %arg16[%c0_205, %c0_206] : memref<32x32xbf16, #tpu.memory_space<vmem>>, vector<32x32xbf16>
    %cst_207 = arith.constant dense<0.000000e+00> : vector<2x32xf32>
    %361 = tpu.matmul %359, %360, %cst_207 {dimension_numbers = #tpu.dot_dimension_numbers<[1], [0], [0], [1], [0, 0, 1, 1], [], []>} : vector<2x32xbf16>, vector<32x32xbf16>, vector<2x32xf32> -> vector<2x32xf32>
    %362 = vector.broadcast %198 : vector<1x32xf32> to vector<2x32xf32>
    %363 = arith.addf %361, %362 : vector<2x32xf32>
    %364 = arith.index_cast %352 : i32 to index
    %c0_208 = arith.constant 0 : index
    %365 = vector.load %arg41[%364, %c0_208] : memref<10x32xf32, #tpu.memory_space<vmem>>, vector<2x32xf32>
    %366 = arith.addf %365, %355 : vector<2x32xf32>
    %367 = arith.negf %366 : vector<2x32xf32>
    %368 = math.exp %367 : vector<2x32xf32>
    %cst_209 = arith.constant 1.000000e+00 : f32
    %369 = vector.broadcast %cst_209 : f32 to vector<2x32xf32>
    %370 = arith.addf %369, %368 : vector<2x32xf32>
    %371 = arith.divf %369, %370 : vector<2x32xf32>
    %372 = arith.index_cast %352 : i32 to index
    %c0_210 = arith.constant 0 : index
    %373 = vector.load %arg42[%372, %c0_210] : memref<10x32xf32, #tpu.memory_space<vmem>>, vector<2x32xf32>
    %374 = arith.addf %373, %358 : vector<2x32xf32>
    %375 = arith.negf %374 : vector<2x32xf32>
    %376 = math.exp %375 : vector<2x32xf32>
    %cst_211 = arith.constant 1.000000e+00 : f32
    %377 = vector.broadcast %cst_211 : f32 to vector<2x32xf32>
    %378 = arith.addf %377, %376 : vector<2x32xf32>
    %379 = arith.divf %377, %378 : vector<2x32xf32>
    %380 = arith.index_cast %352 : i32 to index
    %c0_212 = arith.constant 0 : index
    %381 = vector.load %arg43[%380, %c0_212] : memref<10x32xf32, #tpu.memory_space<vmem>>, vector<2x32xf32>
    %382 = arith.mulf %371, %363 : vector<2x32xf32>
    %383 = arith.addf %381, %382 : vector<2x32xf32>
    %384 = math.tanh %383 : vector<2x32xf32>
    %385 = arith.subf %349, %384 : vector<2x32xf32>
    %386 = arith.mulf %379, %385 : vector<2x32xf32>
    %387 = arith.addf %386, %384 : vector<2x32xf32>
    %388 = arith.index_cast %352 : i32 to index
    %c0_213 = arith.constant 0 : index
    %389 = vector.load %arg40[%388, %c0_213] : memref<10x32xf32, #tpu.memory_space<vmem>>, vector<2x32xf32>
    tpu.vector_store %arg40[%388, %c0_213], %387 {strides = array<i32>} : memref<10x32xf32, #tpu.memory_space<vmem>>, vector<2x32xf32>,
    %c5_i32_214 = arith.constant 5 : i32
    %c0_215 = arith.constant 0 : index
    %c0_216 = arith.constant 0 : index
    %390 = vector.load %arg40[%c0_215, %c0_216] : memref<10x32xf32, #tpu.memory_space<vmem>>, vector<10x32xf32>
    %391 = arith.truncf %390 : vector<10x32xf32> to vector<10x32xbf16>
    %c0_217 = arith.constant 0 : index
    %c0_218 = arith.constant 0 : index
    %392 = vector.load %arg21[%c0_217, %c0_218] : memref<32x32xbf16, #tpu.memory_space<vmem>>, vector<32x32xbf16>
    %cst_219 = arith.constant dense<0.000000e+00> : vector<10x32xf32>
    %393 = tpu.matmul %391, %392, %cst_219 {dimension_numbers = #tpu.dot_dimension_numbers<[1], [0], [0], [1], [0, 0, 1, 1], [], []>} : vector<10x32xbf16>, vector<32x32xbf16>, vector<10x32xf32> -> vector<10x32xf32>
    %c0_220 = arith.constant 0 : index
    %c0_221 = arith.constant 0 : index
    %394 = vector.load %arg27[%c0_220, %c0_221] : memref<1x32xf32, #tpu.memory_space<vmem>>, vector<1x32xf32>
    %395 = vector.broadcast %394 : vector<1x32xf32> to vector<10x32xf32>
    %396 = arith.addf %393, %395 : vector<10x32xf32>
    %c0_222 = arith.constant 0 : index
    %c0_223 = arith.constant 0 : index
    %397 = vector.load %arg41[%c0_222, %c0_223] : memref<10x32xf32, #tpu.memory_space<vmem>>, vector<10x32xf32>
    tpu.vector_store %arg41[%c0_222, %c0_223], %396 {strides = array<i32>} : memref<10x32xf32, #tpu.memory_space<vmem>>, vector<10x32xf32>,
    %398 = arith.truncf %390 : vector<10x32xf32> to vector<10x32xbf16>
    %c0_224 = arith.constant 0 : index
    %c0_225 = arith.constant 0 : index
    %399 = vector.load %arg22[%c0_224, %c0_225] : memref<32x32xbf16, #tpu.memory_space<vmem>>, vector<32x32xbf16>
    %cst_226 = arith.constant dense<0.000000e+00> : vector<10x32xf32>
    %400 = tpu.matmul %398, %399, %cst_226 {dimension_numbers = #tpu.dot_dimension_numbers<[1], [0], [0], [1], [0, 0, 1, 1], [], []>} : vector<10x32xbf16>, vector<32x32xbf16>, vector<10x32xf32> -> vector<10x32xf32>
    %c0_227 = arith.constant 0 : index
    %c0_228 = arith.constant 0 : index
    %401 = vector.load %arg28[%c0_227, %c0_228] : memref<1x32xf32, #tpu.memory_space<vmem>>, vector<1x32xf32>
    %402 = vector.broadcast %401 : vector<1x32xf32> to vector<10x32xf32>
    %403 = arith.addf %400, %402 : vector<10x32xf32>
    %c0_229 = arith.constant 0 : index
    %c0_230 = arith.constant 0 : index
    %404 = vector.load %arg42[%c0_229, %c0_230] : memref<10x32xf32, #tpu.memory_space<vmem>>, vector<10x32xf32>
    tpu.vector_store %arg42[%c0_229, %c0_230], %403 {strides = array<i32>} : memref<10x32xf32, #tpu.memory_space<vmem>>, vector<10x32xf32>,
    %405 = arith.truncf %390 : vector<10x32xf32> to vector<10x32xbf16>
    %c0_231 = arith.constant 0 : index
    %c0_232 = arith.constant 0 : index
    %406 = vector.load %arg23[%c0_231, %c0_232] : memref<32x32xbf16, #tpu.memory_space<vmem>>, vector<32x32xbf16>
    %cst_233 = arith.constant dense<0.000000e+00> : vector<10x32xf32>
    %407 = tpu.matmul %405, %406, %cst_233 {dimension_numbers = #tpu.dot_dimension_numbers<[1], [0], [0], [1], [0, 0, 1, 1], [], []>} : vector<10x32xbf16>, vector<32x32xbf16>, vector<10x32xf32> -> vector<10x32xf32>
    %c0_234 = arith.constant 0 : index
    %c0_235 = arith.constant 0 : index
    %408 = vector.load %arg29[%c0_234, %c0_235] : memref<1x32xf32, #tpu.memory_space<vmem>>, vector<1x32xf32>
    %409 = vector.broadcast %408 : vector<1x32xf32> to vector<10x32xf32>
    %410 = arith.addf %407, %409 : vector<10x32xf32>
    %c0_236 = arith.constant 0 : index
    %c0_237 = arith.constant 0 : index
    %411 = vector.load %arg43[%c0_236, %c0_237] : memref<10x32xf32, #tpu.memory_space<vmem>>, vector<10x32xf32>
    tpu.vector_store %arg43[%c0_236, %c0_237], %410 {strides = array<i32>} : memref<10x32xf32, #tpu.memory_space<vmem>>, vector<10x32xf32>,
    %c0_238 = arith.constant 0 : index
    %c0_239 = arith.constant 0 : index
    %412 = vector.load %arg30[%c0_238, %c0_239] : memref<1x32xf32, #tpu.memory_space<vmem>>, vector<1x32xf32>
    %cst_240 = arith.constant 0.000000e+00 : f32
    %413 = vector.broadcast %cst_240 : f32 to vector<2x32xf32>
    %c0_i32_241 = arith.constant 0 : i32
    %c2_i32_242 = arith.constant 2 : i32
    %414 = arith.muli %c0_i32_241, %c2_i32_242 : i32
    %415 = arith.truncf %413 : vector<2x32xf32> to vector<2x32xbf16>
    %c0_243 = arith.constant 0 : index
    %c0_244 = arith.constant 0 : index
    %416 = vector.load %arg24[%c0_243, %c0_244] : memref<32x32xbf16, #tpu.memory_space<vmem>>, vector<32x32xbf16>
    %cst_245 = arith.constant dense<0.000000e+00> : vector<2x32xf32>
    %417 = tpu.matmul %415, %416, %cst_245 {dimension_numbers = #tpu.dot_dimension_numbers<[1], [0], [0], [1], [0, 0, 1, 1], [], []>} : vector<2x32xbf16>, vector<32x32xbf16>, vector<2x32xf32> -> vector<2x32xf32>
    %418 = arith.truncf %413 : vector<2x32xf32> to vector<2x32xbf16>
    %c0_246 = arith.constant 0 : index
    %c0_247 = arith.constant 0 : index
    %419 = vector.load %arg25[%c0_246, %c0_247] : memref<32x32xbf16, #tpu.memory_space<vmem>>, vector<32x32xbf16>
    %cst_248 = arith.constant dense<0.000000e+00> : vector<2x32xf32>
    %420 = tpu.matmul %418, %419, %cst_248 {dimension_numbers = #tpu.dot_dimension_numbers<[1], [0], [0], [1], [0, 0, 1, 1], [], []>} : vector<2x32xbf16>, vector<32x32xbf16>, vector<2x32xf32> -> vector<2x32xf32>
    %421 = arith.truncf %413 : vector<2x32xf32> to vector<2x32xbf16>
    %c0_249 = arith.constant 0 : index
    %c0_250 = arith.constant 0 : index
    %422 = vector.load %arg26[%c0_249, %c0_250] : memref<32x32xbf16, #tpu.memory_space<vmem>>, vector<32x32xbf16>
    %cst_251 = arith.constant dense<0.000000e+00> : vector<2x32xf32>
    %423 = tpu.matmul %421, %422, %cst_251 {dimension_numbers = #tpu.dot_dimension_numbers<[1], [0], [0], [1], [0, 0, 1, 1], [], []>} : vector<2x32xbf16>, vector<32x32xbf16>, vector<2x32xf32> -> vector<2x32xf32>
    %424 = vector.broadcast %412 : vector<1x32xf32> to vector<2x32xf32>
    %425 = arith.addf %423, %424 : vector<2x32xf32>
    %426 = arith.index_cast %414 : i32 to index
    %c0_252 = arith.constant 0 : index
    %427 = vector.load %arg41[%426, %c0_252] : memref<10x32xf32, #tpu.memory_space<vmem>>, vector<2x32xf32>
    %428 = arith.addf %427, %417 : vector<2x32xf32>
    %429 = arith.negf %428 : vector<2x32xf32>
    %430 = math.exp %429 : vector<2x32xf32>
    %cst_253 = arith.constant 1.000000e+00 : f32
    %431 = vector.broadcast %cst_253 : f32 to vector<2x32xf32>
    %432 = arith.addf %431, %430 : vector<2x32xf32>
    %433 = arith.divf %431, %432 : vector<2x32xf32>
    %434 = arith.index_cast %414 : i32 to index
    %c0_254 = arith.constant 0 : index
    %435 = vector.load %arg42[%434, %c0_254] : memref<10x32xf32, #tpu.memory_space<vmem>>, vector<2x32xf32>
    %436 = arith.addf %435, %420 : vector<2x32xf32>
    %437 = arith.negf %436 : vector<2x32xf32>
    %438 = math.exp %437 : vector<2x32xf32>
    %cst_255 = arith.constant 1.000000e+00 : f32
    %439 = vector.broadcast %cst_255 : f32 to vector<2x32xf32>
    %440 = arith.addf %439, %438 : vector<2x32xf32>
    %441 = arith.divf %439, %440 : vector<2x32xf32>
    %442 = arith.index_cast %414 : i32 to index
    %c0_256 = arith.constant 0 : index
    %443 = vector.load %arg43[%442, %c0_256] : memref<10x32xf32, #tpu.memory_space<vmem>>, vector<2x32xf32>
    %444 = arith.mulf %433, %425 : vector<2x32xf32>
    %445 = arith.addf %443, %444 : vector<2x32xf32>
    %446 = math.tanh %445 : vector<2x32xf32>
    %447 = arith.subf %413, %446 : vector<2x32xf32>
    %448 = arith.mulf %441, %447 : vector<2x32xf32>
    %449 = arith.addf %448, %446 : vector<2x32xf32>
    %450 = arith.index_cast %414 : i32 to index
    %c0_257 = arith.constant 0 : index
    %451 = vector.load %arg40[%450, %c0_257] : memref<10x32xf32, #tpu.memory_space<vmem>>, vector<2x32xf32>
    tpu.vector_store %arg40[%450, %c0_257], %449 {strides = array<i32>} : memref<10x32xf32, #tpu.memory_space<vmem>>, vector<2x32xf32>,
    %c1_i32_258 = arith.constant 1 : i32
    %c2_i32_259 = arith.constant 2 : i32
    %452 = arith.muli %c1_i32_258, %c2_i32_259 : i32
    %453 = arith.truncf %449 : vector<2x32xf32> to vector<2x32xbf16>
    %c0_260 = arith.constant 0 : index
    %c0_261 = arith.constant 0 : index
    %454 = vector.load %arg24[%c0_260, %c0_261] : memref<32x32xbf16, #tpu.memory_space<vmem>>, vector<32x32xbf16>
    %cst_262 = arith.constant dense<0.000000e+00> : vector<2x32xf32>
    %455 = tpu.matmul %453, %454, %cst_262 {dimension_numbers = #tpu.dot_dimension_numbers<[1], [0], [0], [1], [0, 0, 1, 1], [], []>} : vector<2x32xbf16>, vector<32x32xbf16>, vector<2x32xf32> -> vector<2x32xf32>
    %456 = arith.truncf %449 : vector<2x32xf32> to vector<2x32xbf16>
    %c0_263 = arith.constant 0 : index
    %c0_264 = arith.constant 0 : index
    %457 = vector.load %arg25[%c0_263, %c0_264] : memref<32x32xbf16, #tpu.memory_space<vmem>>, vector<32x32xbf16>
    %cst_265 = arith.constant dense<0.000000e+00> : vector<2x32xf32>
    %458 = tpu.matmul %456, %457, %cst_265 {dimension_numbers = #tpu.dot_dimension_numbers<[1], [0], [0], [1], [0, 0, 1, 1], [], []>} : vector<2x32xbf16>, vector<32x32xbf16>, vector<2x32xf32> -> vector<2x32xf32>
    %459 = arith.truncf %449 : vector<2x32xf32> to vector<2x32xbf16>
    %c0_266 = arith.constant 0 : index
    %c0_267 = arith.constant 0 : index
    %460 = vector.load %arg26[%c0_266, %c0_267] : memref<32x32xbf16, #tpu.memory_space<vmem>>, vector<32x32xbf16>
    %cst_268 = arith.constant dense<0.000000e+00> : vector<2x32xf32>
    %461 = tpu.matmul %459, %460, %cst_268 {dimension_numbers = #tpu.dot_dimension_numbers<[1], [0], [0], [1], [0, 0, 1, 1], [], []>} : vector<2x32xbf16>, vector<32x32xbf16>, vector<2x32xf32> -> vector<2x32xf32>
    %462 = vector.broadcast %412 : vector<1x32xf32> to vector<2x32xf32>
    %463 = arith.addf %461, %462 : vector<2x32xf32>
    %464 = arith.index_cast %452 : i32 to index
    %c0_269 = arith.constant 0 : index
    %465 = vector.load %arg41[%464, %c0_269] : memref<10x32xf32, #tpu.memory_space<vmem>>, vector<2x32xf32>
    %466 = arith.addf %465, %455 : vector<2x32xf32>
    %467 = arith.negf %466 : vector<2x32xf32>
    %468 = math.exp %467 : vector<2x32xf32>
    %cst_270 = arith.constant 1.000000e+00 : f32
    %469 = vector.broadcast %cst_270 : f32 to vector<2x32xf32>
    %470 = arith.addf %469, %468 : vector<2x32xf32>
    %471 = arith.divf %469, %470 : vector<2x32xf32>
    %472 = arith.index_cast %452 : i32 to index
    %c0_271 = arith.constant 0 : index
    %473 = vector.load %arg42[%472, %c0_271] : memref<10x32xf32, #tpu.memory_space<vmem>>, vector<2x32xf32>
    %474 = arith.addf %473, %458 : vector<2x32xf32>
    %475 = arith.negf %474 : vector<2x32xf32>
    %476 = math.exp %475 : vector<2x32xf32>
    %cst_272 = arith.constant 1.000000e+00 : f32
    %477 = vector.broadcast %cst_272 : f32 to vector<2x32xf32>
    %478 = arith.addf %477, %476 : vector<2x32xf32>
    %479 = arith.divf %477, %478 : vector<2x32xf32>
    %480 = arith.index_cast %452 : i32 to index
    %c0_273 = arith.constant 0 : index
    %481 = vector.load %arg43[%480, %c0_273] : memref<10x32xf32, #tpu.memory_space<vmem>>, vector<2x32xf32>
    %482 = arith.mulf %471, %463 : vector<2x32xf32>
    %483 = arith.addf %481, %482 : vector<2x32xf32>
    %484 = math.tanh %483 : vector<2x32xf32>
    %485 = arith.subf %449, %484 : vector<2x32xf32>
    %486 = arith.mulf %479, %485 : vector<2x32xf32>
    %487 = arith.addf %486, %484 : vector<2x32xf32>
    %488 = arith.index_cast %452 : i32 to index
    %c0_274 = arith.constant 0 : index
    %489 = vector.load %arg40[%488, %c0_274] : memref<10x32xf32, #tpu.memory_space<vmem>>, vector<2x32xf32>
    tpu.vector_store %arg40[%488, %c0_274], %487 {strides = array<i32>} : memref<10x32xf32, #tpu.memory_space<vmem>>, vector<2x32xf32>,
    %c2_i32_275 = arith.constant 2 : i32
    %c2_i32_276 = arith.constant 2 : i32
    %490 = arith.muli %c2_i32_275, %c2_i32_276 : i32
    %491 = arith.truncf %487 : vector<2x32xf32> to vector<2x32xbf16>
    %c0_277 = arith.constant 0 : index
    %c0_278 = arith.constant 0 : index
    %492 = vector.load %arg24[%c0_277, %c0_278] : memref<32x32xbf16, #tpu.memory_space<vmem>>, vector<32x32xbf16>
    %cst_279 = arith.constant dense<0.000000e+00> : vector<2x32xf32>
    %493 = tpu.matmul %491, %492, %cst_279 {dimension_numbers = #tpu.dot_dimension_numbers<[1], [0], [0], [1], [0, 0, 1, 1], [], []>} : vector<2x32xbf16>, vector<32x32xbf16>, vector<2x32xf32> -> vector<2x32xf32>
    %494 = arith.truncf %487 : vector<2x32xf32> to vector<2x32xbf16>
    %c0_280 = arith.constant 0 : index
    %c0_281 = arith.constant 0 : index
    %495 = vector.load %arg25[%c0_280, %c0_281] : memref<32x32xbf16, #tpu.memory_space<vmem>>, vector<32x32xbf16>
    %cst_282 = arith.constant dense<0.000000e+00> : vector<2x32xf32>
    %496 = tpu.matmul %494, %495, %cst_282 {dimension_numbers = #tpu.dot_dimension_numbers<[1], [0], [0], [1], [0, 0, 1, 1], [], []>} : vector<2x32xbf16>, vector<32x32xbf16>, vector<2x32xf32> -> vector<2x32xf32>
    %497 = arith.truncf %487 : vector<2x32xf32> to vector<2x32xbf16>
    %c0_283 = arith.constant 0 : index
    %c0_284 = arith.constant 0 : index
    %498 = vector.load %arg26[%c0_283, %c0_284] : memref<32x32xbf16, #tpu.memory_space<vmem>>, vector<32x32xbf16>
    %cst_285 = arith.constant dense<0.000000e+00> : vector<2x32xf32>
    %499 = tpu.matmul %497, %498, %cst_285 {dimension_numbers = #tpu.dot_dimension_numbers<[1], [0], [0], [1], [0, 0, 1, 1], [], []>} : vector<2x32xbf16>, vector<32x32xbf16>, vector<2x32xf32> -> vector<2x32xf32>
    %500 = vector.broadcast %412 : vector<1x32xf32> to vector<2x32xf32>
    %501 = arith.addf %499, %500 : vector<2x32xf32>
    %502 = arith.index_cast %490 : i32 to index
    %c0_286 = arith.constant 0 : index
    %503 = vector.load %arg41[%502, %c0_286] : memref<10x32xf32, #tpu.memory_space<vmem>>, vector<2x32xf32>
    %504 = arith.addf %503, %493 : vector<2x32xf32>
    %505 = arith.negf %504 : vector<2x32xf32>
    %506 = math.exp %505 : vector<2x32xf32>
    %cst_287 = arith.constant 1.000000e+00 : f32
    %507 = vector.broadcast %cst_287 : f32 to vector<2x32xf32>
    %508 = arith.addf %507, %506 : vector<2x32xf32>
    %509 = arith.divf %507, %508 : vector<2x32xf32>
    %510 = arith.index_cast %490 : i32 to index
    %c0_288 = arith.constant 0 : index
    %511 = vector.load %arg42[%510, %c0_288] : memref<10x32xf32, #tpu.memory_space<vmem>>, vector<2x32xf32>
    %512 = arith.addf %511, %496 : vector<2x32xf32>
    %513 = arith.negf %512 : vector<2x32xf32>
    %514 = math.exp %513 : vector<2x32xf32>
    %cst_289 = arith.constant 1.000000e+00 : f32
    %515 = vector.broadcast %cst_289 : f32 to vector<2x32xf32>
    %516 = arith.addf %515, %514 : vector<2x32xf32>
    %517 = arith.divf %515, %516 : vector<2x32xf32>
    %518 = arith.index_cast %490 : i32 to index
    %c0_290 = arith.constant 0 : index
    %519 = vector.load %arg43[%518, %c0_290] : memref<10x32xf32, #tpu.memory_space<vmem>>, vector<2x32xf32>
    %520 = arith.mulf %509, %501 : vector<2x32xf32>
    %521 = arith.addf %519, %520 : vector<2x32xf32>
    %522 = math.tanh %521 : vector<2x32xf32>
    %523 = arith.subf %487, %522 : vector<2x32xf32>
    %524 = arith.mulf %517, %523 : vector<2x32xf32>
    %525 = arith.addf %524, %522 : vector<2x32xf32>
    %526 = arith.index_cast %490 : i32 to index
    %c0_291 = arith.constant 0 : index
    %527 = vector.load %arg40[%526, %c0_291] : memref<10x32xf32, #tpu.memory_space<vmem>>, vector<2x32xf32>
    tpu.vector_store %arg40[%526, %c0_291], %525 {strides = array<i32>} : memref<10x32xf32, #tpu.memory_space<vmem>>, vector<2x32xf32>,
    %c3_i32_292 = arith.constant 3 : i32
    %c2_i32_293 = arith.constant 2 : i32
    %528 = arith.muli %c3_i32_292, %c2_i32_293 : i32
    %529 = arith.truncf %525 : vector<2x32xf32> to vector<2x32xbf16>
    %c0_294 = arith.constant 0 : index
    %c0_295 = arith.constant 0 : index
    %530 = vector.load %arg24[%c0_294, %c0_295] : memref<32x32xbf16, #tpu.memory_space<vmem>>, vector<32x32xbf16>
    %cst_296 = arith.constant dense<0.000000e+00> : vector<2x32xf32>
    %531 = tpu.matmul %529, %530, %cst_296 {dimension_numbers = #tpu.dot_dimension_numbers<[1], [0], [0], [1], [0, 0, 1, 1], [], []>} : vector<2x32xbf16>, vector<32x32xbf16>, vector<2x32xf32> -> vector<2x32xf32>
    %532 = arith.truncf %525 : vector<2x32xf32> to vector<2x32xbf16>
    %c0_297 = arith.constant 0 : index
    %c0_298 = arith.constant 0 : index
    %533 = vector.load %arg25[%c0_297, %c0_298] : memref<32x32xbf16, #tpu.memory_space<vmem>>, vector<32x32xbf16>
    %cst_299 = arith.constant dense<0.000000e+00> : vector<2x32xf32>
    %534 = tpu.matmul %532, %533, %cst_299 {dimension_numbers = #tpu.dot_dimension_numbers<[1], [0], [0], [1], [0, 0, 1, 1], [], []>} : vector<2x32xbf16>, vector<32x32xbf16>, vector<2x32xf32> -> vector<2x32xf32>
    %535 = arith.truncf %525 : vector<2x32xf32> to vector<2x32xbf16>
    %c0_300 = arith.constant 0 : index
    %c0_301 = arith.constant 0 : index
    %536 = vector.load %arg26[%c0_300, %c0_301] : memref<32x32xbf16, #tpu.memory_space<vmem>>, vector<32x32xbf16>
    %cst_302 = arith.constant dense<0.000000e+00> : vector<2x32xf32>
    %537 = tpu.matmul %535, %536, %cst_302 {dimension_numbers = #tpu.dot_dimension_numbers<[1], [0], [0], [1], [0, 0, 1, 1], [], []>} : vector<2x32xbf16>, vector<32x32xbf16>, vector<2x32xf32> -> vector<2x32xf32>
    %538 = vector.broadcast %412 : vector<1x32xf32> to vector<2x32xf32>
    %539 = arith.addf %537, %538 : vector<2x32xf32>
    %540 = arith.index_cast %528 : i32 to index
    %c0_303 = arith.constant 0 : index
    %541 = vector.load %arg41[%540, %c0_303] : memref<10x32xf32, #tpu.memory_space<vmem>>, vector<2x32xf32>
    %542 = arith.addf %541, %531 : vector<2x32xf32>
    %543 = arith.negf %542 : vector<2x32xf32>
    %544 = math.exp %543 : vector<2x32xf32>
    %cst_304 = arith.constant 1.000000e+00 : f32
    %545 = vector.broadcast %cst_304 : f32 to vector<2x32xf32>
    %546 = arith.addf %545, %544 : vector<2x32xf32>
    %547 = arith.divf %545, %546 : vector<2x32xf32>
    %548 = arith.index_cast %528 : i32 to index
    %c0_305 = arith.constant 0 : index
    %549 = vector.load %arg42[%548, %c0_305] : memref<10x32xf32, #tpu.memory_space<vmem>>, vector<2x32xf32>
    %550 = arith.addf %549, %534 : vector<2x32xf32>
    %551 = arith.negf %550 : vector<2x32xf32>
    %552 = math.exp %551 : vector<2x32xf32>
    %cst_306 = arith.constant 1.000000e+00 : f32
    %553 = vector.broadcast %cst_306 : f32 to vector<2x32xf32>
    %554 = arith.addf %553, %552 : vector<2x32xf32>
    %555 = arith.divf %553, %554 : vector<2x32xf32>
    %556 = arith.index_cast %528 : i32 to index
    %c0_307 = arith.constant 0 : index
    %557 = vector.load %arg43[%556, %c0_307] : memref<10x32xf32, #tpu.memory_space<vmem>>, vector<2x32xf32>
    %558 = arith.mulf %547, %539 : vector<2x32xf32>
    %559 = arith.addf %557, %558 : vector<2x32xf32>
    %560 = math.tanh %559 : vector<2x32xf32>
    %561 = arith.subf %525, %560 : vector<2x32xf32>
    %562 = arith.mulf %555, %561 : vector<2x32xf32>
    %563 = arith.addf %562, %560 : vector<2x32xf32>
    %564 = arith.index_cast %528 : i32 to index
    %c0_308 = arith.constant 0 : index
    %565 = vector.load %arg40[%564, %c0_308] : memref<10x32xf32, #tpu.memory_space<vmem>>, vector<2x32xf32>
    tpu.vector_store %arg40[%564, %c0_308], %563 {strides = array<i32>} : memref<10x32xf32, #tpu.memory_space<vmem>>, vector<2x32xf32>,
    %c4_i32_309 = arith.constant 4 : i32
    %c2_i32_310 = arith.constant 2 : i32
    %566 = arith.muli %c4_i32_309, %c2_i32_310 : i32
    %567 = arith.truncf %563 : vector<2x32xf32> to vector<2x32xbf16>
    %c0_311 = arith.constant 0 : index
    %c0_312 = arith.constant 0 : index
    %568 = vector.load %arg24[%c0_311, %c0_312] : memref<32x32xbf16, #tpu.memory_space<vmem>>, vector<32x32xbf16>
    %cst_313 = arith.constant dense<0.000000e+00> : vector<2x32xf32>
    %569 = tpu.matmul %567, %568, %cst_313 {dimension_numbers = #tpu.dot_dimension_numbers<[1], [0], [0], [1], [0, 0, 1, 1], [], []>} : vector<2x32xbf16>, vector<32x32xbf16>, vector<2x32xf32> -> vector<2x32xf32>
    %570 = arith.truncf %563 : vector<2x32xf32> to vector<2x32xbf16>
    %c0_314 = arith.constant 0 : index
    %c0_315 = arith.constant 0 : index
    %571 = vector.load %arg25[%c0_314, %c0_315] : memref<32x32xbf16, #tpu.memory_space<vmem>>, vector<32x32xbf16>
    %cst_316 = arith.constant dense<0.000000e+00> : vector<2x32xf32>
    %572 = tpu.matmul %570, %571, %cst_316 {dimension_numbers = #tpu.dot_dimension_numbers<[1], [0], [0], [1], [0, 0, 1, 1], [], []>} : vector<2x32xbf16>, vector<32x32xbf16>, vector<2x32xf32> -> vector<2x32xf32>
    %573 = arith.truncf %563 : vector<2x32xf32> to vector<2x32xbf16>
    %c0_317 = arith.constant 0 : index
    %c0_318 = arith.constant 0 : index
    %574 = vector.load %arg26[%c0_317, %c0_318] : memref<32x32xbf16, #tpu.memory_space<vmem>>, vector<32x32xbf16>
    %cst_319 = arith.constant dense<0.000000e+00> : vector<2x32xf32>
    %575 = tpu.matmul %573, %574, %cst_319 {dimension_numbers = #tpu.dot_dimension_numbers<[1], [0], [0], [1], [0, 0, 1, 1], [], []>} : vector<2x32xbf16>, vector<32x32xbf16>, vector<2x32xf32> -> vector<2x32xf32>
    %576 = vector.broadcast %412 : vector<1x32xf32> to vector<2x32xf32>
    %577 = arith.addf %575, %576 : vector<2x32xf32>
    %578 = arith.index_cast %566 : i32 to index
    %c0_320 = arith.constant 0 : index
    %579 = vector.load %arg41[%578, %c0_320] : memref<10x32xf32, #tpu.memory_space<vmem>>, vector<2x32xf32>
    %580 = arith.addf %579, %569 : vector<2x32xf32>
    %581 = arith.negf %580 : vector<2x32xf32>
    %582 = math.exp %581 : vector<2x32xf32>
    %cst_321 = arith.constant 1.000000e+00 : f32
    %583 = vector.broadcast %cst_321 : f32 to vector<2x32xf32>
    %584 = arith.addf %583, %582 : vector<2x32xf32>
    %585 = arith.divf %583, %584 : vector<2x32xf32>
    %586 = arith.index_cast %566 : i32 to index
    %c0_322 = arith.constant 0 : index
    %587 = vector.load %arg42[%586, %c0_322] : memref<10x32xf32, #tpu.memory_space<vmem>>, vector<2x32xf32>
    %588 = arith.addf %587, %572 : vector<2x32xf32>
    %589 = arith.negf %588 : vector<2x32xf32>
    %590 = math.exp %589 : vector<2x32xf32>
    %cst_323 = arith.constant 1.000000e+00 : f32
    %591 = vector.broadcast %cst_323 : f32 to vector<2x32xf32>
    %592 = arith.addf %591, %590 : vector<2x32xf32>
    %593 = arith.divf %591, %592 : vector<2x32xf32>
    %594 = arith.index_cast %566 : i32 to index
    %c0_324 = arith.constant 0 : index
    %595 = vector.load %arg43[%594, %c0_324] : memref<10x32xf32, #tpu.memory_space<vmem>>, vector<2x32xf32>
    %596 = arith.mulf %585, %577 : vector<2x32xf32>
    %597 = arith.addf %595, %596 : vector<2x32xf32>
    %598 = math.tanh %597 : vector<2x32xf32>
    %599 = arith.subf %563, %598 : vector<2x32xf32>
    %600 = arith.mulf %593, %599 : vector<2x32xf32>
    %601 = arith.addf %600, %598 : vector<2x32xf32>
    %602 = arith.index_cast %566 : i32 to index
    %c0_325 = arith.constant 0 : index
    %603 = vector.load %arg40[%602, %c0_325] : memref<10x32xf32, #tpu.memory_space<vmem>>, vector<2x32xf32>
    tpu.vector_store %arg40[%602, %c0_325], %601 {strides = array<i32>} : memref<10x32xf32, #tpu.memory_space<vmem>>, vector<2x32xf32>,
    %c5_i32_326 = arith.constant 5 : i32
    %604 = arith.truncf %601 : vector<2x32xf32> to vector<2x32xbf16>
    %c0_327 = arith.constant 0 : index
    %c0_328 = arith.constant 0 : index
    %605 = vector.load %arg31[%c0_327, %c0_328] : memref<32x128xbf16, #tpu.memory_space<vmem>>, vector<32x128xbf16>
    %cst_329 = arith.constant dense<0.000000e+00> : vector<2x128xf32>
    %606 = tpu.matmul %604, %605, %cst_329 {dimension_numbers = #tpu.dot_dimension_numbers<[1], [0], [0], [1], [0, 0, 1, 1], [], []>} : vector<2x32xbf16>, vector<32x128xbf16>, vector<2x128xf32> -> vector<2x128xf32>
    %c0_330 = arith.constant 0 : index
    %c0_331 = arith.constant 0 : index
    %607 = vector.load %arg32[%c0_330, %c0_331] : memref<1x128xf32, #tpu.memory_space<vmem>>, vector<1x128xf32>
    %608 = vector.broadcast %607 : vector<1x128xf32> to vector<2x128xf32>
    %609 = arith.addf %606, %608 : vector<2x128xf32>
    %cst_332 = arith.constant dense<0xFF800000> : vector<2xf32>
    %610 = vector.multi_reduction <maximumf>, %609, %cst_332 [1] : vector<2x128xf32> to vector<2xf32>
    %611 = vector.shape_cast %610 : vector<2xf32> to vector<2x1xf32>
    %612 = vector.broadcast %611 : vector<2x1xf32> to vector<2x128xf32>
    %613 = arith.subf %609, %612 : vector<2x128xf32>
    %614 = math.exp %613 : vector<2x128xf32>
    %cst_333 = arith.constant dense<0.000000e+00> : vector<2xf32>
    %615 = vector.multi_reduction <add>, %614, %cst_333 [1] : vector<2x128xf32> to vector<2xf32>
    %616 = vector.shape_cast %615 : vector<2xf32> to vector<2x1xf32>
    %617 = tpu.reciprocal %616 {approx = true} : vector<2x1xf32> -> vector<2x1xf32>
    %618 = arith.mulf %616, %617 : vector<2x1xf32>
    %cst_334 = arith.constant 2.000000e+00 : f32
    %619 = vector.broadcast %cst_334 : f32 to vector<2x1xf32>
    %620 = arith.subf %619, %618 : vector<2x1xf32>
    %621 = arith.mulf %617, %620 : vector<2x1xf32>
    %622 = vector.broadcast %621 : vector<2x1xf32> to vector<2x128xf32>
    %623 = arith.mulf %614, %622 : vector<2x128xf32>
    %c0_335 = arith.constant 0 : index
    %c0_336 = arith.constant 0 : index
    %624 = vector.load %arg37[%c0_335, %c0_336] : memref<2x128xf32, #tpu.memory_space<vmem>>, vector<2x128xf32>
    tpu.vector_store %arg37[%c0_335, %c0_336], %623 {strides = array<i32>} : memref<2x128xf32, #tpu.memory_space<vmem>>, vector<2x128xf32>,
    %625 = arith.truncf %601 : vector<2x32xf32> to vector<2x32xbf16>
    %c0_337 = arith.constant 0 : index
    %c0_338 = arith.constant 0 : index
    %626 = vector.load %arg33[%c0_337, %c0_338] : memref<32x32xbf16, #tpu.memory_space<vmem>>, vector<32x32xbf16>
    %cst_339 = arith.constant dense<0.000000e+00> : vector<2x32xf32>
    %627 = tpu.matmul %625, %626, %cst_339 {dimension_numbers = #tpu.dot_dimension_numbers<[1], [0], [0], [1], [0, 0, 1, 1], [], []>} : vector<2x32xbf16>, vector<32x32xbf16>, vector<2x32xf32> -> vector<2x32xf32>
    %c0_340 = arith.constant 0 : index
    %c0_341 = arith.constant 0 : index
    %628 = vector.load %arg34[%c0_340, %c0_341] : memref<1x32xf32, #tpu.memory_space<vmem>>, vector<1x32xf32>
    %629 = vector.broadcast %628 : vector<1x32xf32> to vector<2x32xf32>
    %630 = arith.addf %627, %629 : vector<2x32xf32>
    %cst_342 = arith.constant 0.000000e+00 : f32
    %631 = vector.broadcast %cst_342 : f32 to vector<2x32xf32>
    %632 = arith.maximumf %630, %631 : vector<2x32xf32>
    %633 = arith.truncf %632 : vector<2x32xf32> to vector<2x32xbf16>
    %c0_343 = arith.constant 0 : index
    %c0_344 = arith.constant 0 : index
    %634 = vector.load %arg35[%c0_343, %c0_344] : memref<32x128xbf16, #tpu.memory_space<vmem>>, vector<32x128xbf16>
    %cst_345 = arith.constant dense<0.000000e+00> : vector<2x128xf32>
    %635 = tpu.matmul %633, %634, %cst_345 {dimension_numbers = #tpu.dot_dimension_numbers<[1], [0], [0], [1], [0, 0, 1, 1], [], []>} : vector<2x32xbf16>, vector<32x128xbf16>, vector<2x128xf32> -> vector<2x128xf32>
    %c0_346 = arith.constant 0 : index
    %c0_347 = arith.constant 0 : index
    %636 = vector.load %arg36[%c0_346, %c0_347] : memref<1x128xf32, #tpu.memory_space<vmem>>, vector<1x128xf32>
    %637 = vector.broadcast %636 : vector<1x128xf32> to vector<2x128xf32>
    %638 = arith.addf %635, %637 : vector<2x128xf32>
    %c0_348 = arith.constant 0 : index
    %c0_349 = arith.constant 0 : index
    %639 = vector.load %arg38[%c0_348, %c0_349] : memref<2x128xf32, #tpu.memory_space<vmem>>, vector<2x128xf32>
    tpu.vector_store %arg38[%c0_348, %c0_349], %638 {strides = array<i32>} : memref<2x128xf32, #tpu.memory_space<vmem>>, vector<2x128xf32>,
    return
  }
  func.func @transform_0(%arg0: i32, %arg1: memref<8xi32, #tpu.memory_space<smem>>) -> (i32, i32) {
    %c0_i32 = arith.constant 0 : i32
    %c0_i32_0 = arith.constant 0 : i32
    return %arg0, %c0_i32 : i32, i32
  }
  func.func @transform_2(%arg0: i32, %arg1: memref<8xi32, #tpu.memory_space<smem>>) -> (i32, i32) {
    %c0_i32 = arith.constant 0 : i32
    %c0_i32_0 = arith.constant 0 : i32
    %c0_i32_1 = arith.constant 0 : i32
    return %c0_i32, %c0_i32_0 : i32, i32
  }
  func.func @transform_3(%arg0: i32, %arg1: memref<8xi32, #tpu.memory_space<smem>>) -> (i32, i32) {
    %c0_i32 = arith.constant 0 : i32
    %c0_i32_0 = arith.constant 0 : i32
    %c0_i32_1 = arith.constant 0 : i32
    return %c0_i32, %c0_i32_0 : i32, i32
  }
  func.func @transform_4(%arg0: i32, %arg1: memref<8xi32, #tpu.memory_space<smem>>) -> (i32, i32) {
    %c0_i32 = arith.constant 0 : i32
    %c0_i32_0 = arith.constant 0 : i32
    %c0_i32_1 = arith.constant 0 : i32
    return %c0_i32, %c0_i32_0 : i32, i32
  }
  func.func @transform_5(%arg0: i32, %arg1: memref<8xi32, #tpu.memory_space<smem>>) -> (i32, i32) {
    %c0_i32 = arith.constant 0 : i32
    %c0_i32_0 = arith.constant 0 : i32
    %c0_i32_1 = arith.constant 0 : i32
    return %c0_i32, %c0_i32_0 : i32, i32
  }
  func.func @transform_6(%arg0: i32, %arg1: memref<8xi32, #tpu.memory_space<smem>>) -> (i32, i32) {
    %c0_i32 = arith.constant 0 : i32
    %c0_i32_0 = arith.constant 0 : i32
    %c0_i32_1 = arith.constant 0 : i32
    return %c0_i32, %c0_i32_0 : i32, i32
  }
  func.func @transform_7(%arg0: i32, %arg1: memref<8xi32, #tpu.memory_space<smem>>) -> (i32, i32) {
    %c0_i32 = arith.constant 0 : i32
    %c0_i32_0 = arith.constant 0 : i32
    %c0_i32_1 = arith.constant 0 : i32
    return %c0_i32, %c0_i32_0 : i32, i32
  }
  func.func @transform_8(%arg0: i32, %arg1: memref<8xi32, #tpu.memory_space<smem>>) -> (i32, i32) {
    %c0_i32 = arith.constant 0 : i32
    %c0_i32_0 = arith.constant 0 : i32
    %c0_i32_1 = arith.constant 0 : i32
    return %c0_i32, %c0_i32_0 : i32, i32
  }
  func.func @transform_9(%arg0: i32, %arg1: memref<8xi32, #tpu.memory_space<smem>>) -> (i32, i32) {
    %c0_i32 = arith.constant 0 : i32
    %c0_i32_0 = arith.constant 0 : i32
    %c0_i32_1 = arith.constant 0 : i32
    return %c0_i32, %c0_i32_0 : i32, i32
  }
  func.func @transform_10(%arg0: i32, %arg1: memref<8xi32, #tpu.memory_space<smem>>) -> (i32, i32) {
    %c0_i32 = arith.constant 0 : i32
    %c0_i32_0 = arith.constant 0 : i32
    %c0_i32_1 = arith.constant 0 : i32
    return %c0_i32, %c0_i32_0 : i32, i32
  }
  func.func @transform_11(%arg0: i32, %arg1: memref<8xi32, #tpu.memory_space<smem>>) -> (i32, i32) {
    %c0_i32 = arith.constant 0 : i32
    %c0_i32_0 = arith.constant 0 : i32
    %c0_i32_1 = arith.constant 0 : i32
    return %c0_i32, %c0_i32_0 : i32, i32
  }
  func.func @transform_12(%arg0: i32, %arg1: memref<8xi32, #tpu.memory_space<smem>>) -> (i32, i32) {
    %c0_i32 = arith.constant 0 : i32
    %c0_i32_0 = arith.constant 0 : i32
    %c0_i32_1 = arith.constant 0 : i32
    return %c0_i32, %c0_i32_0 : i32, i32
  }
  func.func @transform_13(%arg0: i32, %arg1: memref<8xi32, #tpu.memory_space<smem>>) -> (i32, i32) {
    %c0_i32 = arith.constant 0 : i32
    %c0_i32_0 = arith.constant 0 : i32
    %c0_i32_1 = arith.constant 0 : i32
    return %c0_i32, %c0_i32_0 : i32, i32
  }
  func.func @transform_14(%arg0: i32, %arg1: memref<8xi32, #tpu.memory_space<smem>>) -> (i32, i32) {
    %c0_i32 = arith.constant 0 : i32
    %c0_i32_0 = arith.constant 0 : i32
    %c0_i32_1 = arith.constant 0 : i32
    return %c0_i32, %c0_i32_0 : i32, i32
  }
  func.func @transform_15(%arg0: i32, %arg1: memref<8xi32, #tpu.memory_space<smem>>) -> (i32, i32) {
    %c0_i32 = arith.constant 0 : i32
    %c0_i32_0 = arith.constant 0 : i32
    %c0_i32_1 = arith.constant 0 : i32
    return %c0_i32, %c0_i32_0 : i32, i32
  }
  func.func @transform_16(%arg0: i32, %arg1: memref<8xi32, #tpu.memory_space<smem>>) -> (i32, i32) {
    %c0_i32 = arith.constant 0 : i32
    %c0_i32_0 = arith.constant 0 : i32
    %c0_i32_1 = arith.constant 0 : i32
    return %c0_i32, %c0_i32_0 : i32, i32
  }
  func.func @transform_17(%arg0: i32, %arg1: memref<8xi32, #tpu.memory_space<smem>>) -> (i32, i32) {
    %c0_i32 = arith.constant 0 : i32
    %c0_i32_0 = arith.constant 0 : i32
    %c0_i32_1 = arith.constant 0 : i32
    return %c0_i32, %c0_i32_0 : i32, i32
  }
  func.func @transform_18(%arg0: i32, %arg1: memref<8xi32, #tpu.memory_space<smem>>) -> (i32, i32) {
    %c0_i32 = arith.constant 0 : i32
    %c0_i32_0 = arith.constant 0 : i32
    %c0_i32_1 = arith.constant 0 : i32
    return %c0_i32, %c0_i32_0 : i32, i32
  }
  func.func @transform_19(%arg0: i32, %arg1: memref<8xi32, #tpu.memory_space<smem>>) -> (i32, i32) {
    %c0_i32 = arith.constant 0 : i32
    %c0_i32_0 = arith.constant 0 : i32
    %c0_i32_1 = arith.constant 0 : i32
    return %c0_i32, %c0_i32_0 : i32, i32
  }
  func.func @transform_20(%arg0: i32, %arg1: memref<8xi32, #tpu.memory_space<smem>>) -> (i32, i32) {
    %c0_i32 = arith.constant 0 : i32
    %c0_i32_0 = arith.constant 0 : i32
    %c0_i32_1 = arith.constant 0 : i32
    return %c0_i32, %c0_i32_0 : i32, i32
  }
  func.func @transform_21(%arg0: i32, %arg1: memref<8xi32, #tpu.memory_space<smem>>) -> (i32, i32) {
    %c0_i32 = arith.constant 0 : i32
    %c0_i32_0 = arith.constant 0 : i32
    %c0_i32_1 = arith.constant 0 : i32
    return %c0_i32, %c0_i32_0 : i32, i32
  }
  func.func @transform_22(%arg0: i32, %arg1: memref<8xi32, #tpu.memory_space<smem>>) -> (i32, i32) {
    %c0_i32 = arith.constant 0 : i32
    %c0_i32_0 = arith.constant 0 : i32
    %c0_i32_1 = arith.constant 0 : i32
    return %c0_i32, %c0_i32_0 : i32, i32
  }
  func.func @transform_23(%arg0: i32, %arg1: memref<8xi32, #tpu.memory_space<smem>>) -> (i32, i32) {
    %c0_i32 = arith.constant 0 : i32
    %c0_i32_0 = arith.constant 0 : i32
    %c0_i32_1 = arith.constant 0 : i32
    return %c0_i32, %c0_i32_0 : i32, i32
  }
  func.func @transform_24(%arg0: i32, %arg1: memref<8xi32, #tpu.memory_space<smem>>) -> (i32, i32) {
    %c0_i32 = arith.constant 0 : i32
    %c0_i32_0 = arith.constant 0 : i32
    %c0_i32_1 = arith.constant 0 : i32
    return %c0_i32, %c0_i32_0 : i32, i32
  }
  func.func @transform_25(%arg0: i32, %arg1: memref<8xi32, #tpu.memory_space<smem>>) -> (i32, i32) {
    %c0_i32 = arith.constant 0 : i32
    %c0_i32_0 = arith.constant 0 : i32
    %c0_i32_1 = arith.constant 0 : i32
    return %c0_i32, %c0_i32_0 : i32, i32
  }
  func.func @transform_26(%arg0: i32, %arg1: memref<8xi32, #tpu.memory_space<smem>>) -> (i32, i32) {
    %c0_i32 = arith.constant 0 : i32
    %c0_i32_0 = arith.constant 0 : i32
    %c0_i32_1 = arith.constant 0 : i32
    return %c0_i32, %c0_i32_0 : i32, i32
  }
  func.func @transform_27(%arg0: i32, %arg1: memref<8xi32, #tpu.memory_space<smem>>) -> (i32, i32) {
    %c0_i32 = arith.constant 0 : i32
    %c0_i32_0 = arith.constant 0 : i32
    %c0_i32_1 = arith.constant 0 : i32
    return %c0_i32, %c0_i32_0 : i32, i32
  }
  func.func @transform_28(%arg0: i32, %arg1: memref<8xi32, #tpu.memory_space<smem>>) -> (i32, i32) {
    %c0_i32 = arith.constant 0 : i32
    %c0_i32_0 = arith.constant 0 : i32
    %c0_i32_1 = arith.constant 0 : i32
    return %c0_i32, %c0_i32_0 : i32, i32
  }
  func.func @transform_29(%arg0: i32, %arg1: memref<8xi32, #tpu.memory_space<smem>>) -> (i32, i32) {
    %c0_i32 = arith.constant 0 : i32
    %c0_i32_0 = arith.constant 0 : i32
    %c0_i32_1 = arith.constant 0 : i32
    return %c0_i32, %c0_i32_0 : i32, i32
  }
  func.func @transform_30(%arg0: i32, %arg1: memref<8xi32, #tpu.memory_space<smem>>) -> (i32, i32) {
    %c0_i32 = arith.constant 0 : i32
    %c0_i32_0 = arith.constant 0 : i32
    %c0_i32_1 = arith.constant 0 : i32
    return %c0_i32, %c0_i32_0 : i32, i32
  }
  func.func @transform_31(%arg0: i32, %arg1: memref<8xi32, #tpu.memory_space<smem>>) -> (i32, i32) {
    %c0_i32 = arith.constant 0 : i32
    %c0_i32_0 = arith.constant 0 : i32
    %c0_i32_1 = arith.constant 0 : i32
    return %c0_i32, %c0_i32_0 : i32, i32
  }
  func.func @transform_32(%arg0: i32, %arg1: memref<8xi32, #tpu.memory_space<smem>>) -> (i32, i32) {
    %c0_i32 = arith.constant 0 : i32
    %c0_i32_0 = arith.constant 0 : i32
    %c0_i32_1 = arith.constant 0 : i32
    return %c0_i32, %c0_i32_0 : i32, i32
  }
  func.func @transform_33(%arg0: i32, %arg1: memref<8xi32, #tpu.memory_space<smem>>) -> (i32, i32) {
    %c0_i32 = arith.constant 0 : i32
    %c0_i32_0 = arith.constant 0 : i32
    %c0_i32_1 = arith.constant 0 : i32
    return %c0_i32, %c0_i32_0 : i32, i32
  }
  func.func @transform_34(%arg0: i32, %arg1: memref<8xi32, #tpu.memory_space<smem>>) -> (i32, i32) {
    %c0_i32 = arith.constant 0 : i32
    %c0_i32_0 = arith.constant 0 : i32
    %c0_i32_1 = arith.constant 0 : i32
    return %c0_i32, %c0_i32_0 : i32, i32
  }
  func.func @transform_35(%arg0: i32, %arg1: memref<8xi32, #tpu.memory_space<smem>>) -> (i32, i32) {
    %c0_i32 = arith.constant 0 : i32
    %c0_i32_0 = arith.constant 0 : i32
    return %arg0, %c0_i32 : i32, i32
  }
  func.func @transform_36(%arg0: i32, %arg1: memref<8xi32, #tpu.memory_space<smem>>) -> (i32, i32) {
    %c0_i32 = arith.constant 0 : i32
    %c0_i32_0 = arith.constant 0 : i32
    return %arg0, %c0_i32 : i32, i32
  }
}

</mosaic_0001>

<llo_original>
// kernel: tpu_custom_call.1
$region0: #{tpu_custom_call.1}
  #allocation0 [shape = 'u32[]', space=smem, size = 0x4, offset = 0x4, fixed_abs, tag = 'smem constant byte address 0x4 - core index']
  #allocation1 [shape = 'u32[144,128]{1,0:T(1,128)}', space=vmem, size = 0x12000, scoped, tag = 'internal scratch']
  #allocation2 [shape = 'f32[10,32]{1,0:T(8,128)}', space=vmem, size = 0x2000, scoped, tag = 'scratch operand']
  #allocation3 [shape = 'f32[10,32]{1,0:T(8,128)}', space=vmem, size = 0x2000, scoped, tag = 'scratch operand']
  #allocation4 [shape = 'f32[10,32]{1,0:T(8,128)}', space=vmem, size = 0x2000, scoped, tag = 'scratch operand']
  #allocation5 [shape = 'f32[10,32]{1,0:T(8,128)}', space=vmem, size = 0x2000, scoped, tag = 'scratch operand']
  #allocation6 [shape = 'f32[10,32]{1,0:T(8,128)}', space=vmem, size = 0x2000, scoped, tag = 'scratch operand']
  #allocation7 [shape = 's32[8]{0}', space=sflag, size = 0x20, scoped, tag = 'scratch operand']
  #allocation8 [shape = 's32[1]{0}', space=sflag, size = 0x4, scoped, tag = 'scoped memory for tpu_custom_call.1']
  #allocation9 [shape = 'u8[512]{0}', space=smem, size = 0x200, scoped, tag = 'prefetched SMEM operand 0']
  #allocation52 [shape = 's32[]', space=sflag, size = 0x4, offset = 0, fixed_abs, tag = 'sflag constant byte address 0x0 - dummy sync flag']
  #allocation53 [shape = 's32[]', space=sflag, size = 0x4, offset = 0, fixed_abs, tag = 'sflag constant byte address 0x0 - dummy sync flag']
  #allocation54 [shape = 'u32[]', space=smem, size = 0x4, offset = 0x44, fixed_abs, tag = 'smem constant byte address 0x44 - assertion arg 0']
  #allocation55 [shape = 'u32[]', space=smem, size = 0x4, offset = 0x48, fixed_abs, tag = 'smem constant byte address 0x48 - assertion arg 1']
  #allocation56 [shape = 's32[]', space=sflag, size = 0x4, offset = 0, fixed_abs, tag = 'sflag constant byte address 0x0 - dummy sync flag']
  #allocation57 [shape = 's32[]', space=sflag, size = 0x4, offset = 0, fixed_abs, tag = 'sflag constant byte address 0x0 - dummy sync flag']
  #allocation58 [shape = 's32[]', space=sflag, size = 0x4, offset = 0, fixed_abs, tag = 'sflag constant byte address 0x0 - dummy sync flag']
  #allocation59 [shape = 's32[]', space=sflag, size = 0x4, offset = 0, fixed_abs, tag = 'sflag constant byte address 0x0 - dummy sync flag']
  #allocation60 [shape = 's32[]', space=sflag, size = 0x4, offset = 0, fixed_abs, tag = 'sflag constant byte address 0x0 - dummy sync flag']
  #allocation61 [shape = 's32[]', space=sflag, size = 0x4, offset = 0, fixed_abs, tag = 'sflag constant byte address 0x0 - dummy sync flag']
  #allocation62 [shape = 's32[]', space=sflag, size = 0x4, offset = 0, fixed_abs, tag = 'sflag constant byte address 0x0 - dummy sync flag']
  #allocation63 [shape = 's32[]', space=sflag, size = 0x4, offset = 0, fixed_abs, tag = 'sflag constant byte address 0x0 - dummy sync flag']
  #allocation64 [shape = 's32[]', space=sflag, size = 0x4, offset = 0, fixed_abs, tag = 'sflag constant byte address 0x0 - dummy sync flag']
  #allocation65 [shape = 's32[]', space=sflag, size = 0x4, offset = 0, fixed_abs, tag = 'sflag constant byte address 0x0 - dummy sync flag']
  #allocation66 [shape = 's32[]', space=sflag, size = 0x4, offset = 0, fixed_abs, tag = 'sflag constant byte address 0x0 - dummy sync flag']
  #allocation67 [shape = 's32[]', space=sflag, size = 0x4, offset = 0, fixed_abs, tag = 'sflag constant byte address 0x0 - dummy sync flag']
  #allocation68 [shape = 's32[]', space=sflag, size = 0x4, offset = 0, fixed_abs, tag = 'sflag constant byte address 0x0 - dummy sync flag']
  #allocation69 [shape = 's32[]', space=sflag, size = 0x4, offset = 0, fixed_abs, tag = 'sflag constant byte address 0x0 - dummy sync flag']
  %s0 = inlined_call_operand.smem [shape: u32[38], index: -1, kind: input, shape index: {}]
  %s1 = sld [smem:[%s0]]
  %s2 = scalar_lea.smem %s0, 1
  %s3 = sld [smem:[%s2]]
  %s4 = scalar_lea.smem %s0, 2
  %s5 = sld [smem:[%s4]]
  %s6 = scalar_lea.smem %s0, 3
  %s7 = sld [smem:[%s6]]
  %s8 = scalar_lea.smem %s0, 4
  %s9 = sld [smem:[%s8]]
  %s10 = scalar_lea.smem %s0, 5
  %s11 = sld [smem:[%s10]]
  %s12 = scalar_lea.smem %s0, 6
  %s13 = sld [smem:[%s12]]
  %s14 = scalar_lea.smem %s0, 7
  %s15 = sld [smem:[%s14]]
  %s16 = scalar_lea.smem %s0, 8
  %s17 = sld [smem:[%s16]]
  %s18 = scalar_lea.smem %s0, 9
  %s19 = sld [smem:[%s18]]
  %s20 = scalar_lea.smem %s0, 10
  %s21 = sld [smem:[%s20]]
  %s22 = scalar_lea.smem %s0, 11
  %s23 = sld [smem:[%s22]]
  %s24 = scalar_lea.smem %s0, 12
  %s25 = sld [smem:[%s24]]
  %s26 = scalar_lea.smem %s0, 13
  %s27 = sld [smem:[%s26]]
  %s28 = scalar_lea.smem %s0, 14
  %s29 = sld [smem:[%s28]]
  %s30 = scalar_lea.smem %s0, 15
  %s31 = sld [smem:[%s30]]
  %s32 = scalar_lea.smem %s0, 16
  %s33 = sld [smem:[%s32]]
  %s34 = scalar_lea.smem %s0, 17
  %s35 = sld [smem:[%s34]]
  %s36 = scalar_lea.smem %s0, 18
  %s37 = sld [smem:[%s36]]
  %s38 = scalar_lea.smem %s0, 19
  %s39 = sld [smem:[%s38]]
  %s40 = scalar_lea.smem %s0, 20
  %s41 = sld [smem:[%s40]]
  %s42 = scalar_lea.smem %s0, 21
  %s43 = sld [smem:[%s42]]
  %s44 = scalar_lea.smem %s0, 22
  %s45 = sld [smem:[%s44]]
  %s46 = scalar_lea.smem %s0, 23
  %s47 = sld [smem:[%s46]]
  %s48 = scalar_lea.smem %s0, 24
  %s49 = sld [smem:[%s48]]
  %s50 = scalar_lea.smem %s0, 25
  %s51 = sld [smem:[%s50]]
  %s52 = scalar_lea.smem %s0, 26
  %s53 = sld [smem:[%s52]]
  %s54 = scalar_lea.smem %s0, 27
  %s55 = sld [smem:[%s54]]
  %s56 = scalar_lea.smem %s0, 28
  %s57 = sld [smem:[%s56]]
  %s58 = scalar_lea.smem %s0, 29
  %s59 = sld [smem:[%s58]]
  %s60 = scalar_lea.smem %s0, 30
  %s61 = sld [smem:[%s60]]
  %s62 = scalar_lea.smem %s0, 31
  %s63 = sld [smem:[%s62]]
  %s64 = scalar_lea.smem %s0, 32
  %s65 = sld [smem:[%s64]]
  %s66 = scalar_lea.smem %s0, 33
  %s67 = sld [smem:[%s66]]
  %s68 = scalar_lea.smem %s0, 34
  %s69 = sld [smem:[%s68]]
  %s70 = scalar_lea.smem %s0, 35
  %s71 = sld [smem:[%s70]]
  %s72 = scalar_lea.smem %s0, 36
  %s73 = sld [smem:[%s72]]
  %s74 = scalar_lea.smem %s0, 37
  %s75 = sld [smem:[%s74]]
  %76 = xla_tuple %s73, %s75
  %s77 = sld [smem:[#allocation0]]
  $region286: #{tpu_custom_call.1} parent=0
    _
  %s79 = ssub.s32 1, %s77
  %s80 = scalar_select 0, %s79, %s77
  %82 = dma.hbm_to_smem %s1, 16, [#allocation9], [#allocation8]
  %83 = dma.done [#allocation8], 16
  %84 = sfence
  $region1: #{tpu_custom_call.1} parent=0
    #allocation10 [shape = 'u8[1024]{0}', space=vmem, size = 0x400, scoped, tag = 'input window, operand 1, single buffered']
    #allocation11 [shape = 's32[1]{0}', space=sflag, size = 0x4, scoped, tag = 'scoped memory for tpu_custom_call.1']
    #allocation12 [shape = 's32[1]{0}', space=sflag, size = 0x4, scoped, tag = 'scoped memory for tpu_custom_call.1']
    #allocation13 [shape = 'u8[2048]{0}', space=vmem, size = 0x800, scoped, tag = 'input window, operand 3, single buffered']
    #allocation14 [shape = 's32[1]{0}', space=sflag, size = 0x4, scoped, tag = 'scoped memory for tpu_custom_call.1']
    #allocation15 [shape = 'u8[2048]{0}', space=vmem, size = 0x800, scoped, tag = 'input window, operand 4, single buffered']
    #allocation16 [shape = 'u8[512]{0}', space=vmem, size = 0x400, scoped, tag = 'input window, operand 5, single buffered']
    #allocation17 [shape = 's32[1]{0}', space=sflag, size = 0x4, scoped, tag = 'scoped memory for tpu_custom_call.1']
    #allocation18 [shape = 'u8[8192]{0}', space=vmem, size = 0x2000, scoped, tag = 'input window, operand 6, single buffered']
    #allocation19 [shape = 'u8[512]{0}', space=vmem, size = 0x400, scoped, tag = 'input window, operand 7, single buffered']
    #allocation20 [shape = 's32[1]{0}', space=sflag, size = 0x4, scoped, tag = 'scoped memory for tpu_custom_call.1']
    #allocation21 [shape = 'u8[8192]{0}', space=vmem, size = 0x2000, scoped, tag = 'input window, operand 8, single buffered']
    #allocation22 [shape = 'u8[512]{0}', space=vmem, size = 0x400, scoped, tag = 'input window, operand 9, single buffered']
    #allocation23 [shape = 's32[1]{0}', space=sflag, size = 0x4, scoped, tag = 'scoped memory for tpu_custom_call.1']
    #allocation24 [shape = 'u8[8192]{0}', space=vmem, size = 0x2000, scoped, tag = 'input window, operand 11, single buffered']
    #allocation25 [shape = 'u8[8192]{0}', space=vmem, size = 0x2000, scoped, tag = 'input window, operand 12, single buffered']
    #allocation26 [shape = 's32[1]{0}', space=sflag, size = 0x4, scoped, tag = 'scoped memory for tpu_custom_call.1']
    #allocation27 [shape = 'u8[8192]{0}', space=vmem, size = 0x2000, scoped, tag = 'input window, operand 13, single buffered']
    #allocation28 [shape = 'u8[8192]{0}', space=vmem, size = 0x2000, scoped, tag = 'input window, operand 14, single buffered']
    #allocation29 [shape = 's32[1]{0}', space=sflag, size = 0x4, scoped, tag = 'scoped memory for tpu_custom_call.1']
    #allocation30 [shape = 'u8[8192]{0}', space=vmem, size = 0x2000, scoped, tag = 'input window, operand 15, single buffered']
    #allocation31 [shape = 'u8[512]{0}', space=vmem, size = 0x400, scoped, tag = 'input window, operand 16, single buffered']
    #allocation32 [shape = 's32[1]{0}', space=sflag, size = 0x4, scoped, tag = 'scoped memory for tpu_custom_call.1']
    #allocation33 [shape = 'u8[512]{0}', space=vmem, size = 0x400, scoped, tag = 'input window, operand 17, single buffered']
    #allocation34 [shape = 'u8[512]{0}', space=vmem, size = 0x400, scoped, tag = 'input window, operand 18, single buffered']
    #allocation35 [shape = 's32[1]{0}', space=sflag, size = 0x4, scoped, tag = 'scoped memory for tpu_custom_call.1']
    #allocation36 [shape = 'u8[8192]{0}', space=vmem, size = 0x2000, scoped, tag = 'input window, operand 21, single buffered']
    #allocation37 [shape = 'u8[8192]{0}', space=vmem, size = 0x2000, scoped, tag = 'input window, operand 22, single buffered']
    #allocation38 [shape = 's32[1]{0}', space=sflag, size = 0x4, scoped, tag = 'scoped memory for tpu_custom_call.1']
    #allocation39 [shape = 'u8[8192]{0}', space=vmem, size = 0x2000, scoped, tag = 'input window, operand 23, single buffered']
    #allocation40 [shape = 'u8[8192]{0}', space=vmem, size = 0x2000, scoped, tag = 'input window, operand 24, single buffered']
    #allocation41 [shape = 's32[1]{0}', space=sflag, size = 0x4, scoped, tag = 'scoped memory for tpu_custom_call.1']
    #allocation42 [shape = 'u8[8192]{0}', space=vmem, size = 0x2000, scoped, tag = 'input window, operand 25, single buffered']
    #allocation43 [shape = 'u8[512]{0}', space=vmem, size = 0x400, scoped, tag = 'input window, operand 26, single buffered']
    #allocation44 [shape = 's32[1]{0}', space=sflag, size = 0x4, scoped, tag = 'scoped memory for tpu_custom_call.1']
    #allocation45 [shape = 'u8[512]{0}', space=vmem, size = 0x400, scoped, tag = 'input window, operand 27, single buffered']
    #allocation46 [shape = 'u8[8192]{0}', space=vmem, size = 0x2000, scoped, tag = 'input window, operand 32, single buffered']
    #allocation47 [shape = 's32[1]{0}', space=sflag, size = 0x4, scoped, tag = 'scoped memory for tpu_custom_call.1']
    #allocation48 [shape = 'u8[8192]{0}', space=vmem, size = 0x2000, scoped, tag = 'input window, operand 34, single buffered']
    #allocation49 [shape = 'u8[1024]{0}', space=vmem, size = 0x400, scoped, tag = 'output window, operand 0, single buffered']
    #allocation50 [shape = 'u8[1024]{0}', space=vmem, size = 0x400, scoped, tag = 'output window, operand 1, single buffered']
    #allocation51 [shape = 's32[1]{0}', space=sflag, size = 0x4, scoped, tag = 'scoped memory for tpu_custom_call.1']
    %85 = vsyncpa [#allocation11], 0
    %86 = vsyncpa [#allocation14], 0
    %87 = vsyncpa [#allocation17], 0
    %88 = vsyncpa [#allocation20], 0
    %89 = vsyncpa [#allocation23], 0
    %90 = vsyncpa [#allocation26], 0
    %91 = vsyncpa [#allocation29], 0
    %92 = vsyncpa [#allocation32], 0
    %93 = vsyncpa [#allocation35], 0
    %94 = vsyncpa [#allocation38], 0
    %95 = vsyncpa [#allocation41], 0
    %96 = vsyncpa [#allocation44], 0
    %97 = vsyncpa [#allocation47], 0
    %98 = vsyncpa [#allocation12], 0
    %99 = vsyncpa [#allocation51], 0
    // Predicated region
    $region2: #{tpu_custom_call.1} parent=1 // pred_check
      _
    $region3: #{tpu_custom_call.1} parent=1 // pred_check_branch
      %101 = sbr.rel (0) target = $region5
    $region4: #{tpu_custom_call.1} parent=1 // pred_region
      %s103 = ssub.s32 32, 32
      %104 = vsyncadd [#allocation11], %s103
      %s106 = sshll.u32 [#allocation10], 4
      %s107 = int_to_ptr.vmem [resolvable:$true] %s106
      %109 = dma.hbm_to_vmem [thread:$0]  %s3, 32, %s107, [#allocation11]
    $region5: #{tpu_custom_call.1} parent=1 // pred_fallthru
      _
    // Predicated region
    $region6: #{tpu_custom_call.1} parent=1 // pred_check
      _
    $region7: #{tpu_custom_call.1} parent=1 // pred_check_branch
      %111 = sbr.rel (0) target = $region9
    $region8: #{tpu_custom_call.1} parent=1 // pred_region
      %s113 = ssub.s32 64, 64
      %114 = vsyncadd [#allocation14], %s113
      %s116 = sshll.u32 [#allocation13], 4
      %s117 = int_to_ptr.vmem [resolvable:$true] %s116
      %119 = dma.hbm_to_vmem [thread:$0]  %s7, 64, %s117, [#allocation14]
    $region9: #{tpu_custom_call.1} parent=1 // pred_fallthru
      _
    // Predicated region
    $region10: #{tpu_custom_call.1} parent=1 // pred_check
      _
    $region11: #{tpu_custom_call.1} parent=1 // pred_check_branch
      %121 = sbr.rel (0) target = $region13
    $region12: #{tpu_custom_call.1} parent=1 // pred_region
      %s123 = ssub.s32 64, 64
      %124 = vsyncadd [#allocation14], %s123
      %s126 = sshll.u32 [#allocation15], 4
      %s127 = int_to_ptr.vmem [resolvable:$true] %s126
      %129 = dma.hbm_to_vmem [thread:$0]  %s9, 64, %s127, [#allocation14]
    $region13: #{tpu_custom_call.1} parent=1 // pred_fallthru
      _
    // Predicated region
    $region14: #{tpu_custom_call.1} parent=1 // pred_check
      _
    $region15: #{tpu_custom_call.1} parent=1 // pred_check_branch
      %131 = sbr.rel (0) target = $region17
    $region16: #{tpu_custom_call.1} parent=1 // pred_region
      %s133 = ssub.s32 16, 16
      %134 = vsyncadd [#allocation17], %s133
      %s136 = sshll.u32 [#allocation16], 4
      %s137 = int_to_ptr.vmem [resolvable:$true] %s136
      %139 = dma.hbm_to_vmem [thread:$0]  %s11, 16, %s137, [#allocation17]
    $region17: #{tpu_custom_call.1} parent=1 // pred_fallthru
      _
    // Predicated region
    $region18: #{tpu_custom_call.1} parent=1 // pred_check
      _
    $region19: #{tpu_custom_call.1} parent=1 // pred_check_branch
      %141 = sbr.rel (0) target = $region21
    $region20: #{tpu_custom_call.1} parent=1 // pred_region
      %s143 = ssub.s32 256, 256
      %144 = vsyncadd [#allocation17], %s143
      %s145 = sshll.u32 [#allocation18], 4
      %s146 = int_to_ptr.vmem [resolvable:$true] %s145
      %151 = dma.hbm_to_vmem [thread:$0]  %s13, 256, %s146, [#allocation17], 64, 64, 4
    $region21: #{tpu_custom_call.1} parent=1 // pred_fallthru
      _
    // Predicated region
    $region22: #{tpu_custom_call.1} parent=1 // pred_check
      _
    $region23: #{tpu_custom_call.1} parent=1 // pred_check_branch
      %153 = sbr.rel (0) target = $region25
    $region24: #{tpu_custom_call.1} parent=1 // pred_region
      %s155 = ssub.s32 16, 16
      %156 = vsyncadd [#allocation20], %s155
      %s158 = sshll.u32 [#allocation19], 4
      %s159 = int_to_ptr.vmem [resolvable:$true] %s158
      %161 = dma.hbm_to_vmem [thread:$0]  %s15, 16, %s159, [#allocation20]
    $region25: #{tpu_custom_call.1} parent=1 // pred_fallthru
      _
    // Predicated region
    $region26: #{tpu_custom_call.1} parent=1 // pred_check
      _
    $region27: #{tpu_custom_call.1} parent=1 // pred_check_branch
      %163 = sbr.rel (0) target = $region29
    $region28: #{tpu_custom_call.1} parent=1 // pred_region
      %s165 = ssub.s32 256, 256
      %166 = vsyncadd [#allocation20], %s165
      %s167 = sshll.u32 [#allocation21], 4
      %s168 = int_to_ptr.vmem [resolvable:$true] %s167
      %173 = dma.hbm_to_vmem [thread:$0]  %s17, 256, %s168, [#allocation20], 64, 64, 4
    $region29: #{tpu_custom_call.1} parent=1 // pred_fallthru
      _
    // Predicated region
    $region30: #{tpu_custom_call.1} parent=1 // pred_check
      _
    $region31: #{tpu_custom_call.1} parent=1 // pred_check_branch
      %175 = sbr.rel (0) target = $region33
    $region32: #{tpu_custom_call.1} parent=1 // pred_region
      %s177 = ssub.s32 16, 16
      %178 = vsyncadd [#allocation23], %s177
      %s180 = sshll.u32 [#allocation22], 4
      %s181 = int_to_ptr.vmem [resolvable:$true] %s180
      %183 = dma.hbm_to_vmem [thread:$0]  %s19, 16, %s181, [#allocation23]
    $region33: #{tpu_custom_call.1} parent=1 // pred_fallthru
      _
    // Predicated region
    $region34: #{tpu_custom_call.1} parent=1 // pred_check
      _
    $region35: #{tpu_custom_call.1} parent=1 // pred_check_branch
      %185 = sbr.rel (0) target = $region37
    $region36: #{tpu_custom_call.1} parent=1 // pred_region
      _
    $region37: #{tpu_custom_call.1} parent=1 // pred_fallthru
      _
    // Predicated region
    $region38: #{tpu_custom_call.1} parent=1 // pred_check
      _
    $region39: #{tpu_custom_call.1} parent=1 // pred_check_branch
      %187 = sbr.rel (0) target = $region41
    $region40: #{tpu_custom_call.1} parent=1 // pred_region
      %s189 = ssub.s32 256, 256
      %190 = vsyncadd [#allocation23], %s189
      %s191 = sshll.u32 [#allocation24], 4
      %s192 = int_to_ptr.vmem [resolvable:$true] %s191
      %197 = dma.hbm_to_vmem [thread:$0]  %s23, 256, %s192, [#allocation23], 64, 64, 4
    $region41: #{tpu_custom_call.1} parent=1 // pred_fallthru
      _
    // Predicated region
    $region42: #{tpu_custom_call.1} parent=1 // pred_check
      _
    $region43: #{tpu_custom_call.1} parent=1 // pred_check_branch
      %199 = sbr.rel (0) target = $region45
    $region44: #{tpu_custom_call.1} parent=1 // pred_region
      %s201 = ssub.s32 256, 256
      %202 = vsyncadd [#allocation26], %s201
      %s203 = sshll.u32 [#allocation25], 4
      %s204 = int_to_ptr.vmem [resolvable:$true] %s203
      %209 = dma.hbm_to_vmem [thread:$0]  %s25, 256, %s204, [#allocation26], 64, 64, 4
    $region45: #{tpu_custom_call.1} parent=1 // pred_fallthru
      _
    // Predicated region
    $region46: #{tpu_custom_call.1} parent=1 // pred_check
      _
    $region47: #{tpu_custom_call.1} parent=1 // pred_check_branch
      %211 = sbr.rel (0) target = $region49
    $region48: #{tpu_custom_call.1} parent=1 // pred_region
      %s213 = ssub.s32 256, 256
      %214 = vsyncadd [#allocation26], %s213
      %s215 = sshll.u32 [#allocation27], 4
      %s216 = int_to_ptr.vmem [resolvable:$true] %s215
      %221 = dma.hbm_to_vmem [thread:$0]  %s27, 256, %s216, [#allocation26], 64, 64, 4
    $region49: #{tpu_custom_call.1} parent=1 // pred_fallthru
      _
    // Predicated region
    $region50: #{tpu_custom_call.1} parent=1 // pred_check
      _
    $region51: #{tpu_custom_call.1} parent=1 // pred_check_branch
      %223 = sbr.rel (0) target = $region53
    $region52: #{tpu_custom_call.1} parent=1 // pred_region
      %s225 = ssub.s32 256, 256
      %226 = vsyncadd [#allocation29], %s225
      %s227 = sshll.u32 [#allocation28], 4
      %s228 = int_to_ptr.vmem [resolvable:$true] %s227
      %233 = dma.hbm_to_vmem [thread:$0]  %s29, 256, %s228, [#allocation29], 64, 64, 4
    $region53: #{tpu_custom_call.1} parent=1 // pred_fallthru
      _
    // Predicated region
    $region54: #{tpu_custom_call.1} parent=1 // pred_check
      _
    $region55: #{tpu_custom_call.1} parent=1 // pred_check_branch
      %235 = sbr.rel (0) target = $region57
    $region56: #{tpu_custom_call.1} parent=1 // pred_region
      %s237 = ssub.s32 256, 256
      %238 = vsyncadd [#allocation29], %s237
      %s239 = sshll.u32 [#allocation30], 4
      %s240 = int_to_ptr.vmem [resolvable:$true] %s239
      %245 = dma.hbm_to_vmem [thread:$0]  %s31, 256, %s240, [#allocation29], 64, 64, 4
    $region57: #{tpu_custom_call.1} parent=1 // pred_fallthru
      _
    // Predicated region
    $region58: #{tpu_custom_call.1} parent=1 // pred_check
      _
    $region59: #{tpu_custom_call.1} parent=1 // pred_check_branch
      %247 = sbr.rel (0) target = $region61
    $region60: #{tpu_custom_call.1} parent=1 // pred_region
      %s249 = ssub.s32 16, 16
      %250 = vsyncadd [#allocation32], %s249
      %s252 = sshll.u32 [#allocation31], 4
      %s253 = int_to_ptr.vmem [resolvable:$true] %s252
      %255 = dma.hbm_to_vmem [thread:$0]  %s33, 16, %s253, [#allocation32]
    $region61: #{tpu_custom_call.1} parent=1 // pred_fallthru
      _
    // Predicated region
    $region62: #{tpu_custom_call.1} parent=1 // pred_check
      _
    $region63: #{tpu_custom_call.1} parent=1 // pred_check_branch
      %257 = sbr.rel (0) target = $region65
    $region64: #{tpu_custom_call.1} parent=1 // pred_region
      %s259 = ssub.s32 16, 16
      %260 = vsyncadd [#allocation32], %s259
      %s262 = sshll.u32 [#allocation33], 4
      %s263 = int_to_ptr.vmem [resolvable:$true] %s262
      %265 = dma.hbm_to_vmem [thread:$0]  %s35, 16, %s263, [#allocation32]
    $region65: #{tpu_custom_call.1} parent=1 // pred_fallthru
      _
    // Predicated region
    $region66: #{tpu_custom_call.1} parent=1 // pred_check
      _
    $region67: #{tpu_custom_call.1} parent=1 // pred_check_branch
      %267 = sbr.rel (0) target = $region69
    $region68: #{tpu_custom_call.1} parent=1 // pred_region
      %s269 = ssub.s32 16, 16
      %270 = vsyncadd [#allocation35], %s269
      %s272 = sshll.u32 [#allocation34], 4
      %s273 = int_to_ptr.vmem [resolvable:$true] %s272
      %275 = dma.hbm_to_vmem [thread:$0]  %s37, 16, %s273, [#allocation35]
    $region69: #{tpu_custom_call.1} parent=1 // pred_fallthru
      _
    // Predicated region
    $region70: #{tpu_custom_call.1} parent=1 // pred_check
      _
    $region71: #{tpu_custom_call.1} parent=1 // pred_check_branch
      %277 = sbr.rel (0) target = $region73
    $region72: #{tpu_custom_call.1} parent=1 // pred_region
      _
    $region73: #{tpu_custom_call.1} parent=1 // pred_fallthru
      _
    // Predicated region
    $region74: #{tpu_custom_call.1} parent=1 // pred_check
      _
    $region75: #{tpu_custom_call.1} parent=1 // pred_check_branch
      %279 = sbr.rel (0) target = $region77
    $region76: #{tpu_custom_call.1} parent=1 // pred_region
      _
    $region77: #{tpu_custom_call.1} parent=1 // pred_fallthru
      _
    // Predicated region
    $region78: #{tpu_custom_call.1} parent=1 // pred_check
      _
    $region79: #{tpu_custom_call.1} parent=1 // pred_check_branch
      %281 = sbr.rel (0) target = $region81
    $region80: #{tpu_custom_call.1} parent=1 // pred_region
      %s283 = ssub.s32 256, 256
      %284 = vsyncadd [#allocation35], %s283
      %s285 = sshll.u32 [#allocation36], 4
      %s286 = int_to_ptr.vmem [resolvable:$true] %s285
      %291 = dma.hbm_to_vmem [thread:$0]  %s43, 256, %s286, [#allocation35], 64, 64, 4
    $region81: #{tpu_custom_call.1} parent=1 // pred_fallthru
      _
    // Predicated region
    $region82: #{tpu_custom_call.1} parent=1 // pred_check
      _
    $region83: #{tpu_custom_call.1} parent=1 // pred_check_branch
      %293 = sbr.rel (0) target = $region85
    $region84: #{tpu_custom_call.1} parent=1 // pred_region
      %s295 = ssub.s32 256, 256
      %296 = vsyncadd [#allocation38], %s295
      %s297 = sshll.u32 [#allocation37], 4
      %s298 = int_to_ptr.vmem [resolvable:$true] %s297
      %303 = dma.hbm_to_vmem [thread:$0]  %s45, 256, %s298, [#allocation38], 64, 64, 4
    $region85: #{tpu_custom_call.1} parent=1 // pred_fallthru
      _
    // Predicated region
    $region86: #{tpu_custom_call.1} parent=1 // pred_check
      _
    $region87: #{tpu_custom_call.1} parent=1 // pred_check_branch
      %305 = sbr.rel (0) target = $region89
    $region88: #{tpu_custom_call.1} parent=1 // pred_region
      %s307 = ssub.s32 256, 256
      %308 = vsyncadd [#allocation38], %s307
      %s309 = sshll.u32 [#allocation39], 4
      %s310 = int_to_ptr.vmem [resolvable:$true] %s309
      %315 = dma.hbm_to_vmem [thread:$0]  %s47, 256, %s310, [#allocation38], 64, 64, 4
    $region89: #{tpu_custom_call.1} parent=1 // pred_fallthru
      _
    // Predicated region
    $region90: #{tpu_custom_call.1} parent=1 // pred_check
      _
    $region91: #{tpu_custom_call.1} parent=1 // pred_check_branch
      %317 = sbr.rel (0) target = $region93
    $region92: #{tpu_custom_call.1} parent=1 // pred_region
      %s319 = ssub.s32 256, 256
      %320 = vsyncadd [#allocation41], %s319
      %s321 = sshll.u32 [#allocation40], 4
      %s322 = int_to_ptr.vmem [resolvable:$true] %s321
      %327 = dma.hbm_to_vmem [thread:$0]  %s49, 256, %s322, [#allocation41], 64, 64, 4
    $region93: #{tpu_custom_call.1} parent=1 // pred_fallthru
      _
    // Predicated region
    $region94: #{tpu_custom_call.1} parent=1 // pred_check
      _
    $region95: #{tpu_custom_call.1} parent=1 // pred_check_branch
      %329 = sbr.rel (0) target = $region97
    $region96: #{tpu_custom_call.1} parent=1 // pred_region
      %s331 = ssub.s32 256, 256
      %332 = vsyncadd [#allocation41], %s331
      %s333 = sshll.u32 [#allocation42], 4
      %s334 = int_to_ptr.vmem [resolvable:$true] %s333
      %339 = dma.hbm_to_vmem [thread:$0]  %s51, 256, %s334, [#allocation41], 64, 64, 4
    $region97: #{tpu_custom_call.1} parent=1 // pred_fallthru
      _
    // Predicated region
    $region98: #{tpu_custom_call.1} parent=1 // pred_check
      _
    $region99: #{tpu_custom_call.1} parent=1 // pred_check_branch
      %341 = sbr.rel (0) target = $region101
    $region100: #{tpu_custom_call.1} parent=1 // pred_region
      %s343 = ssub.s32 16, 16
      %344 = vsyncadd [#allocation44], %s343
      %s346 = sshll.u32 [#allocation43], 4
      %s347 = int_to_ptr.vmem [resolvable:$true] %s346
      %349 = dma.hbm_to_vmem [thread:$0]  %s53, 16, %s347, [#allocation44]
    $region101: #{tpu_custom_call.1} parent=1 // pred_fallthru
      _
    // Predicated region
    $region102: #{tpu_custom_call.1} parent=1 // pred_check
      _
    $region103: #{tpu_custom_call.1} parent=1 // pred_check_branch
      %351 = sbr.rel (0) target = $region105
    $region104: #{tpu_custom_call.1} parent=1 // pred_region
      %s353 = ssub.s32 16, 16
      %354 = vsyncadd [#allocation44], %s353
      %s356 = sshll.u32 [#allocation45], 4
      %s357 = int_to_ptr.vmem [resolvable:$true] %s356
      %359 = dma.hbm_to_vmem [thread:$0]  %s55, 16, %s357, [#allocation44]
    $region105: #{tpu_custom_call.1} parent=1 // pred_fallthru
      _
    // Predicated region
    $region106: #{tpu_custom_call.1} parent=1 // pred_check
      _
    $region107: #{tpu_custom_call.1} parent=1 // pred_check_branch
      %361 = sbr.rel (0) target = $region109
    $region108: #{tpu_custom_call.1} parent=1 // pred_region
      _
    $region109: #{tpu_custom_call.1} parent=1 // pred_fallthru
      _
    // Predicated region
    $region110: #{tpu_custom_call.1} parent=1 // pred_check
      _
    $region111: #{tpu_custom_call.1} parent=1 // pred_check_branch
      %363 = sbr.rel (0) target = $region113
    $region112: #{tpu_custom_call.1} parent=1 // pred_region
      _
    $region113: #{tpu_custom_call.1} parent=1 // pred_fallthru
      _
    // Predicated region
    $region114: #{tpu_custom_call.1} parent=1 // pred_check
      _
    $region115: #{tpu_custom_call.1} parent=1 // pred_check_branch
      %365 = sbr.rel (0) target = $region117
    $region116: #{tpu_custom_call.1} parent=1 // pred_region
      _
    $region117: #{tpu_custom_call.1} parent=1 // pred_fallthru
      _
    // Predicated region
    $region118: #{tpu_custom_call.1} parent=1 // pred_check
      _
    $region119: #{tpu_custom_call.1} parent=1 // pred_check_branch
      %367 = sbr.rel (0) target = $region121
    $region120: #{tpu_custom_call.1} parent=1 // pred_region
      _
    $region121: #{tpu_custom_call.1} parent=1 // pred_fallthru
      _
    // Predicated region
    $region122: #{tpu_custom_call.1} parent=1 // pred_check
      _
    $region123: #{tpu_custom_call.1} parent=1 // pred_check_branch
      %369 = sbr.rel (0) target = $region125
    $region124: #{tpu_custom_call.1} parent=1 // pred_region
      %s371 = ssub.s32 256, 256
      %372 = vsyncadd [#allocation47], %s371
      %s373 = sshll.u32 [#allocation46], 4
      %s374 = int_to_ptr.vmem [resolvable:$true] %s373
      %379 = dma.hbm_to_vmem [thread:$0]  %s65, 256, %s374, [#allocation47], 64, 64, 4
    $region125: #{tpu_custom_call.1} parent=1 // pred_fallthru
      _
    // Predicated region
    $region126: #{tpu_custom_call.1} parent=1 // pred_check
      _
    $region127: #{tpu_custom_call.1} parent=1 // pred_check_branch
      %381 = sbr.rel (0) target = $region129
    $region128: #{tpu_custom_call.1} parent=1 // pred_region
      _
    $region129: #{tpu_custom_call.1} parent=1 // pred_fallthru
      _
    // Predicated region
    $region130: #{tpu_custom_call.1} parent=1 // pred_check
      _
    $region131: #{tpu_custom_call.1} parent=1 // pred_check_branch
      %383 = sbr.rel (0) target = $region133
    $region132: #{tpu_custom_call.1} parent=1 // pred_region
      %s385 = ssub.s32 256, 256
      %386 = vsyncadd [#allocation47], %s385
      %s387 = sshll.u32 [#allocation48], 4
      %s388 = int_to_ptr.vmem [resolvable:$true] %s387
      %393 = dma.hbm_to_vmem [thread:$0]  %s69, 256, %s388, [#allocation47], 64, 64, 4
    $region133: #{tpu_custom_call.1} parent=1 // pred_fallthru
      _
    // Predicated region
    $region134: #{tpu_custom_call.1} parent=1 // pred_check
      _
    $region135: #{tpu_custom_call.1} parent=1 // pred_check_branch
      %395 = sbr.rel (0) target = $region137
    $region136: #{tpu_custom_call.1} parent=1 // pred_region
      _
    $region137: #{tpu_custom_call.1} parent=1 // pred_fallthru
      _
    // Predicated region
    $region138: #{tpu_custom_call.1} parent=1 // pred_check
      _
    $region139: #{tpu_custom_call.1} parent=1 // pred_check_branch
      %397 = sbr.rel (0) target = $region141
    $region140: #{tpu_custom_call.1} parent=1 // pred_region
      %398 = dma.done [#allocation11], 32
    $region141: #{tpu_custom_call.1} parent=1 // pred_fallthru
      _
    // Predicated region
    $region142: #{tpu_custom_call.1} parent=1 // pred_check
      _
    $region143: #{tpu_custom_call.1} parent=1 // pred_check_branch
      %400 = sbr.rel (0) target = $region145
    $region144: #{tpu_custom_call.1} parent=1 // pred_region
      %401 = dma.done [#allocation14], 64
    $region145: #{tpu_custom_call.1} parent=1 // pred_fallthru
      _
    // Predicated region
    $region146: #{tpu_custom_call.1} parent=1 // pred_check
      _
    $region147: #{tpu_custom_call.1} parent=1 // pred_check_branch
      %403 = sbr.rel (0) target = $region149
    $region148: #{tpu_custom_call.1} parent=1 // pred_region
      %404 = dma.done [#allocation14], 64
    $region149: #{tpu_custom_call.1} parent=1 // pred_fallthru
      _
    // Predicated region
    $region150: #{tpu_custom_call.1} parent=1 // pred_check
      _
    $region151: #{tpu_custom_call.1} parent=1 // pred_check_branch
      %406 = sbr.rel (0) target = $region153
    $region152: #{tpu_custom_call.1} parent=1 // pred_region
      %407 = dma.done [#allocation17], 16
    $region153: #{tpu_custom_call.1} parent=1 // pred_fallthru
      _
    // Predicated region
    $region154: #{tpu_custom_call.1} parent=1 // pred_check
      _
    $region155: #{tpu_custom_call.1} parent=1 // pred_check_branch
      %409 = sbr.rel (0) target = $region157
    $region156: #{tpu_custom_call.1} parent=1 // pred_region
      %410 = dma.done [#allocation17], 256
    $region157: #{tpu_custom_call.1} parent=1 // pred_fallthru
      _
    // Predicated region
    $region158: #{tpu_custom_call.1} parent=1 // pred_check
      _
    $region159: #{tpu_custom_call.1} parent=1 // pred_check_branch
      %412 = sbr.rel (0) target = $region161
    $region160: #{tpu_custom_call.1} parent=1 // pred_region
      %413 = dma.done [#allocation20], 16
    $region161: #{tpu_custom_call.1} parent=1 // pred_fallthru
      _
    // Predicated region
    $region162: #{tpu_custom_call.1} parent=1 // pred_check
      _
    $region163: #{tpu_custom_call.1} parent=1 // pred_check_branch
      %415 = sbr.rel (0) target = $region165
    $region164: #{tpu_custom_call.1} parent=1 // pred_region
      %416 = dma.done [#allocation20], 256
    $region165: #{tpu_custom_call.1} parent=1 // pred_fallthru
      _
    // Predicated region
    $region166: #{tpu_custom_call.1} parent=1 // pred_check
      _
    $region167: #{tpu_custom_call.1} parent=1 // pred_check_branch
      %418 = sbr.rel (0) target = $region169
    $region168: #{tpu_custom_call.1} parent=1 // pred_region
      %419 = dma.done [#allocation23], 16
    $region169: #{tpu_custom_call.1} parent=1 // pred_fallthru
      _
    // Predicated region
    $region170: #{tpu_custom_call.1} parent=1 // pred_check
      _
    $region171: #{tpu_custom_call.1} parent=1 // pred_check_branch
      %421 = sbr.rel (0) target = $region173
    $region172: #{tpu_custom_call.1} parent=1 // pred_region
      %422 = dma.done [#allocation23], 256
    $region173: #{tpu_custom_call.1} parent=1 // pred_fallthru
      _
    // Predicated region
    $region174: #{tpu_custom_call.1} parent=1 // pred_check
      _
    $region175: #{tpu_custom_call.1} parent=1 // pred_check_branch
      %424 = sbr.rel (0) target = $region177
    $region176: #{tpu_custom_call.1} parent=1 // pred_region
      %425 = dma.done [#allocation26], 256
    $region177: #{tpu_custom_call.1} parent=1 // pred_fallthru
      _
    // Predicated region
    $region178: #{tpu_custom_call.1} parent=1 // pred_check
      _
    $region179: #{tpu_custom_call.1} parent=1 // pred_check_branch
      %427 = sbr.rel (0) target = $region181
    $region180: #{tpu_custom_call.1} parent=1 // pred_region
      %428 = dma.done [#allocation26], 256
    $region181: #{tpu_custom_call.1} parent=1 // pred_fallthru
      _
    // Predicated region
    $region182: #{tpu_custom_call.1} parent=1 // pred_check
      _
    $region183: #{tpu_custom_call.1} parent=1 // pred_check_branch
      %430 = sbr.rel (0) target = $region185
    $region184: #{tpu_custom_call.1} parent=1 // pred_region
      %431 = dma.done [#allocation29], 256
    $region185: #{tpu_custom_call.1} parent=1 // pred_fallthru
      _
    // Predicated region
    $region186: #{tpu_custom_call.1} parent=1 // pred_check
      _
    $region187: #{tpu_custom_call.1} parent=1 // pred_check_branch
      %433 = sbr.rel (0) target = $region189
    $region188: #{tpu_custom_call.1} parent=1 // pred_region
      %434 = dma.done [#allocation29], 256
    $region189: #{tpu_custom_call.1} parent=1 // pred_fallthru
      _
    // Predicated region
    $region190: #{tpu_custom_call.1} parent=1 // pred_check
      _
    $region191: #{tpu_custom_call.1} parent=1 // pred_check_branch
      %436 = sbr.rel (0) target = $region193
    $region192: #{tpu_custom_call.1} parent=1 // pred_region
      %437 = dma.done [#allocation32], 16
    $region193: #{tpu_custom_call.1} parent=1 // pred_fallthru
      _
    // Predicated region
    $region194: #{tpu_custom_call.1} parent=1 // pred_check
      _
    $region195: #{tpu_custom_call.1} parent=1 // pred_check_branch
      %439 = sbr.rel (0) target = $region197
    $region196: #{tpu_custom_call.1} parent=1 // pred_region
      %440 = dma.done [#allocation32], 16
    $region197: #{tpu_custom_call.1} parent=1 // pred_fallthru
      _
    // Predicated region
    $region198: #{tpu_custom_call.1} parent=1 // pred_check
      _
    $region199: #{tpu_custom_call.1} parent=1 // pred_check_branch
      %442 = sbr.rel (0) target = $region201
    $region200: #{tpu_custom_call.1} parent=1 // pred_region
      %443 = dma.done [#allocation35], 16
    $region201: #{tpu_custom_call.1} parent=1 // pred_fallthru
      _
    // Predicated region
    $region202: #{tpu_custom_call.1} parent=1 // pred_check
      _
    $region203: #{tpu_custom_call.1} parent=1 // pred_check_branch
      %445 = sbr.rel (0) target = $region205
    $region204: #{tpu_custom_call.1} parent=1 // pred_region
      %446 = dma.done [#allocation35], 256
    $region205: #{tpu_custom_call.1} parent=1 // pred_fallthru
      _
    // Predicated region
    $region206: #{tpu_custom_call.1} parent=1 // pred_check
      _
    $region207: #{tpu_custom_call.1} parent=1 // pred_check_branch
      %448 = sbr.rel (0) target = $region209
    $region208: #{tpu_custom_call.1} parent=1 // pred_region
      %449 = dma.done [#allocation38], 256
    $region209: #{tpu_custom_call.1} parent=1 // pred_fallthru
      _
    // Predicated region
    $region210: #{tpu_custom_call.1} parent=1 // pred_check
      _
    $region211: #{tpu_custom_call.1} parent=1 // pred_check_branch
      %451 = sbr.rel (0) target = $region213
    $region212: #{tpu_custom_call.1} parent=1 // pred_region
      %452 = dma.done [#allocation38], 256
    $region213: #{tpu_custom_call.1} parent=1 // pred_fallthru
      _
    // Predicated region
    $region214: #{tpu_custom_call.1} parent=1 // pred_check
      _
    $region215: #{tpu_custom_call.1} parent=1 // pred_check_branch
      %454 = sbr.rel (0) target = $region217
    $region216: #{tpu_custom_call.1} parent=1 // pred_region
      %455 = dma.done [#allocation41], 256
    $region217: #{tpu_custom_call.1} parent=1 // pred_fallthru
      _
    // Predicated region
    $region218: #{tpu_custom_call.1} parent=1 // pred_check
      _
    $region219: #{tpu_custom_call.1} parent=1 // pred_check_branch
      %457 = sbr.rel (0) target = $region221
    $region220: #{tpu_custom_call.1} parent=1 // pred_region
      %458 = dma.done [#allocation41], 256
    $region221: #{tpu_custom_call.1} parent=1 // pred_fallthru
      _
    // Predicated region
    $region222: #{tpu_custom_call.1} parent=1 // pred_check
      _
    $region223: #{tpu_custom_call.1} parent=1 // pred_check_branch
      %460 = sbr.rel (0) target = $region225
    $region224: #{tpu_custom_call.1} parent=1 // pred_region
      %461 = dma.done [#allocation44], 16
    $region225: #{tpu_custom_call.1} parent=1 // pred_fallthru
      _
    // Predicated region
    $region226: #{tpu_custom_call.1} parent=1 // pred_check
      _
    $region227: #{tpu_custom_call.1} parent=1 // pred_check_branch
      %463 = sbr.rel (0) target = $region229
    $region228: #{tpu_custom_call.1} parent=1 // pred_region
      %464 = dma.done [#allocation44], 16
    $region229: #{tpu_custom_call.1} parent=1 // pred_fallthru
      _
    // Predicated region
    $region230: #{tpu_custom_call.1} parent=1 // pred_check
      _
    $region231: #{tpu_custom_call.1} parent=1 // pred_check_branch
      %466 = sbr.rel (0) target = $region233
    $region232: #{tpu_custom_call.1} parent=1 // pred_region
      %467 = dma.done [#allocation47], 256
    $region233: #{tpu_custom_call.1} parent=1 // pred_fallthru
      _
    // Predicated region
    $region234: #{tpu_custom_call.1} parent=1 // pred_check
      _
    $region235: #{tpu_custom_call.1} parent=1 // pred_check_branch
      %469 = sbr.rel (0) target = $region237
    $region236: #{tpu_custom_call.1} parent=1 // pred_region
      %470 = dma.done [#allocation47], 256
    $region237: #{tpu_custom_call.1} parent=1 // pred_fallthru
      _
    %s472 = smul.u32 0, 2
    %s473 = sld [smem:[#allocation9 + %s472]]
    %s474 = smul.addr %s473, 16
    %s475 = scalar_lea.hbm %s5, %s474
    %s476 = scalar_lea.vmem [#allocation2], 2
    // Predicated region
    $region238: #{tpu_custom_call.1} parent=1 // pred_check
      _
    $region239: #{tpu_custom_call.1} parent=1 // pred_check_branch
      %478 = sbr.rel target = $region241
    $region240: #{tpu_custom_call.1} parent=1 // pred_region
      %479 = sst [smem:[#allocation54]] [#allocation53]
      %480 = sst [smem:[#allocation55]] [#allocation52]
    $region241: #{tpu_custom_call.1} parent=1 // pred_fallthru
      _
    %482 = shalt.err (0)
    %s484 = sshll.u32 %s476, 4
    %s485 = int_to_ptr.vmem [resolvable:$true] %s484
    %487 = dma.hbm_to_vmem [thread:$0]  %s475, 16, %s485, [#allocation7]
    %s488 = sadd.s32 %s472, 1
    %s489 = sld [smem:[#allocation9 + %s488]]
    %s490 = smul.addr %s489, 16
    %s491 = scalar_lea.hbm %s5, %s490
    %s492 = scalar_lea.vmem [#allocation2], 3
    %s493 = scalar_lea.sflag [#allocation7], 1
    // Predicated region
    $region242: #{tpu_custom_call.1} parent=1 // pred_check
      _
    $region243: #{tpu_custom_call.1} parent=1 // pred_check_branch
      %495 = sbr.rel target = $region245
    $region244: #{tpu_custom_call.1} parent=1 // pred_region
      %496 = sst [smem:[#allocation54]] [#allocation57]
      %497 = sst [smem:[#allocation55]] [#allocation56]
    $region245: #{tpu_custom_call.1} parent=1 // pred_fallthru
      _
    %499 = shalt.err (0)
    %s501 = sshll.u32 %s492, 4
    %s502 = int_to_ptr.vmem [resolvable:$true] %s501
    %504 = dma.hbm_to_vmem [thread:$0]  %s491, 16, %s502, %s493
    %s505 = sadd.s32 %s472, 2
    %s506 = sld [smem:[#allocation9 + %s505]]
    %s507 = smul.addr %s506, 16
    %s508 = scalar_lea.hbm %s5, %s507
    %s509 = scalar_lea.vmem [#allocation2], 4
    %s510 = scalar_lea.sflag [#allocation7], 2
    // Predicated region
    $region246: #{tpu_custom_call.1} parent=1 // pred_check
      _
    $region247: #{tpu_custom_call.1} parent=1 // pred_check_branch
      %512 = sbr.rel target = $region249
    $region248: #{tpu_custom_call.1} parent=1 // pred_region
      %513 = sst [smem:[#allocation54]] [#allocation59]
      %514 = sst [smem:[#allocation55]] [#allocation58]
    $region249: #{tpu_custom_call.1} parent=1 // pred_fallthru
      _
    %516 = shalt.err (0)
    %s518 = sshll.u32 %s509, 4
    %s519 = int_to_ptr.vmem [resolvable:$true] %s518
    %521 = dma.hbm_to_vmem [thread:$0]  %s508, 16, %s519, %s510
    %s522 = sadd.s32 %s472, 3
    %s523 = sld [smem:[#allocation9 + %s522]]
    %s524 = smul.addr %s523, 16
    %s525 = scalar_lea.hbm %s5, %s524
    %s526 = scalar_lea.vmem [#allocation2], 5
    %s527 = scalar_lea.sflag [#allocation7], 3
    // Predicated region
    $region250: #{tpu_custom_call.1} parent=1 // pred_check
      _
    $region251: #{tpu_custom_call.1} parent=1 // pred_check_branch
      %529 = sbr.rel target = $region253
    $region252: #{tpu_custom_call.1} parent=1 // pred_region
      %530 = sst [smem:[#allocation54]] [#allocation61]
      %531 = sst [smem:[#allocation55]] [#allocation60]
    $region253: #{tpu_custom_call.1} parent=1 // pred_fallthru
      _
    %533 = shalt.err (0)
    %s535 = sshll.u32 %s526, 4
    %s536 = int_to_ptr.vmem [resolvable:$true] %s535
    %538 = dma.hbm_to_vmem [thread:$0]  %s525, 16, %s536, %s527
    %s539 = sadd.s32 %s472, 4
    %s540 = sld [smem:[#allocation9 + %s539]]
    %s541 = smul.addr %s540, 16
    %s542 = scalar_lea.hbm %s5, %s541
    %s543 = scalar_lea.vmem [#allocation2], 6
    %s544 = scalar_lea.sflag [#allocation7], 4
    // Predicated region
    $region254: #{tpu_custom_call.1} parent=1 // pred_check
      _
    $region255: #{tpu_custom_call.1} parent=1 // pred_check_branch
      %546 = sbr.rel target = $region257
    $region256: #{tpu_custom_call.1} parent=1 // pred_region
      %547 = sst [smem:[#allocation54]] [#allocation63]
      %548 = sst [smem:[#allocation55]] [#allocation62]
    $region257: #{tpu_custom_call.1} parent=1 // pred_fallthru
      _
    %550 = shalt.err (0)
    %s552 = sshll.u32 %s543, 4
    %s553 = int_to_ptr.vmem [resolvable:$true] %s552
    %555 = dma.hbm_to_vmem [thread:$0]  %s542, 16, %s553, %s544
    %s556 = sadd.s32 %s472, 5
    %s557 = sld [smem:[#allocation9 + %s556]]
    %s558 = smul.addr %s557, 16
    %s559 = scalar_lea.hbm %s5, %s558
    %s560 = scalar_lea.vmem [#allocation2], 7
    %s561 = scalar_lea.sflag [#allocation7], 5
    // Predicated region
    $region258: #{tpu_custom_call.1} parent=1 // pred_check
      _
    $region259: #{tpu_custom_call.1} parent=1 // pred_check_branch
      %563 = sbr.rel target = $region261
    $region260: #{tpu_custom_call.1} parent=1 // pred_region
      %564 = sst [smem:[#allocation54]] [#allocation65]
      %565 = sst [smem:[#allocation55]] [#allocation64]
    $region261: #{tpu_custom_call.1} parent=1 // pred_fallthru
      _
    %567 = shalt.err (0)
    %s569 = sshll.u32 %s560, 4
    %s570 = int_to_ptr.vmem [resolvable:$true] %s569
    %572 = dma.hbm_to_vmem [thread:$0]  %s559, 16, %s570, %s561
    %s573 = sadd.s32 %s472, 6
    %s574 = sld [smem:[#allocation9 + %s573]]
    %s575 = smul.addr %s574, 16
    %s576 = scalar_lea.hbm %s5, %s575
    %s577 = scalar_lea.vmem [#allocation2], 8
    %s578 = scalar_lea.sflag [#allocation7], 6
    // Predicated region
    $region262: #{tpu_custom_call.1} parent=1 // pred_check
      _
    $region263: #{tpu_custom_call.1} parent=1 // pred_check_branch
      %580 = sbr.rel target = $region265
    $region264: #{tpu_custom_call.1} parent=1 // pred_region
      %581 = sst [smem:[#allocation54]] [#allocation67]
      %582 = sst [smem:[#allocation55]] [#allocation66]
    $region265: #{tpu_custom_call.1} parent=1 // pred_fallthru
      _
    %584 = shalt.err (0)
    %s586 = sshll.u32 %s577, 4
    %s587 = int_to_ptr.vmem [resolvable:$true] %s586
    %589 = dma.hbm_to_vmem [thread:$0]  %s576, 16, %s587, %s578
    %s590 = sadd.s32 %s472, 7
    %s591 = sld [smem:[#allocation9 + %s590]]
    %s592 = smul.addr %s591, 16
    %s593 = scalar_lea.hbm %s5, %s592
    %s594 = scalar_lea.vmem [#allocation2], 9
    %s595 = scalar_lea.sflag [#allocation7], 7
    // Predicated region
    $region266: #{tpu_custom_call.1} parent=1 // pred_check
      _
    $region267: #{tpu_custom_call.1} parent=1 // pred_check_branch
      %597 = sbr.rel target = $region269
    $region268: #{tpu_custom_call.1} parent=1 // pred_region
      %598 = sst [smem:[#allocation54]] [#allocation69]
      %599 = sst [smem:[#allocation55]] [#allocation68]
    $region269: #{tpu_custom_call.1} parent=1 // pred_fallthru
      _
    %601 = shalt.err (0)
    %s603 = sshll.u32 %s594, 4
    %s604 = int_to_ptr.vmem [resolvable:$true] %s603
    %606 = dma.hbm_to_vmem [thread:$0]  %s593, 16, %s604, %s595
    %v607 = vld [vmem:[#allocation10] sm:$0x3]
    %v608 = vmul.f32 %v607, %v607
    %vm609 = vcmask 58368
    %v610 = vsel %vm609, %v608, 0.0
    %611 = vadd.xlane.f32.xlu0 %v610
    %v612 = vpop.xlane.xlu0 %611
    %v613 = vmax.f32 %v612, 1e-24
    %v614 = vrsqrt.pop %v613
    %v615 = vmul.f32 %v607, %v614
    %v616 = vand.u32 2147483647, %v607
    %v617 = vadd.f32 %v616, 1e-07
    %v618 = vlog2.pop %v617
    %v619 = vmul.f32 %v618, 0.6931472
    %v620 = vpack.c.bf16 %v615, %v615
    %v621 = vld [vmem:[#allocation13] sm:$0xf]
    %v622 = vpack.c.bf16 %v619, %v619
    %v623 = vld [vmem:[#allocation15] sm:$0xf]
    %vm624 = vcmask 64512
    %v626 = vsel %vm624, %v622, 0
    %vm628 = vcmask 1043456
    %v630 = vsel %vm628, %v623, 0
    %632 = vmatprep.subr.bf16.mxu0 0
    %633 = vmatpush1.bf16.msra.mxu0 0
    %634 = vmatprep.subr.bf16.mxu0 0
    %635 = vmatpush1.bf16.msra.mxu0 0
    %636 = vmatprep.subr.bf16.mxu0 0
    %637 = vmatpush1.bf16.msra.mxu0 0
    %638 = vmatprep.subr.bf16.mxu0 0
    %639 = vmatpush1.bf16.msra.mxu0 0
    %640 = vmatprep.subr.bf16.mxu0 0
    %641 = vmatpush1.bf16.msra.mxu0 0
    %642 = vmatprep.subr.bf16.mxu0 0
    %643 = vmatpush1.bf16.msra.mxu0 0
    %644 = vmatprep.subr.bf16.mxu0 0
    %645 = vmatpush1.bf16.msra.mxu0 0
    %646 = vmatprep.subr.bf16.mxu0 0
    %647 = vmatpush1.bf16.msra.mxu0 %v630
    %648 = vmatprep.subr.bf16.mxu0 0
    %649 = vmatpush2.bf16.msra.mxu0 0
    %650 = vmatprep.subr.bf16.mxu0 0
    %651 = vmatpush2.bf16.msra.mxu0 0
    %652 = vmatprep.subr.bf16.mxu0 0
    %653 = vmatpush2.bf16.msra.mxu0 0
    %654 = vmatprep.subr.bf16.mxu0 0
    %655 = vmatpush2.bf16.msra.mxu0 0
    %656 = vmatprep.subr.bf16.mxu0 0
    %657 = vmatpush2.bf16.msra.mxu0 0
    %658 = vmatprep.subr.bf16.mxu0 0
    %659 = vmatpush2.bf16.msra.mxu0 0
    %660 = vmatprep.subr.bf16.mxu0 0
    %661 = vmatpush2.bf16.msra.mxu0 0
    %662 = vmatprep.subr.bf16.mxu0 0
    %663 = vmatpush2.bf16.msra.mxu0 0
    %664 = vmatprep.mubr.bf16.mxu0 0
    %665 = vmatmul.mubr.bf16.gmra.mxu0 %v626
    %v666 = vpop.f32.mrf.mxu0
    %v667 = vadd.f32 0.0, %v666
    %v668 = vpop.f32.mrf.mxu0
    %v669 = vpop.f32.mrf.mxu0
    %v670 = vpop.f32.mrf.mxu0
    %671 = vdwg.mxu0
    %v673 = vsel %vm624, %v620, 0
    %v676 = vsel %vm628, %v621, 0
    %678 = vmatprep.subr.bf16.mxu0 0
    %679 = vmatpush1.bf16.msra.mxu0 0
    %680 = vmatprep.subr.bf16.mxu0 0
    %681 = vmatpush1.bf16.msra.mxu0 0
    %682 = vmatprep.subr.bf16.mxu0 0
    %683 = vmatpush1.bf16.msra.mxu0 0
    %684 = vmatprep.subr.bf16.mxu0 0
    %685 = vmatpush1.bf16.msra.mxu0 0
    %686 = vmatprep.subr.bf16.mxu0 0
    %687 = vmatpush1.bf16.msra.mxu0 0
    %688 = vmatprep.subr.bf16.mxu0 0
    %689 = vmatpush1.bf16.msra.mxu0 0
    %690 = vmatprep.subr.bf16.mxu0 0
    %691 = vmatpush1.bf16.msra.mxu0 0
    %692 = vmatprep.subr.bf16.mxu0 0
    %693 = vmatpush1.bf16.msra.mxu0 %v676
    %694 = vmatprep.subr.bf16.mxu0 0
    %695 = vmatpush2.bf16.msra.mxu0 0
    %696 = vmatprep.subr.bf16.mxu0 0
    %697 = vmatpush2.bf16.msra.mxu0 0
    %698 = vmatprep.subr.bf16.mxu0 0
    %699 = vmatpush2.bf16.msra.mxu0 0
    %700 = vmatprep.subr.bf16.mxu0 0
    %701 = vmatpush2.bf16.msra.mxu0 0
    %702 = vmatprep.subr.bf16.mxu0 0
    %703 = vmatpush2.bf16.msra.mxu0 0
    %704 = vmatprep.subr.bf16.mxu0 0
    %705 = vmatpush2.bf16.msra.mxu0 0
    %706 = vmatprep.subr.bf16.mxu0 0
    %707 = vmatpush2.bf16.msra.mxu0 0
    %708 = vmatprep.subr.bf16.mxu0 0
    %709 = vmatpush2.bf16.msra.mxu0 0
    %710 = vmatprep.mubr.bf16.mxu0 0
    %711 = vmatmul.mubr.bf16.gmra.mxu0 %v673
    %v712 = vpop.f32.mrf.mxu0
    %v713 = vadd.f32 %v667, %v712
    %v714 = vpop.f32.mrf.mxu0
    %v715 = vpop.f32.mrf.mxu0
    %v716 = vpop.f32.mrf.mxu0
    %717 = vdwg.mxu0
    %v718 = vld [vmem:[#allocation16] sm:$0x1]
    %v720 = vlaneseq
    %v721 = vshrl.u32 %v720, 7
    %v722 = vsub.s32 0, %v721
    %v723 = vrot.slane %v718, %v722
    %v725 = vadd.f32 %v713, %v723
    %v726 = vmax.f32 %v725, 0.0
    %v727 = vpack.c.bf16 %v726, %v726
    %v728 = vld [vmem:[#allocation18] sm:$0xf]
    %v729 = vld [vmem:[#allocation18 + $0x4] sm:$0xf]
    %v730 = vld [vmem:[#allocation18 + $0x8] sm:$0xf]
    %v731 = vld [vmem:[#allocation18 + $0xc] sm:$0xf]
    %v732 = vld [vmem:[#allocation19] sm:$0x1]
    %v734 = vlaneseq
    %v735 = vshrl.u32 %v734, 7
    %v736 = vsub.s32 0, %v735
    %v737 = vrot.slane %v732, %v736
    %v743 = vunpack.c.l.b16 %v728
    %v744 = vunpack.c.l.b16 %v729
    %v745 = vunpack.c.l.b16 %v730
    %v746 = vunpack.c.l.b16 %v731
    %v747 = vpack.c.b16 %v744, %v743
    %v748 = vpack.c.b16 %v746, %v745
    %vm751 = vcmask 261120
    %v753 = vsel %vm751, %v727, 0
    %755 = vmatprep.subr.bf16.mxu0 0
    %756 = vmatpush1.bf16.msra.mxu0 0
    %757 = vmatprep.subr.bf16.mxu0 0
    %758 = vmatpush1.bf16.msra.mxu0 0
    %759 = vmatprep.subr.bf16.mxu0 0
    %760 = vmatpush1.bf16.msra.mxu0 0
    %761 = vmatprep.subr.bf16.mxu0 0
    %762 = vmatpush1.bf16.msra.mxu0 0
    %763 = vmatprep.subr.bf16.mxu0 0
    %764 = vmatpush1.bf16.msra.mxu0 0
    %765 = vmatprep.subr.bf16.mxu0 0
    %766 = vmatpush1.bf16.msra.mxu0 0
    %767 = vmatprep.subr.bf16.mxu0 0
    %768 = vmatpush1.bf16.msra.mxu0 %v748
    %769 = vmatprep.subr.bf16.mxu0 0
    %770 = vmatpush1.bf16.msra.mxu0 %v747
    %771 = vmatprep.subr.bf16.mxu0 0
    %772 = vmatpush2.bf16.msra.mxu0 0
    %773 = vmatprep.subr.bf16.mxu0 0
    %774 = vmatpush2.bf16.msra.mxu0 0
    %775 = vmatprep.subr.bf16.mxu0 0
    %776 = vmatpush2.bf16.msra.mxu0 0
    %777 = vmatprep.subr.bf16.mxu0 0
    %778 = vmatpush2.bf16.msra.mxu0 0
    %779 = vmatprep.subr.bf16.mxu0 0
    %780 = vmatpush2.bf16.msra.mxu0 0
    %781 = vmatprep.subr.bf16.mxu0 0
    %782 = vmatpush2.bf16.msra.mxu0 0
    %783 = vmatprep.subr.bf16.mxu0 0
    %784 = vmatpush2.bf16.msra.mxu0 0
    %785 = vmatprep.subr.bf16.mxu0 0
    %786 = vmatpush2.bf16.msra.mxu0 0
    %787 = vmatprep.mubr.bf16.mxu0 0
    %788 = vmatmul.mubr.bf16.gmra.mxu0 %v753
    %v789 = vpop.f32.mrf.mxu0
    %v790 = vadd.f32 %v737, %v789
    %v791 = vpop.f32.mrf.mxu0
    %v792 = vpop.f32.mrf.mxu0
    %v793 = vpop.f32.mrf.mxu0
    %794 = vdwg.mxu0
    %v795 = vmax.f32 %v790, 0.0
    %v796 = vpack.c.bf16 %v795, %v795
    %v797 = vld [vmem:[#allocation21] sm:$0xf]
    %v798 = vld [vmem:[#allocation21 + $0x4] sm:$0xf]
    %v799 = vld [vmem:[#allocation21 + $0x8] sm:$0xf]
    %v800 = vld [vmem:[#allocation21 + $0xc] sm:$0xf]
    %v801 = vld [vmem:[#allocation22] sm:$0x1]
    %v803 = vlaneseq
    %v804 = vshrl.u32 %v803, 7
    %v805 = vsub.s32 0, %v804
    %v806 = vrot.slane %v801, %v805
    %v812 = vunpack.c.l.b16 %v797
    %v813 = vunpack.c.l.b16 %v798
    %v814 = vunpack.c.l.b16 %v799
    %v815 = vunpack.c.l.b16 %v800
    %v816 = vpack.c.b16 %v813, %v812
    %v817 = vpack.c.b16 %v815, %v814
    %v821 = vsel %vm751, %v796, 0
    %823 = vmatprep.subr.bf16.mxu0 0
    %824 = vmatpush1.bf16.msra.mxu0 0
    %825 = vmatprep.subr.bf16.mxu0 0
    %826 = vmatpush1.bf16.msra.mxu0 0
    %827 = vmatprep.subr.bf16.mxu0 0
    %828 = vmatpush1.bf16.msra.mxu0 0
    %829 = vmatprep.subr.bf16.mxu0 0
    %830 = vmatpush1.bf16.msra.mxu0 0
    %831 = vmatprep.subr.bf16.mxu0 0
    %832 = vmatpush1.bf16.msra.mxu0 0
    %833 = vmatprep.subr.bf16.mxu0 0
    %834 = vmatpush1.bf16.msra.mxu0 0
    %835 = vmatprep.subr.bf16.mxu0 0
    %836 = vmatpush1.bf16.msra.mxu0 %v817
    %837 = vmatprep.subr.bf16.mxu0 0
    %838 = vmatpush1.bf16.msra.mxu0 %v816
    %839 = vmatprep.subr.bf16.mxu0 0
    %840 = vmatpush2.bf16.msra.mxu0 0
    %841 = vmatprep.subr.bf16.mxu0 0
    %842 = vmatpush2.bf16.msra.mxu0 0
    %843 = vmatprep.subr.bf16.mxu0 0
    %844 = vmatpush2.bf16.msra.mxu0 0
    %845 = vmatprep.subr.bf16.mxu0 0
    %846 = vmatpush2.bf16.msra.mxu0 0
    %847 = vmatprep.subr.bf16.mxu0 0
    %848 = vmatpush2.bf16.msra.mxu0 0
    %849 = vmatprep.subr.bf16.mxu0 0
    %850 = vmatpush2.bf16.msra.mxu0 0
    %851 = vmatprep.subr.bf16.mxu0 0
    %852 = vmatpush2.bf16.msra.mxu0 0
    %853 = vmatprep.subr.bf16.mxu0 0
    %854 = vmatpush2.bf16.msra.mxu0 0
    %855 = vmatprep.mubr.bf16.mxu0 0
    %856 = vmatmul.mubr.bf16.gmra.mxu0 %v821
    %v857 = vpop.f32.mrf.mxu0
    %v858 = vadd.f32 %v806, %v857
    %v859 = vpop.f32.mrf.mxu0
    %v860 = vpop.f32.mrf.mxu0
    %v861 = vpop.f32.mrf.mxu0
    %862 = vdwg.mxu0
    %vm863 = vcmask 254976
    %864 = vst.msk [vmem:[#allocation2] sm:$0x3] %vm863, %v858
    %866 = dma.done [#allocation7], 16
    %868 = dma.done %s493, 16
    %870 = dma.done %s510, 16
    %872 = dma.done %s527, 16
    %874 = dma.done %s544, 16
    %876 = dma.done %s561, 16
    %878 = dma.done %s578, 16
    %880 = dma.done %s595, 16
    %v881 = vld [vmem:[#allocation2] sm:$0xff]
    %v882 = vld [vmem:[#allocation2 + $0x8] sm:$0x3]
    %v883 = vpack.c.bf16 %v882, %v881
    %v884 = vld [vmem:[%s21] sm:$0xf]
    %v885 = vld [vmem:[%s21 + $0x4] sm:$0xf]
    %v886 = vld [vmem:[%s21 + $0x8] sm:$0xf]
    %v887 = vld [vmem:[%s21 + $0xc] sm:$0xf]
    %v888 = vld [vmem:[#allocation31] sm:$0x1]
    %v890 = vlaneseq
    %v891 = vshrl.u32 %v890, 7
    %v892 = vsub.s32 0, %v891
    %v893 = vrot.slane %v888, %v892
    %v899 = vunpack.c.l.b16 %v884
    %v900 = vunpack.c.l.b16 %v885
    %v901 = vunpack.c.l.b16 %v886
    %v902 = vunpack.c.l.b16 %v887
    %v903 = vpack.c.b16 %v900, %v899
    %v904 = vpack.c.b16 %v902, %v901
    %v908 = vsel %vm751, %v883, 0
    %910 = vmatprep.subr.bf16.mxu0 0
    %911 = vmatpush1.bf16.msra.mxu0 0
    %912 = vmatprep.subr.bf16.mxu0 0
    %913 = vmatpush1.bf16.msra.mxu0 0
    %914 = vmatprep.subr.bf16.mxu0 0
    %915 = vmatpush1.bf16.msra.mxu0 0
    %916 = vmatprep.subr.bf16.mxu0 0
    %917 = vmatpush1.bf16.msra.mxu0 0
    %918 = vmatprep.subr.bf16.mxu0 0
    %919 = vmatpush1.bf16.msra.mxu0 0
    %920 = vmatprep.subr.bf16.mxu0 0
    %921 = vmatpush1.bf16.msra.mxu0 0
    %922 = vmatprep.subr.bf16.mxu0 0
    %923 = vmatpush1.bf16.msra.mxu0 %v904
    %924 = vmatprep.subr.bf16.mxu0 0
    %925 = vmatpush1.bf16.msra.mxu0 %v903
    %926 = vmatprep.subr.bf16.mxu0 0
    %927 = vmatpush2.bf16.msra.mxu0 0
    %928 = vmatprep.subr.bf16.mxu0 0
    %929 = vmatpush2.bf16.msra.mxu0 0
    %930 = vmatprep.subr.bf16.mxu0 0
    %931 = vmatpush2.bf16.msra.mxu0 0
    %932 = vmatprep.subr.bf16.mxu0 0
    %933 = vmatpush2.bf16.msra.mxu0 0
    %934 = vmatprep.subr.bf16.mxu0 0
    %935 = vmatpush2.bf16.msra.mxu0 0
    %936 = vmatprep.subr.bf16.mxu0 0
    %937 = vmatpush2.bf16.msra.mxu0 0
    %938 = vmatprep.subr.bf16.mxu0 0
    %939 = vmatpush2.bf16.msra.mxu0 0
    %940 = vmatprep.subr.bf16.mxu0 0
    %941 = vmatpush2.bf16.msra.mxu0 0
    %942 = vmatprep.mubr.bf16.mxu0 0
    %943 = vmatmul.mubr.bf16.gmra.mxu0 %v908
    %v944 = vpop.f32.mrf.mxu0
    %v945 = vadd.f32 %v893, %v944
    %v946 = vpop.f32.mrf.mxu0
    %v947 = vpop.f32.mrf.mxu0
    %v948 = vadd.f32 %v893, %v947
    %v949 = vpop.f32.mrf.mxu0
    %950 = vdwg.mxu0
    %951 = vst.msk [vmem:[#allocation4] sm:$0xff] %vm751, %v945
    %952 = vst.msk [vmem:[#allocation4 + $0x8] sm:$0x3] %vm863, %v948
    %v953 = vld [vmem:[#allocation24] sm:$0xf]
    %v954 = vld [vmem:[#allocation24 + $0x4] sm:$0xf]
    %v955 = vld [vmem:[#allocation24 + $0x8] sm:$0xf]
    %v956 = vld [vmem:[#allocation24 + $0xc] sm:$0xf]
    %v957 = vld [vmem:[#allocation33] sm:$0x1]
    %v959 = vlaneseq
    %v960 = vshrl.u32 %v959, 7
    %v961 = vsub.s32 0, %v960
    %v962 = vrot.slane %v957, %v961
    %v968 = vunpack.c.l.b16 %v953
    %v969 = vunpack.c.l.b16 %v954
    %v970 = vunpack.c.l.b16 %v955
    %v971 = vunpack.c.l.b16 %v956
    %v972 = vpack.c.b16 %v969, %v968
    %v973 = vpack.c.b16 %v971, %v970
    %976 = vmatprep.subr.bf16.mxu0 0
    %977 = vmatpush1.bf16.msra.mxu0 0
    %978 = vmatprep.subr.bf16.mxu0 0
    %979 = vmatpush1.bf16.msra.mxu0 0
    %980 = vmatprep.subr.bf16.mxu0 0
    %981 = vmatpush1.bf16.msra.mxu0 0
    %982 = vmatprep.subr.bf16.mxu0 0
    %983 = vmatpush1.bf16.msra.mxu0 0
    %984 = vmatprep.subr.bf16.mxu0 0
    %985 = vmatpush1.bf16.msra.mxu0 0
    %986 = vmatprep.subr.bf16.mxu0 0
    %987 = vmatpush1.bf16.msra.mxu0 0
    %988 = vmatprep.subr.bf16.mxu0 0
    %989 = vmatpush1.bf16.msra.mxu0 %v973
    %990 = vmatprep.subr.bf16.mxu0 0
    %991 = vmatpush1.bf16.msra.mxu0 %v972
    %992 = vmatprep.subr.bf16.mxu0 0
    %993 = vmatpush2.bf16.msra.mxu0 0
    %994 = vmatprep.subr.bf16.mxu0 0
    %995 = vmatpush2.bf16.msra.mxu0 0
    %996 = vmatprep.subr.bf16.mxu0 0
    %997 = vmatpush2.bf16.msra.mxu0 0
    %998 = vmatprep.subr.bf16.mxu0 0
    %999 = vmatpush2.bf16.msra.mxu0 0
    %1000 = vmatprep.subr.bf16.mxu0 0
    %1001 = vmatpush2.bf16.msra.mxu0 0
    %1002 = vmatprep.subr.bf16.mxu0 0
    %1003 = vmatpush2.bf16.msra.mxu0 0
    %1004 = vmatprep.subr.bf16.mxu0 0
    %1005 = vmatpush2.bf16.msra.mxu0 0
    %1006 = vmatprep.subr.bf16.mxu0 0
    %1007 = vmatpush2.bf16.msra.mxu0 0
    %1008 = vmatprep.mubr.bf16.mxu0 0
    %1009 = vmatmul.mubr.bf16.gmra.mxu0 %v908
    %v1010 = vpop.f32.mrf.mxu0
    %v1011 = vadd.f32 %v962, %v1010
    %v1012 = vpop.f32.mrf.mxu0
    %v1013 = vpop.f32.mrf.mxu0
    %v1014 = vadd.f32 %v962, %v1013
    %v1015 = vpop.f32.mrf.mxu0
    %1016 = vdwg.mxu0
    %1017 = vst.msk [vmem:[#allocation5] sm:$0xff] %vm751, %v1011
    %1018 = vst.msk [vmem:[#allocation5 + $0x8] sm:$0x3] %vm863, %v1014
    %v1019 = vld [vmem:[#allocation25] sm:$0xf]
    %v1020 = vld [vmem:[#allocation25 + $0x4] sm:$0xf]
    %v1021 = vld [vmem:[#allocation25 + $0x8] sm:$0xf]
    %v1022 = vld [vmem:[#allocation25 + $0xc] sm:$0xf]
    %v1023 = vld [vmem:[#allocation34] sm:$0x1]
    %v1025 = vlaneseq
    %v1026 = vshrl.u32 %v1025, 7
    %v1027 = vsub.s32 0, %v1026
    %v1028 = vrot.slane %v1023, %v1027
    %v1034 = vunpack.c.l.b16 %v1019
    %v1035 = vunpack.c.l.b16 %v1020
    %v1036 = vunpack.c.l.b16 %v1021
    %v1037 = vunpack.c.l.b16 %v1022
    %v1038 = vpack.c.b16 %v1035, %v1034
    %v1039 = vpack.c.b16 %v1037, %v1036
    %1042 = vmatprep.subr.bf16.mxu0 0
    %1043 = vmatpush1.bf16.msra.mxu0 0
    %1044 = vmatprep.subr.bf16.mxu0 0
    %1045 = vmatpush1.bf16.msra.mxu0 0
    %1046 = vmatprep.subr.bf16.mxu0 0
    %1047 = vmatpush1.bf16.msra.mxu0 0
    %1048 = vmatprep.subr.bf16.mxu0 0
    %1049 = vmatpush1.bf16.msra.mxu0 0
    %1050 = vmatprep.subr.bf16.mxu0 0
    %1051 = vmatpush1.bf16.msra.mxu0 0
    %1052 = vmatprep.subr.bf16.mxu0 0
    %1053 = vmatpush1.bf16.msra.mxu0 0
    %1054 = vmatprep.subr.bf16.mxu0 0
    %1055 = vmatpush1.bf16.msra.mxu0 %v1039
    %1056 = vmatprep.subr.bf16.mxu0 0
    %1057 = vmatpush1.bf16.msra.mxu0 %v1038
    %1058 = vmatprep.subr.bf16.mxu0 0
    %1059 = vmatpush2.bf16.msra.mxu0 0
    %1060 = vmatprep.subr.bf16.mxu0 0
    %1061 = vmatpush2.bf16.msra.mxu0 0
    %1062 = vmatprep.subr.bf16.mxu0 0
    %1063 = vmatpush2.bf16.msra.mxu0 0
    %1064 = vmatprep.subr.bf16.mxu0 0
    %1065 = vmatpush2.bf16.msra.mxu0 0
    %1066 = vmatprep.subr.bf16.mxu0 0
    %1067 = vmatpush2.bf16.msra.mxu0 0
    %1068 = vmatprep.subr.bf16.mxu0 0
    %1069 = vmatpush2.bf16.msra.mxu0 0
    %1070 = vmatprep.subr.bf16.mxu0 0
    %1071 = vmatpush2.bf16.msra.mxu0 0
    %1072 = vmatprep.subr.bf16.mxu0 0
    %1073 = vmatpush2.bf16.msra.mxu0 0
    %1074 = vmatprep.mubr.bf16.mxu0 0
    %1075 = vmatmul.mubr.bf16.gmra.mxu0 %v908
    %v1076 = vpop.f32.mrf.mxu0
    %v1077 = vadd.f32 %v1028, %v1076
    %v1078 = vpop.f32.mrf.mxu0
    %v1079 = vpop.f32.mrf.mxu0
    %v1080 = vadd.f32 %v1028, %v1079
    %v1081 = vpop.f32.mrf.mxu0
    %1082 = vdwg.mxu0
    %1083 = vst.msk [vmem:[#allocation6] sm:$0xff] %vm751, %v1077
    %1084 = vst.msk [vmem:[#allocation6 + $0x8] sm:$0x3] %vm863, %v1080
    %v1085 = vld [vmem:[%s39] sm:$0x1]
    %v1086 = vld [vmem:[#allocation27] sm:$0xf]
    %v1087 = vld [vmem:[#allocation27 + $0x4] sm:$0xf]
    %v1088 = vld [vmem:[#allocation27 + $0x8] sm:$0xf]
    %v1089 = vld [vmem:[#allocation27 + $0xc] sm:$0xf]
    %v1094 = vunpack.c.l.b16 %v1086
    %v1095 = vunpack.c.l.b16 %v1087
    %v1096 = vunpack.c.l.b16 %v1088
    %v1097 = vunpack.c.l.b16 %v1089
    %v1098 = vpack.c.b16 %v1095, %v1094
    %v1099 = vpack.c.b16 %v1097, %v1096
    %v1103 = vsel %vm751, 0, 0
    %1105 = vmatprep.subr.bf16.mxu0 0
    %1106 = vmatpush1.bf16.msra.mxu0 0
    %1107 = vmatprep.subr.bf16.mxu0 0
    %1108 = vmatpush1.bf16.msra.mxu0 0
    %1109 = vmatprep.subr.bf16.mxu0 0
    %1110 = vmatpush1.bf16.msra.mxu0 0
    %1111 = vmatprep.subr.bf16.mxu0 0
    %1112 = vmatpush1.bf16.msra.mxu0 0
    %1113 = vmatprep.subr.bf16.mxu0 0
    %1114 = vmatpush1.bf16.msra.mxu0 0
    %1115 = vmatprep.subr.bf16.mxu0 0
    %1116 = vmatpush1.bf16.msra.mxu0 0
    %1117 = vmatprep.subr.bf16.mxu0 0
    %1118 = vmatpush1.bf16.msra.mxu0 %v1099
    %1119 = vmatprep.subr.bf16.mxu0 0
    %1120 = vmatpush1.bf16.msra.mxu0 %v1098
    %1121 = vmatprep.subr.bf16.mxu0 0
    %1122 = vmatpush2.bf16.msra.mxu0 0
    %1123 = vmatprep.subr.bf16.mxu0 0
    %1124 = vmatpush2.bf16.msra.mxu0 0
    %1125 = vmatprep.subr.bf16.mxu0 0
    %1126 = vmatpush2.bf16.msra.mxu0 0
    %1127 = vmatprep.subr.bf16.mxu0 0
    %1128 = vmatpush2.bf16.msra.mxu0 0
    %1129 = vmatprep.subr.bf16.mxu0 0
    %1130 = vmatpush2.bf16.msra.mxu0 0
    %1131 = vmatprep.subr.bf16.mxu0 0
    %1132 = vmatpush2.bf16.msra.mxu0 0
    %1133 = vmatprep.subr.bf16.mxu0 0
    %1134 = vmatpush2.bf16.msra.mxu0 0
    %1135 = vmatprep.subr.bf16.mxu0 0
    %1136 = vmatpush2.bf16.msra.mxu0 0
    %1137 = vmatprep.mubr.bf16.mxu0 0
    %1138 = vmatmul.mubr.bf16.gmra.mxu0 %v1103
    %v1139 = vpop.f32.mrf.mxu0
    %v1140 = vadd.f32 0.0, %v1139
    %v1141 = vpop.f32.mrf.mxu0
    %v1142 = vpop.f32.mrf.mxu0
    %v1143 = vpop.f32.mrf.mxu0
    %1144 = vdwg.mxu0
    %v1145 = vld [vmem:[#allocation28] sm:$0xf]
    %v1146 = vld [vmem:[#allocation28 + $0x4] sm:$0xf]
    %v1147 = vld [vmem:[#allocation28 + $0x8] sm:$0xf]
    %v1148 = vld [vmem:[#allocation28 + $0xc] sm:$0xf]
    %v1153 = vunpack.c.l.b16 %v1145
    %v1154 = vunpack.c.l.b16 %v1146
    %v1155 = vunpack.c.l.b16 %v1147
    %v1156 = vunpack.c.l.b16 %v1148
    %v1157 = vpack.c.b16 %v1154, %v1153
    %v1158 = vpack.c.b16 %v1156, %v1155
    %1161 = vmatprep.subr.bf16.mxu0 0
    %1162 = vmatpush1.bf16.msra.mxu0 0
    %1163 = vmatprep.subr.bf16.mxu0 0
    %1164 = vmatpush1.bf16.msra.mxu0 0
    %1165 = vmatprep.subr.bf16.mxu0 0
    %1166 = vmatpush1.bf16.msra.mxu0 0
    %1167 = vmatprep.subr.bf16.mxu0 0
    %1168 = vmatpush1.bf16.msra.mxu0 0
    %1169 = vmatprep.subr.bf16.mxu0 0
    %1170 = vmatpush1.bf16.msra.mxu0 0
    %1171 = vmatprep.subr.bf16.mxu0 0
    %1172 = vmatpush1.bf16.msra.mxu0 0
    %1173 = vmatprep.subr.bf16.mxu0 0
    %1174 = vmatpush1.bf16.msra.mxu0 %v1158
    %1175 = vmatprep.subr.bf16.mxu0 0
    %1176 = vmatpush1.bf16.msra.mxu0 %v1157
    %1177 = vmatprep.subr.bf16.mxu0 0
    %1178 = vmatpush2.bf16.msra.mxu0 0
    %1179 = vmatprep.subr.bf16.mxu0 0
    %1180 = vmatpush2.bf16.msra.mxu0 0
    %1181 = vmatprep.subr.bf16.mxu0 0
    %1182 = vmatpush2.bf16.msra.mxu0 0
    %1183 = vmatprep.subr.bf16.mxu0 0
    %1184 = vmatpush2.bf16.msra.mxu0 0
    %1185 = vmatprep.subr.bf16.mxu0 0
    %1186 = vmatpush2.bf16.msra.mxu0 0
    %1187 = vmatprep.subr.bf16.mxu0 0
    %1188 = vmatpush2.bf16.msra.mxu0 0
    %1189 = vmatprep.subr.bf16.mxu0 0
    %1190 = vmatpush2.bf16.msra.mxu0 0
    %1191 = vmatprep.subr.bf16.mxu0 0
    %1192 = vmatpush2.bf16.msra.mxu0 0
    %1193 = vmatprep.mubr.bf16.mxu0 0
    %1194 = vmatmul.mubr.bf16.gmra.mxu0 %v1103
    %v1195 = vpop.f32.mrf.mxu0
    %v1196 = vadd.f32 0.0, %v1195
    %v1197 = vpop.f32.mrf.mxu0
    %v1198 = vpop.f32.mrf.mxu0
    %v1199 = vpop.f32.mrf.mxu0
    %1200 = vdwg.mxu0
    %v1201 = vld [vmem:[#allocation30] sm:$0xf]
    %v1202 = vld [vmem:[#allocation30 + $0x4] sm:$0xf]
    %v1203 = vld [vmem:[#allocation30 + $0x8] sm:$0xf]
    %v1204 = vld [vmem:[#allocation30 + $0xc] sm:$0xf]
    %v1206 = vlaneseq
    %v1207 = vshrl.u32 %v1206, 7
    %v1208 = vsub.s32 0, %v1207
    %v1209 = vrot.slane %v1085, %v1208
    %v1215 = vunpack.c.l.b16 %v1201
    %v1216 = vunpack.c.l.b16 %v1202
    %v1217 = vunpack.c.l.b16 %v1203
    %v1218 = vunpack.c.l.b16 %v1204
    %v1219 = vpack.c.b16 %v1216, %v1215
    %v1220 = vpack.c.b16 %v1218, %v1217
    %1223 = vmatprep.subr.bf16.mxu0 0
    %1224 = vmatpush1.bf16.msra.mxu0 0
    %1225 = vmatprep.subr.bf16.mxu0 0
    %1226 = vmatpush1.bf16.msra.mxu0 0
    %1227 = vmatprep.subr.bf16.mxu0 0
    %1228 = vmatpush1.bf16.msra.mxu0 0
    %1229 = vmatprep.subr.bf16.mxu0 0
    %1230 = vmatpush1.bf16.msra.mxu0 0
    %1231 = vmatprep.subr.bf16.mxu0 0
    %1232 = vmatpush1.bf16.msra.mxu0 0
    %1233 = vmatprep.subr.bf16.mxu0 0
    %1234 = vmatpush1.bf16.msra.mxu0 0
    %1235 = vmatprep.subr.bf16.mxu0 0
    %1236 = vmatpush1.bf16.msra.mxu0 %v1220
    %1237 = vmatprep.subr.bf16.mxu0 0
    %1238 = vmatpush1.bf16.msra.mxu0 %v1219
    %1239 = vmatprep.subr.bf16.mxu0 0
    %1240 = vmatpush2.bf16.msra.mxu0 0
    %1241 = vmatprep.subr.bf16.mxu0 0
    %1242 = vmatpush2.bf16.msra.mxu0 0
    %1243 = vmatprep.subr.bf16.mxu0 0
    %1244 = vmatpush2.bf16.msra.mxu0 0
    %1245 = vmatprep.subr.bf16.mxu0 0
    %1246 = vmatpush2.bf16.msra.mxu0 0
    %1247 = vmatprep.subr.bf16.mxu0 0
    %1248 = vmatpush2.bf16.msra.mxu0 0
    %1249 = vmatprep.subr.bf16.mxu0 0
    %1250 = vmatpush2.bf16.msra.mxu0 0
    %1251 = vmatprep.subr.bf16.mxu0 0
    %1252 = vmatpush2.bf16.msra.mxu0 0
    %1253 = vmatprep.subr.bf16.mxu0 0
    %1254 = vmatpush2.bf16.msra.mxu0 0
    %1255 = vmatprep.mubr.bf16.mxu0 0
    %1256 = vmatmul.mubr.bf16.gmra.mxu0 %v1103
    %v1257 = vpop.f32.mrf.mxu0
    %v1258 = vadd.f32 %v1209, %v1257
    %v1259 = vpop.f32.mrf.mxu0
    %v1260 = vpop.f32.mrf.mxu0
    %v1261 = vpop.f32.mrf.mxu0
    %1262 = vdwg.mxu0
    %v1263 = vld [vmem:[#allocation4] sm:$0x3]
    %v1264 = vadd.f32 %v1263, %v1140
    %v1265 = vxor.u32 %v1264, 2147483648
    %v1266 = vmul.f32 %v1265, 1.442695
    %v1267 = vpow.pop %v1266
    %v1268 = vadd.f32 %v1267, 1.0
    %v1269 = vrcp.pop %v1268
    %v1270 = vmul.f32 1.0, %v1269
    %v1271 = vld [vmem:[#allocation5] sm:$0x3]
    %v1272 = vadd.f32 %v1271, %v1196
    %v1273 = vxor.u32 %v1272, 2147483648
    %v1274 = vmul.f32 %v1273, 1.442695
    %v1275 = vpow.pop %v1274
    %v1276 = vadd.f32 %v1275, 1.0
    %v1277 = vrcp.pop %v1276
    %v1278 = vmul.f32 1.0, %v1277
    %v1279 = vld [vmem:[#allocation6] sm:$0x3]
    %v1280 = vmul.f32 %v1270, %v1258
    %v1281 = vadd.f32 %v1279, %v1280
    %v1282 = vtanh.pop %v1281
    %v1283 = vsub.f32 0.0, %v1282
    %v1284 = vmul.f32 %v1278, %v1283
    %v1285 = vadd.f32 %v1284, %v1282
    %1286 = vst.msk [vmem:[#allocation3] sm:$0x3] %vm863, %v1285
    %v1287 = vpack.c.bf16 %v1285, %v1285
    %v1288 = vld [vmem:[#allocation27] sm:$0xf]
    %v1289 = vld [vmem:[#allocation27 + $0x4] sm:$0xf]
    %v1290 = vld [vmem:[#allocation27 + $0x8] sm:$0xf]
    %v1291 = vld [vmem:[#allocation27 + $0xc] sm:$0xf]
    %v1296 = vunpack.c.l.b16 %v1288
    %v1297 = vunpack.c.l.b16 %v1289
    %v1298 = vunpack.c.l.b16 %v1290
    %v1299 = vunpack.c.l.b16 %v1291
    %v1300 = vpack.c.b16 %v1297, %v1296
    %v1301 = vpack.c.b16 %v1299, %v1298
    %v1305 = vsel %vm751, %v1287, 0
    %1307 = vmatprep.subr.bf16.mxu0 0
    %1308 = vmatpush1.bf16.msra.mxu0 0
    %1309 = vmatprep.subr.bf16.mxu0 0
    %1310 = vmatpush1.bf16.msra.mxu0 0
    %1311 = vmatprep.subr.bf16.mxu0 0
    %1312 = vmatpush1.bf16.msra.mxu0 0
    %1313 = vmatprep.subr.bf16.mxu0 0
    %1314 = vmatpush1.bf16.msra.mxu0 0
    %1315 = vmatprep.subr.bf16.mxu0 0
    %1316 = vmatpush1.bf16.msra.mxu0 0
    %1317 = vmatprep.subr.bf16.mxu0 0
    %1318 = vmatpush1.bf16.msra.mxu0 0
    %1319 = vmatprep.subr.bf16.mxu0 0
    %1320 = vmatpush1.bf16.msra.mxu0 %v1301
    %1321 = vmatprep.subr.bf16.mxu0 0
    %1322 = vmatpush1.bf16.msra.mxu0 %v1300
    %1323 = vmatprep.subr.bf16.mxu0 0
    %1324 = vmatpush2.bf16.msra.mxu0 0
    %1325 = vmatprep.subr.bf16.mxu0 0
    %1326 = vmatpush2.bf16.msra.mxu0 0
    %1327 = vmatprep.subr.bf16.mxu0 0
    %1328 = vmatpush2.bf16.msra.mxu0 0
    %1329 = vmatprep.subr.bf16.mxu0 0
    %1330 = vmatpush2.bf16.msra.mxu0 0
    %1331 = vmatprep.subr.bf16.mxu0 0
    %1332 = vmatpush2.bf16.msra.mxu0 0
    %1333 = vmatprep.subr.bf16.mxu0 0
    %1334 = vmatpush2.bf16.msra.mxu0 0
    %1335 = vmatprep.subr.bf16.mxu0 0
    %1336 = vmatpush2.bf16.msra.mxu0 0
    %1337 = vmatprep.subr.bf16.mxu0 0
    %1338 = vmatpush2.bf16.msra.mxu0 0
    %1339 = vmatprep.mubr.bf16.mxu0 0
    %1340 = vmatmul.mubr.bf16.gmra.mxu0 %v1305
    %v1341 = vpop.f32.mrf.mxu0
    %v1342 = vadd.f32 0.0, %v1341
    %v1343 = vpop.f32.mrf.mxu0
    %v1344 = vpop.f32.mrf.mxu0
    %v1345 = vpop.f32.mrf.mxu0
    %1346 = vdwg.mxu0
    %v1347 = vld [vmem:[#allocation28] sm:$0xf]
    %v1348 = vld [vmem:[#allocation28 + $0x4] sm:$0xf]
    %v1349 = vld [vmem:[#allocation28 + $0x8] sm:$0xf]
    %v1350 = vld [vmem:[#allocation28 + $0xc] sm:$0xf]
    %v1355 = vunpack.c.l.b16 %v1347
    %v1356 = vunpack.c.l.b16 %v1348
    %v1357 = vunpack.c.l.b16 %v1349
    %v1358 = vunpack.c.l.b16 %v1350
    %v1359 = vpack.c.b16 %v1356, %v1355
    %v1360 = vpack.c.b16 %v1358, %v1357
    %1363 = vmatprep.subr.bf16.mxu0 0
    %1364 = vmatpush1.bf16.msra.mxu0 0
    %1365 = vmatprep.subr.bf16.mxu0 0
    %1366 = vmatpush1.bf16.msra.mxu0 0
    %1367 = vmatprep.subr.bf16.mxu0 0
    %1368 = vmatpush1.bf16.msra.mxu0 0
    %1369 = vmatprep.subr.bf16.mxu0 0
    %1370 = vmatpush1.bf16.msra.mxu0 0
    %1371 = vmatprep.subr.bf16.mxu0 0
    %1372 = vmatpush1.bf16.msra.mxu0 0
    %1373 = vmatprep.subr.bf16.mxu0 0
    %1374 = vmatpush1.bf16.msra.mxu0 0
    %1375 = vmatprep.subr.bf16.mxu0 0
    %1376 = vmatpush1.bf16.msra.mxu0 %v1360
    %1377 = vmatprep.subr.bf16.mxu0 0
    %1378 = vmatpush1.bf16.msra.mxu0 %v1359
    %1379 = vmatprep.subr.bf16.mxu0 0
    %1380 = vmatpush2.bf16.msra.mxu0 0
    %1381 = vmatprep.subr.bf16.mxu0 0
    %1382 = vmatpush2.bf16.msra.mxu0 0
    %1383 = vmatprep.subr.bf16.mxu0 0
    %1384 = vmatpush2.bf16.msra.mxu0 0
    %1385 = vmatprep.subr.bf16.mxu0 0
    %1386 = vmatpush2.bf16.msra.mxu0 0
    %1387 = vmatprep.subr.bf16.mxu0 0
    %1388 = vmatpush2.bf16.msra.mxu0 0
    %1389 = vmatprep.subr.bf16.mxu0 0
    %1390 = vmatpush2.bf16.msra.mxu0 0
    %1391 = vmatprep.subr.bf16.mxu0 0
    %1392 = vmatpush2.bf16.msra.mxu0 0
    %1393 = vmatprep.subr.bf16.mxu0 0
    %1394 = vmatpush2.bf16.msra.mxu0 0
    %1395 = vmatprep.mubr.bf16.mxu0 0
    %1396 = vmatmul.mubr.bf16.gmra.mxu0 %v1305
    %v1397 = vpop.f32.mrf.mxu0
    %v1398 = vadd.f32 0.0, %v1397
    %v1399 = vpop.f32.mrf.mxu0
    %v1400 = vpop.f32.mrf.mxu0
    %v1401 = vpop.f32.mrf.mxu0
    %1402 = vdwg.mxu0
    %v1403 = vld [vmem:[#allocation30] sm:$0xf]
    %v1404 = vld [vmem:[#allocation30 + $0x4] sm:$0xf]
    %v1405 = vld [vmem:[#allocation30 + $0x8] sm:$0xf]
    %v1406 = vld [vmem:[#allocation30 + $0xc] sm:$0xf]
    %v1411 = vunpack.c.l.b16 %v1403
    %v1412 = vunpack.c.l.b16 %v1404
    %v1413 = vunpack.c.l.b16 %v1405
    %v1414 = vunpack.c.l.b16 %v1406
    %v1415 = vpack.c.b16 %v1412, %v1411
    %v1416 = vpack.c.b16 %v1414, %v1413
    %1419 = vmatprep.subr.bf16.mxu0 0
    %1420 = vmatpush1.bf16.msra.mxu0 0
    %1421 = vmatprep.subr.bf16.mxu0 0
    %1422 = vmatpush1.bf16.msra.mxu0 0
    %1423 = vmatprep.subr.bf16.mxu0 0
    %1424 = vmatpush1.bf16.msra.mxu0 0
    %1425 = vmatprep.subr.bf16.mxu0 0
    %1426 = vmatpush1.bf16.msra.mxu0 0
    %1427 = vmatprep.subr.bf16.mxu0 0
    %1428 = vmatpush1.bf16.msra.mxu0 0
    %1429 = vmatprep.subr.bf16.mxu0 0
    %1430 = vmatpush1.bf16.msra.mxu0 0
    %1431 = vmatprep.subr.bf16.mxu0 0
    %1432 = vmatpush1.bf16.msra.mxu0 %v1416
    %1433 = vmatprep.subr.bf16.mxu0 0
    %1434 = vmatpush1.bf16.msra.mxu0 %v1415
    %1435 = vmatprep.subr.bf16.mxu0 0
    %1436 = vmatpush2.bf16.msra.mxu0 0
    %1437 = vmatprep.subr.bf16.mxu0 0
    %1438 = vmatpush2.bf16.msra.mxu0 0
    %1439 = vmatprep.subr.bf16.mxu0 0
    %1440 = vmatpush2.bf16.msra.mxu0 0
    %1441 = vmatprep.subr.bf16.mxu0 0
    %1442 = vmatpush2.bf16.msra.mxu0 0
    %1443 = vmatprep.subr.bf16.mxu0 0
    %1444 = vmatpush2.bf16.msra.mxu0 0
    %1445 = vmatprep.subr.bf16.mxu0 0
    %1446 = vmatpush2.bf16.msra.mxu0 0
    %1447 = vmatprep.subr.bf16.mxu0 0
    %1448 = vmatpush2.bf16.msra.mxu0 0
    %1449 = vmatprep.subr.bf16.mxu0 0
    %1450 = vmatpush2.bf16.msra.mxu0 0
    %1451 = vmatprep.mubr.bf16.mxu0 0
    %1452 = vmatmul.mubr.bf16.gmra.mxu0 %v1305
    %v1453 = vpop.f32.mrf.mxu0
    %v1454 = vadd.f32 %v1209, %v1453
    %v1455 = vpop.f32.mrf.mxu0
    %v1456 = vpop.f32.mrf.mxu0
    %v1457 = vpop.f32.mrf.mxu0
    %1458 = vdwg.mxu0
    %v1459 = vld [vmem:[#allocation4 + $0x2] sm:$0x3]
    %v1460 = vadd.f32 %v1459, %v1342
    %v1461 = vxor.u32 %v1460, 2147483648
    %v1462 = vmul.f32 %v1461, 1.442695
    %v1463 = vpow.pop %v1462
    %v1464 = vadd.f32 %v1463, 1.0
    %v1465 = vrcp.pop %v1464
    %v1466 = vmul.f32 1.0, %v1465
    %v1467 = vld [vmem:[#allocation5 + $0x2] sm:$0x3]
    %v1468 = vadd.f32 %v1467, %v1398
    %v1469 = vxor.u32 %v1468, 2147483648
    %v1470 = vmul.f32 %v1469, 1.442695
    %v1471 = vpow.pop %v1470
    %v1472 = vadd.f32 %v1471, 1.0
    %v1473 = vrcp.pop %v1472
    %v1474 = vmul.f32 1.0, %v1473
    %v1475 = vld [vmem:[#allocation6 + $0x2] sm:$0x3]
    %v1476 = vmul.f32 %v1466, %v1454
    %v1477 = vadd.f32 %v1475, %v1476
    %v1478 = vtanh.pop %v1477
    %v1479 = vsub.f32 %v1285, %v1478
    %v1480 = vmul.f32 %v1474, %v1479
    %v1481 = vadd.f32 %v1480, %v1478
    %1482 = vst.msk [vmem:[#allocation3 + $0x2] sm:$0x3] %vm863, %v1481
    %v1483 = vpack.c.bf16 %v1481, %v1481
    %v1484 = vld [vmem:[#allocation27] sm:$0xf]
    %v1485 = vld [vmem:[#allocation27 + $0x4] sm:$0xf]
    %v1486 = vld [vmem:[#allocation27 + $0x8] sm:$0xf]
    %v1487 = vld [vmem:[#allocation27 + $0xc] sm:$0xf]
    %v1492 = vunpack.c.l.b16 %v1484
    %v1493 = vunpack.c.l.b16 %v1485
    %v1494 = vunpack.c.l.b16 %v1486
    %v1495 = vunpack.c.l.b16 %v1487
    %v1496 = vpack.c.b16 %v1493, %v1492
    %v1497 = vpack.c.b16 %v1495, %v1494
    %v1501 = vsel %vm751, %v1483, 0
    %1503 = vmatprep.subr.bf16.mxu0 0
    %1504 = vmatpush1.bf16.msra.mxu0 0
    %1505 = vmatprep.subr.bf16.mxu0 0
    %1506 = vmatpush1.bf16.msra.mxu0 0
    %1507 = vmatprep.subr.bf16.mxu0 0
    %1508 = vmatpush1.bf16.msra.mxu0 0
    %1509 = vmatprep.subr.bf16.mxu0 0
    %1510 = vmatpush1.bf16.msra.mxu0 0
    %1511 = vmatprep.subr.bf16.mxu0 0
    %1512 = vmatpush1.bf16.msra.mxu0 0
    %1513 = vmatprep.subr.bf16.mxu0 0
    %1514 = vmatpush1.bf16.msra.mxu0 0
    %1515 = vmatprep.subr.bf16.mxu0 0
    %1516 = vmatpush1.bf16.msra.mxu0 %v1497
    %1517 = vmatprep.subr.bf16.mxu0 0
    %1518 = vmatpush1.bf16.msra.mxu0 %v1496
    %1519 = vmatprep.subr.bf16.mxu0 0
    %1520 = vmatpush2.bf16.msra.mxu0 0
    %1521 = vmatprep.subr.bf16.mxu0 0
    %1522 = vmatpush2.bf16.msra.mxu0 0
    %1523 = vmatprep.subr.bf16.mxu0 0
    %1524 = vmatpush2.bf16.msra.mxu0 0
    %1525 = vmatprep.subr.bf16.mxu0 0
    %1526 = vmatpush2.bf16.msra.mxu0 0
    %1527 = vmatprep.subr.bf16.mxu0 0
    %1528 = vmatpush2.bf16.msra.mxu0 0
    %1529 = vmatprep.subr.bf16.mxu0 0
    %1530 = vmatpush2.bf16.msra.mxu0 0
    %1531 = vmatprep.subr.bf16.mxu0 0
    %1532 = vmatpush2.bf16.msra.mxu0 0
    %1533 = vmatprep.subr.bf16.mxu0 0
    %1534 = vmatpush2.bf16.msra.mxu0 0
    %1535 = vmatprep.mubr.bf16.mxu0 0
    %1536 = vmatmul.mubr.bf16.gmra.mxu0 %v1501
    %v1537 = vpop.f32.mrf.mxu0
    %v1538 = vadd.f32 0.0, %v1537
    %v1539 = vpop.f32.mrf.mxu0
    %v1540 = vpop.f32.mrf.mxu0
    %v1541 = vpop.f32.mrf.mxu0
    %1542 = vdwg.mxu0
    %v1543 = vld [vmem:[#allocation28] sm:$0xf]
    %v1544 = vld [vmem:[#allocation28 + $0x4] sm:$0xf]
    %v1545 = vld [vmem:[#allocation28 + $0x8] sm:$0xf]
    %v1546 = vld [vmem:[#allocation28 + $0xc] sm:$0xf]
    %v1551 = vunpack.c.l.b16 %v1543
    %v1552 = vunpack.c.l.b16 %v1544
    %v1553 = vunpack.c.l.b16 %v1545
    %v1554 = vunpack.c.l.b16 %v1546
    %v1555 = vpack.c.b16 %v1552, %v1551
    %v1556 = vpack.c.b16 %v1554, %v1553
    %1559 = vmatprep.subr.bf16.mxu0 0
    %1560 = vmatpush1.bf16.msra.mxu0 0
    %1561 = vmatprep.subr.bf16.mxu0 0
    %1562 = vmatpush1.bf16.msra.mxu0 0
    %1563 = vmatprep.subr.bf16.mxu0 0
    %1564 = vmatpush1.bf16.msra.mxu0 0
    %1565 = vmatprep.subr.bf16.mxu0 0
    %1566 = vmatpush1.bf16.msra.mxu0 0
    %1567 = vmatprep.subr.bf16.mxu0 0
    %1568 = vmatpush1.bf16.msra.mxu0 0
    %1569 = vmatprep.subr.bf16.mxu0 0
    %1570 = vmatpush1.bf16.msra.mxu0 0
    %1571 = vmatprep.subr.bf16.mxu0 0
    %1572 = vmatpush1.bf16.msra.mxu0 %v1556
    %1573 = vmatprep.subr.bf16.mxu0 0
    %1574 = vmatpush1.bf16.msra.mxu0 %v1555
    %1575 = vmatprep.subr.bf16.mxu0 0
    %1576 = vmatpush2.bf16.msra.mxu0 0
    %1577 = vmatprep.subr.bf16.mxu0 0
    %1578 = vmatpush2.bf16.msra.mxu0 0
    %1579 = vmatprep.subr.bf16.mxu0 0
    %1580 = vmatpush2.bf16.msra.mxu0 0
    %1581 = vmatprep.subr.bf16.mxu0 0
    %1582 = vmatpush2.bf16.msra.mxu0 0
    %1583 = vmatprep.subr.bf16.mxu0 0
    %1584 = vmatpush2.bf16.msra.mxu0 0
    %1585 = vmatprep.subr.bf16.mxu0 0
    %1586 = vmatpush2.bf16.msra.mxu0 0
    %1587 = vmatprep.subr.bf16.mxu0 0
    %1588 = vmatpush2.bf16.msra.mxu0 0
    %1589 = vmatprep.subr.bf16.mxu0 0
    %1590 = vmatpush2.bf16.msra.mxu0 0
    %1591 = vmatprep.mubr.bf16.mxu0 0
    %1592 = vmatmul.mubr.bf16.gmra.mxu0 %v1501
    %v1593 = vpop.f32.mrf.mxu0
    %v1594 = vadd.f32 0.0, %v1593
    %v1595 = vpop.f32.mrf.mxu0
    %v1596 = vpop.f32.mrf.mxu0
    %v1597 = vpop.f32.mrf.mxu0
    %1598 = vdwg.mxu0
    %v1599 = vld [vmem:[#allocation30] sm:$0xf]
    %v1600 = vld [vmem:[#allocation30 + $0x4] sm:$0xf]
    %v1601 = vld [vmem:[#allocation30 + $0x8] sm:$0xf]
    %v1602 = vld [vmem:[#allocation30 + $0xc] sm:$0xf]
    %v1607 = vunpack.c.l.b16 %v1599
    %v1608 = vunpack.c.l.b16 %v1600
    %v1609 = vunpack.c.l.b16 %v1601
    %v1610 = vunpack.c.l.b16 %v1602
    %v1611 = vpack.c.b16 %v1608, %v1607
    %v1612 = vpack.c.b16 %v1610, %v1609
    %1615 = vmatprep.subr.bf16.mxu0 0
    %1616 = vmatpush1.bf16.msra.mxu0 0
    %1617 = vmatprep.subr.bf16.mxu0 0
    %1618 = vmatpush1.bf16.msra.mxu0 0
    %1619 = vmatprep.subr.bf16.mxu0 0
    %1620 = vmatpush1.bf16.msra.mxu0 0
    %1621 = vmatprep.subr.bf16.mxu0 0
    %1622 = vmatpush1.bf16.msra.mxu0 0
    %1623 = vmatprep.subr.bf16.mxu0 0
    %1624 = vmatpush1.bf16.msra.mxu0 0
    %1625 = vmatprep.subr.bf16.mxu0 0
    %1626 = vmatpush1.bf16.msra.mxu0 0
    %1627 = vmatprep.subr.bf16.mxu0 0
    %1628 = vmatpush1.bf16.msra.mxu0 %v1612
    %1629 = vmatprep.subr.bf16.mxu0 0
    %1630 = vmatpush1.bf16.msra.mxu0 %v1611
    %1631 = vmatprep.subr.bf16.mxu0 0
    %1632 = vmatpush2.bf16.msra.mxu0 0
    %1633 = vmatprep.subr.bf16.mxu0 0
    %1634 = vmatpush2.bf16.msra.mxu0 0
    %1635 = vmatprep.subr.bf16.mxu0 0
    %1636 = vmatpush2.bf16.msra.mxu0 0
    %1637 = vmatprep.subr.bf16.mxu0 0
    %1638 = vmatpush2.bf16.msra.mxu0 0
    %1639 = vmatprep.subr.bf16.mxu0 0
    %1640 = vmatpush2.bf16.msra.mxu0 0
    %1641 = vmatprep.subr.bf16.mxu0 0
    %1642 = vmatpush2.bf16.msra.mxu0 0
    %1643 = vmatprep.subr.bf16.mxu0 0
    %1644 = vmatpush2.bf16.msra.mxu0 0
    %1645 = vmatprep.subr.bf16.mxu0 0
    %1646 = vmatpush2.bf16.msra.mxu0 0
    %1647 = vmatprep.mubr.bf16.mxu0 0
    %1648 = vmatmul.mubr.bf16.gmra.mxu0 %v1501
    %v1649 = vpop.f32.mrf.mxu0
    %v1650 = vadd.f32 %v1209, %v1649
    %v1651 = vpop.f32.mrf.mxu0
    %v1652 = vpop.f32.mrf.mxu0
    %v1653 = vpop.f32.mrf.mxu0
    %1654 = vdwg.mxu0
    %v1655 = vld [vmem:[#allocation4 + $0x4] sm:$0x3]
    %v1656 = vadd.f32 %v1655, %v1538
    %v1657 = vxor.u32 %v1656, 2147483648
    %v1658 = vmul.f32 %v1657, 1.442695
    %v1659 = vpow.pop %v1658
    %v1660 = vadd.f32 %v1659, 1.0
    %v1661 = vrcp.pop %v1660
    %v1662 = vmul.f32 1.0, %v1661
    %v1663 = vld [vmem:[#allocation5 + $0x4] sm:$0x3]
    %v1664 = vadd.f32 %v1663, %v1594
    %v1665 = vxor.u32 %v1664, 2147483648
    %v1666 = vmul.f32 %v1665, 1.442695
    %v1667 = vpow.pop %v1666
    %v1668 = vadd.f32 %v1667, 1.0
    %v1669 = vrcp.pop %v1668
    %v1670 = vmul.f32 1.0, %v1669
    %v1671 = vld [vmem:[#allocation6 + $0x4] sm:$0x3]
    %v1672 = vmul.f32 %v1662, %v1650
    %v1673 = vadd.f32 %v1671, %v1672
    %v1674 = vtanh.pop %v1673
    %v1675 = vsub.f32 %v1481, %v1674
    %v1676 = vmul.f32 %v1670, %v1675
    %v1677 = vadd.f32 %v1676, %v1674
    %1678 = vst.msk [vmem:[#allocation3 + $0x4] sm:$0x3] %vm863, %v1677
    %v1679 = vpack.c.bf16 %v1677, %v1677
    %v1680 = vld [vmem:[#allocation27] sm:$0xf]
    %v1681 = vld [vmem:[#allocation27 + $0x4] sm:$0xf]
    %v1682 = vld [vmem:[#allocation27 + $0x8] sm:$0xf]
    %v1683 = vld [vmem:[#allocation27 + $0xc] sm:$0xf]
    %v1688 = vunpack.c.l.b16 %v1680
    %v1689 = vunpack.c.l.b16 %v1681
    %v1690 = vunpack.c.l.b16 %v1682
    %v1691 = vunpack.c.l.b16 %v1683
    %v1692 = vpack.c.b16 %v1689, %v1688
    %v1693 = vpack.c.b16 %v1691, %v1690
    %v1697 = vsel %vm751, %v1679, 0
    %1699 = vmatprep.subr.bf16.mxu0 0
    %1700 = vmatpush1.bf16.msra.mxu0 0
    %1701 = vmatprep.subr.bf16.mxu0 0
    %1702 = vmatpush1.bf16.msra.mxu0 0
    %1703 = vmatprep.subr.bf16.mxu0 0
    %1704 = vmatpush1.bf16.msra.mxu0 0
    %1705 = vmatprep.subr.bf16.mxu0 0
    %1706 = vmatpush1.bf16.msra.mxu0 0
    %1707 = vmatprep.subr.bf16.mxu0 0
    %1708 = vmatpush1.bf16.msra.mxu0 0
    %1709 = vmatprep.subr.bf16.mxu0 0
    %1710 = vmatpush1.bf16.msra.mxu0 0
    %1711 = vmatprep.subr.bf16.mxu0 0
    %1712 = vmatpush1.bf16.msra.mxu0 %v1693
    %1713 = vmatprep.subr.bf16.mxu0 0
    %1714 = vmatpush1.bf16.msra.mxu0 %v1692
    %1715 = vmatprep.subr.bf16.mxu0 0
    %1716 = vmatpush2.bf16.msra.mxu0 0
    %1717 = vmatprep.subr.bf16.mxu0 0
    %1718 = vmatpush2.bf16.msra.mxu0 0
    %1719 = vmatprep.subr.bf16.mxu0 0
    %1720 = vmatpush2.bf16.msra.mxu0 0
    %1721 = vmatprep.subr.bf16.mxu0 0
    %1722 = vmatpush2.bf16.msra.mxu0 0
    %1723 = vmatprep.subr.bf16.mxu0 0
    %1724 = vmatpush2.bf16.msra.mxu0 0
    %1725 = vmatprep.subr.bf16.mxu0 0
    %1726 = vmatpush2.bf16.msra.mxu0 0
    %1727 = vmatprep.subr.bf16.mxu0 0
    %1728 = vmatpush2.bf16.msra.mxu0 0
    %1729 = vmatprep.subr.bf16.mxu0 0
    %1730 = vmatpush2.bf16.msra.mxu0 0
    %1731 = vmatprep.mubr.bf16.mxu0 0
    %1732 = vmatmul.mubr.bf16.gmra.mxu0 %v1697
    %v1733 = vpop.f32.mrf.mxu0
    %v1734 = vadd.f32 0.0, %v1733
    %v1735 = vpop.f32.mrf.mxu0
    %v1736 = vpop.f32.mrf.mxu0
    %v1737 = vpop.f32.mrf.mxu0
    %1738 = vdwg.mxu0
    %v1739 = vld [vmem:[#allocation28] sm:$0xf]
    %v1740 = vld [vmem:[#allocation28 + $0x4] sm:$0xf]
    %v1741 = vld [vmem:[#allocation28 + $0x8] sm:$0xf]
    %v1742 = vld [vmem:[#allocation28 + $0xc] sm:$0xf]
    %v1747 = vunpack.c.l.b16 %v1739
    %v1748 = vunpack.c.l.b16 %v1740
    %v1749 = vunpack.c.l.b16 %v1741
    %v1750 = vunpack.c.l.b16 %v1742
    %v1751 = vpack.c.b16 %v1748, %v1747
    %v1752 = vpack.c.b16 %v1750, %v1749
    %1755 = vmatprep.subr.bf16.mxu0 0
    %1756 = vmatpush1.bf16.msra.mxu0 0
    %1757 = vmatprep.subr.bf16.mxu0 0
    %1758 = vmatpush1.bf16.msra.mxu0 0
    %1759 = vmatprep.subr.bf16.mxu0 0
    %1760 = vmatpush1.bf16.msra.mxu0 0
    %1761 = vmatprep.subr.bf16.mxu0 0
    %1762 = vmatpush1.bf16.msra.mxu0 0
    %1763 = vmatprep.subr.bf16.mxu0 0
    %1764 = vmatpush1.bf16.msra.mxu0 0
    %1765 = vmatprep.subr.bf16.mxu0 0
    %1766 = vmatpush1.bf16.msra.mxu0 0
    %1767 = vmatprep.subr.bf16.mxu0 0
    %1768 = vmatpush1.bf16.msra.mxu0 %v1752
    %1769 = vmatprep.subr.bf16.mxu0 0
    %1770 = vmatpush1.bf16.msra.mxu0 %v1751
    %1771 = vmatprep.subr.bf16.mxu0 0
    %1772 = vmatpush2.bf16.msra.mxu0 0
    %1773 = vmatprep.subr.bf16.mxu0 0
    %1774 = vmatpush2.bf16.msra.mxu0 0
    %1775 = vmatprep.subr.bf16.mxu0 0
    %1776 = vmatpush2.bf16.msra.mxu0 0
    %1777 = vmatprep.subr.bf16.mxu0 0
    %1778 = vmatpush2.bf16.msra.mxu0 0
    %1779 = vmatprep.subr.bf16.mxu0 0
    %1780 = vmatpush2.bf16.msra.mxu0 0
    %1781 = vmatprep.subr.bf16.mxu0 0
    %1782 = vmatpush2.bf16.msra.mxu0 0
    %1783 = vmatprep.subr.bf16.mxu0 0
    %1784 = vmatpush2.bf16.msra.mxu0 0
    %1785 = vmatprep.subr.bf16.mxu0 0
    %1786 = vmatpush2.bf16.msra.mxu0 0
    %1787 = vmatprep.mubr.bf16.mxu0 0
    %1788 = vmatmul.mubr.bf16.gmra.mxu0 %v1697
    %v1789 = vpop.f32.mrf.mxu0
    %v1790 = vadd.f32 0.0, %v1789
    %v1791 = vpop.f32.mrf.mxu0
    %v1792 = vpop.f32.mrf.mxu0
    %v1793 = vpop.f32.mrf.mxu0
    %1794 = vdwg.mxu0
    %v1795 = vld [vmem:[#allocation30] sm:$0xf]
    %v1796 = vld [vmem:[#allocation30 + $0x4] sm:$0xf]
    %v1797 = vld [vmem:[#allocation30 + $0x8] sm:$0xf]
    %v1798 = vld [vmem:[#allocation30 + $0xc] sm:$0xf]
    %v1803 = vunpack.c.l.b16 %v1795
    %v1804 = vunpack.c.l.b16 %v1796
    %v1805 = vunpack.c.l.b16 %v1797
    %v1806 = vunpack.c.l.b16 %v1798
    %v1807 = vpack.c.b16 %v1804, %v1803
    %v1808 = vpack.c.b16 %v1806, %v1805
    %1811 = vmatprep.subr.bf16.mxu0 0
    %1812 = vmatpush1.bf16.msra.mxu0 0
    %1813 = vmatprep.subr.bf16.mxu0 0
    %1814 = vmatpush1.bf16.msra.mxu0 0
    %1815 = vmatprep.subr.bf16.mxu0 0
    %1816 = vmatpush1.bf16.msra.mxu0 0
    %1817 = vmatprep.subr.bf16.mxu0 0
    %1818 = vmatpush1.bf16.msra.mxu0 0
    %1819 = vmatprep.subr.bf16.mxu0 0
    %1820 = vmatpush1.bf16.msra.mxu0 0
    %1821 = vmatprep.subr.bf16.mxu0 0
    %1822 = vmatpush1.bf16.msra.mxu0 0
    %1823 = vmatprep.subr.bf16.mxu0 0
    %1824 = vmatpush1.bf16.msra.mxu0 %v1808
    %1825 = vmatprep.subr.bf16.mxu0 0
    %1826 = vmatpush1.bf16.msra.mxu0 %v1807
    %1827 = vmatprep.subr.bf16.mxu0 0
    %1828 = vmatpush2.bf16.msra.mxu0 0
    %1829 = vmatprep.subr.bf16.mxu0 0
    %1830 = vmatpush2.bf16.msra.mxu0 0
    %1831 = vmatprep.subr.bf16.mxu0 0
    %1832 = vmatpush2.bf16.msra.mxu0 0
    %1833 = vmatprep.subr.bf16.mxu0 0
    %1834 = vmatpush2.bf16.msra.mxu0 0
    %1835 = vmatprep.subr.bf16.mxu0 0
    %1836 = vmatpush2.bf16.msra.mxu0 0
    %1837 = vmatprep.subr.bf16.mxu0 0
    %1838 = vmatpush2.bf16.msra.mxu0 0
    %1839 = vmatprep.subr.bf16.mxu0 0
    %1840 = vmatpush2.bf16.msra.mxu0 0
    %1841 = vmatprep.subr.bf16.mxu0 0
    %1842 = vmatpush2.bf16.msra.mxu0 0
    %1843 = vmatprep.mubr.bf16.mxu0 0
    %1844 = vmatmul.mubr.bf16.gmra.mxu0 %v1697
    %v1845 = vpop.f32.mrf.mxu0
    %v1846 = vadd.f32 %v1209, %v1845
    %v1847 = vpop.f32.mrf.mxu0
    %v1848 = vpop.f32.mrf.mxu0
    %v1849 = vpop.f32.mrf.mxu0
    %1850 = vdwg.mxu0
    %v1851 = vld [vmem:[#allocation4 + $0x6] sm:$0x3]
    %v1852 = vadd.f32 %v1851, %v1734
    %v1853 = vxor.u32 %v1852, 2147483648
    %v1854 = vmul.f32 %v1853, 1.442695
    %v1855 = vpow.pop %v1854
    %v1856 = vadd.f32 %v1855, 1.0
    %v1857 = vrcp.pop %v1856
    %v1858 = vmul.f32 1.0, %v1857
    %v1859 = vld [vmem:[#allocation5 + $0x6] sm:$0x3]
    %v1860 = vadd.f32 %v1859, %v1790
    %v1861 = vxor.u32 %v1860, 2147483648
    %v1862 = vmul.f32 %v1861, 1.442695
    %v1863 = vpow.pop %v1862
    %v1864 = vadd.f32 %v1863, 1.0
    %v1865 = vrcp.pop %v1864
    %v1866 = vmul.f32 1.0, %v1865
    %v1867 = vld [vmem:[#allocation6 + $0x6] sm:$0x3]
    %v1868 = vmul.f32 %v1858, %v1846
    %v1869 = vadd.f32 %v1867, %v1868
    %v1870 = vtanh.pop %v1869
    %v1871 = vsub.f32 %v1677, %v1870
    %v1872 = vmul.f32 %v1866, %v1871
    %v1873 = vadd.f32 %v1872, %v1870
    %1874 = vst.msk [vmem:[#allocation3 + $0x6] sm:$0x3] %vm863, %v1873
    %v1875 = vpack.c.bf16 %v1873, %v1873
    %v1876 = vld [vmem:[#allocation27] sm:$0xf]
    %v1877 = vld [vmem:[#allocation27 + $0x4] sm:$0xf]
    %v1878 = vld [vmem:[#allocation27 + $0x8] sm:$0xf]
    %v1879 = vld [vmem:[#allocation27 + $0xc] sm:$0xf]
    %v1884 = vunpack.c.l.b16 %v1876
    %v1885 = vunpack.c.l.b16 %v1877
    %v1886 = vunpack.c.l.b16 %v1878
    %v1887 = vunpack.c.l.b16 %v1879
    %v1888 = vpack.c.b16 %v1885, %v1884
    %v1889 = vpack.c.b16 %v1887, %v1886
    %v1893 = vsel %vm751, %v1875, 0
    %1895 = vmatprep.subr.bf16.mxu0 0
    %1896 = vmatpush1.bf16.msra.mxu0 0
    %1897 = vmatprep.subr.bf16.mxu0 0
    %1898 = vmatpush1.bf16.msra.mxu0 0
    %1899 = vmatprep.subr.bf16.mxu0 0
    %1900 = vmatpush1.bf16.msra.mxu0 0
    %1901 = vmatprep.subr.bf16.mxu0 0
    %1902 = vmatpush1.bf16.msra.mxu0 0
    %1903 = vmatprep.subr.bf16.mxu0 0
    %1904 = vmatpush1.bf16.msra.mxu0 0
    %1905 = vmatprep.subr.bf16.mxu0 0
    %1906 = vmatpush1.bf16.msra.mxu0 0
    %1907 = vmatprep.subr.bf16.mxu0 0
    %1908 = vmatpush1.bf16.msra.mxu0 %v1889
    %1909 = vmatprep.subr.bf16.mxu0 0
    %1910 = vmatpush1.bf16.msra.mxu0 %v1888
    %1911 = vmatprep.subr.bf16.mxu0 0
    %1912 = vmatpush2.bf16.msra.mxu0 0
    %1913 = vmatprep.subr.bf16.mxu0 0
    %1914 = vmatpush2.bf16.msra.mxu0 0
    %1915 = vmatprep.subr.bf16.mxu0 0
    %1916 = vmatpush2.bf16.msra.mxu0 0
    %1917 = vmatprep.subr.bf16.mxu0 0
    %1918 = vmatpush2.bf16.msra.mxu0 0
    %1919 = vmatprep.subr.bf16.mxu0 0
    %1920 = vmatpush2.bf16.msra.mxu0 0
    %1921 = vmatprep.subr.bf16.mxu0 0
    %1922 = vmatpush2.bf16.msra.mxu0 0
    %1923 = vmatprep.subr.bf16.mxu0 0
    %1924 = vmatpush2.bf16.msra.mxu0 0
    %1925 = vmatprep.subr.bf16.mxu0 0
    %1926 = vmatpush2.bf16.msra.mxu0 0
    %1927 = vmatprep.mubr.bf16.mxu0 0
    %1928 = vmatmul.mubr.bf16.gmra.mxu0 %v1893
    %v1929 = vpop.f32.mrf.mxu0
    %v1930 = vadd.f32 0.0, %v1929
    %v1931 = vpop.f32.mrf.mxu0
    %v1932 = vpop.f32.mrf.mxu0
    %v1933 = vpop.f32.mrf.mxu0
    %1934 = vdwg.mxu0
    %v1935 = vld [vmem:[#allocation28] sm:$0xf]
    %v1936 = vld [vmem:[#allocation28 + $0x4] sm:$0xf]
    %v1937 = vld [vmem:[#allocation28 + $0x8] sm:$0xf]
    %v1938 = vld [vmem:[#allocation28 + $0xc] sm:$0xf]
    %v1943 = vunpack.c.l.b16 %v1935
    %v1944 = vunpack.c.l.b16 %v1936
    %v1945 = vunpack.c.l.b16 %v1937
    %v1946 = vunpack.c.l.b16 %v1938
    %v1947 = vpack.c.b16 %v1944, %v1943
    %v1948 = vpack.c.b16 %v1946, %v1945
    %1951 = vmatprep.subr.bf16.mxu0 0
    %1952 = vmatpush1.bf16.msra.mxu0 0
    %1953 = vmatprep.subr.bf16.mxu0 0
    %1954 = vmatpush1.bf16.msra.mxu0 0
    %1955 = vmatprep.subr.bf16.mxu0 0
    %1956 = vmatpush1.bf16.msra.mxu0 0
    %1957 = vmatprep.subr.bf16.mxu0 0
    %1958 = vmatpush1.bf16.msra.mxu0 0
    %1959 = vmatprep.subr.bf16.mxu0 0
    %1960 = vmatpush1.bf16.msra.mxu0 0
    %1961 = vmatprep.subr.bf16.mxu0 0
    %1962 = vmatpush1.bf16.msra.mxu0 0
    %1963 = vmatprep.subr.bf16.mxu0 0
    %1964 = vmatpush1.bf16.msra.mxu0 %v1948
    %1965 = vmatprep.subr.bf16.mxu0 0
    %1966 = vmatpush1.bf16.msra.mxu0 %v1947
    %1967 = vmatprep.subr.bf16.mxu0 0
    %1968 = vmatpush2.bf16.msra.mxu0 0
    %1969 = vmatprep.subr.bf16.mxu0 0
    %1970 = vmatpush2.bf16.msra.mxu0 0
    %1971 = vmatprep.subr.bf16.mxu0 0
    %1972 = vmatpush2.bf16.msra.mxu0 0
    %1973 = vmatprep.subr.bf16.mxu0 0
    %1974 = vmatpush2.bf16.msra.mxu0 0
    %1975 = vmatprep.subr.bf16.mxu0 0
    %1976 = vmatpush2.bf16.msra.mxu0 0
    %1977 = vmatprep.subr.bf16.mxu0 0
    %1978 = vmatpush2.bf16.msra.mxu0 0
    %1979 = vmatprep.subr.bf16.mxu0 0
    %1980 = vmatpush2.bf16.msra.mxu0 0
    %1981 = vmatprep.subr.bf16.mxu0 0
    %1982 = vmatpush2.bf16.msra.mxu0 0
    %1983 = vmatprep.mubr.bf16.mxu0 0
    %1984 = vmatmul.mubr.bf16.gmra.mxu0 %v1893
    %v1985 = vpop.f32.mrf.mxu0
    %v1986 = vadd.f32 0.0, %v1985
    %v1987 = vpop.f32.mrf.mxu0
    %v1988 = vpop.f32.mrf.mxu0
    %v1989 = vpop.f32.mrf.mxu0
    %1990 = vdwg.mxu0
    %v1991 = vld [vmem:[#allocation30] sm:$0xf]
    %v1992 = vld [vmem:[#allocation30 + $0x4] sm:$0xf]
    %v1993 = vld [vmem:[#allocation30 + $0x8] sm:$0xf]
    %v1994 = vld [vmem:[#allocation30 + $0xc] sm:$0xf]
    %v1999 = vunpack.c.l.b16 %v1991
    %v2000 = vunpack.c.l.b16 %v1992
    %v2001 = vunpack.c.l.b16 %v1993
    %v2002 = vunpack.c.l.b16 %v1994
    %v2003 = vpack.c.b16 %v2000, %v1999
    %v2004 = vpack.c.b16 %v2002, %v2001
    %2007 = vmatprep.subr.bf16.mxu0 0
    %2008 = vmatpush1.bf16.msra.mxu0 0
    %2009 = vmatprep.subr.bf16.mxu0 0
    %2010 = vmatpush1.bf16.msra.mxu0 0
    %2011 = vmatprep.subr.bf16.mxu0 0
    %2012 = vmatpush1.bf16.msra.mxu0 0
    %2013 = vmatprep.subr.bf16.mxu0 0
    %2014 = vmatpush1.bf16.msra.mxu0 0
    %2015 = vmatprep.subr.bf16.mxu0 0
    %2016 = vmatpush1.bf16.msra.mxu0 0
    %2017 = vmatprep.subr.bf16.mxu0 0
    %2018 = vmatpush1.bf16.msra.mxu0 0
    %2019 = vmatprep.subr.bf16.mxu0 0
    %2020 = vmatpush1.bf16.msra.mxu0 %v2004
    %2021 = vmatprep.subr.bf16.mxu0 0
    %2022 = vmatpush1.bf16.msra.mxu0 %v2003
    %2023 = vmatprep.subr.bf16.mxu0 0
    %2024 = vmatpush2.bf16.msra.mxu0 0
    %2025 = vmatprep.subr.bf16.mxu0 0
    %2026 = vmatpush2.bf16.msra.mxu0 0
    %2027 = vmatprep.subr.bf16.mxu0 0
    %2028 = vmatpush2.bf16.msra.mxu0 0
    %2029 = vmatprep.subr.bf16.mxu0 0
    %2030 = vmatpush2.bf16.msra.mxu0 0
    %2031 = vmatprep.subr.bf16.mxu0 0
    %2032 = vmatpush2.bf16.msra.mxu0 0
    %2033 = vmatprep.subr.bf16.mxu0 0
    %2034 = vmatpush2.bf16.msra.mxu0 0
    %2035 = vmatprep.subr.bf16.mxu0 0
    %2036 = vmatpush2.bf16.msra.mxu0 0
    %2037 = vmatprep.subr.bf16.mxu0 0
    %2038 = vmatpush2.bf16.msra.mxu0 0
    %2039 = vmatprep.mubr.bf16.mxu0 0
    %2040 = vmatmul.mubr.bf16.gmra.mxu0 %v1893
    %v2041 = vpop.f32.mrf.mxu0
    %v2042 = vadd.f32 %v1209, %v2041
    %v2043 = vpop.f32.mrf.mxu0
    %v2044 = vpop.f32.mrf.mxu0
    %v2045 = vpop.f32.mrf.mxu0
    %2046 = vdwg.mxu0
    %v2047 = vld [vmem:[#allocation4 + $0x8] sm:$0x3]
    %v2048 = vadd.f32 %v2047, %v1930
    %v2049 = vxor.u32 %v2048, 2147483648
    %v2050 = vmul.f32 %v2049, 1.442695
    %v2051 = vpow.pop %v2050
    %v2052 = vadd.f32 %v2051, 1.0
    %v2053 = vrcp.pop %v2052
    %v2054 = vmul.f32 1.0, %v2053
    %v2055 = vld [vmem:[#allocation5 + $0x8] sm:$0x3]
    %v2056 = vadd.f32 %v2055, %v1986
    %v2057 = vxor.u32 %v2056, 2147483648
    %v2058 = vmul.f32 %v2057, 1.442695
    %v2059 = vpow.pop %v2058
    %v2060 = vadd.f32 %v2059, 1.0
    %v2061 = vrcp.pop %v2060
    %v2062 = vmul.f32 1.0, %v2061
    %v2063 = vld [vmem:[#allocation6 + $0x8] sm:$0x3]
    %v2064 = vmul.f32 %v2054, %v2042
    %v2065 = vadd.f32 %v2063, %v2064
    %v2066 = vtanh.pop %v2065
    %v2067 = vsub.f32 %v1873, %v2066
    %v2068 = vmul.f32 %v2062, %v2067
    %v2069 = vadd.f32 %v2068, %v2066
    %2070 = vst.msk [vmem:[#allocation3 + $0x8] sm:$0x3] %vm863, %v2069
    %v2071 = vld [vmem:[#allocation3] sm:$0xff]
    %v2072 = vld [vmem:[#allocation3 + $0x8] sm:$0x3]
    %v2073 = vpack.c.bf16 %v2072, %v2071
    %v2074 = vld [vmem:[%s41] sm:$0xf]
    %v2075 = vld [vmem:[%s41 + $0x4] sm:$0xf]
    %v2076 = vld [vmem:[%s41 + $0x8] sm:$0xf]
    %v2077 = vld [vmem:[%s41 + $0xc] sm:$0xf]
    %v2078 = vld [vmem:[#allocation43] sm:$0x1]
    %v2080 = vlaneseq
    %v2081 = vshrl.u32 %v2080, 7
    %v2082 = vsub.s32 0, %v2081
    %v2083 = vrot.slane %v2078, %v2082
    %v2089 = vunpack.c.l.b16 %v2074
    %v2090 = vunpack.c.l.b16 %v2075
    %v2091 = vunpack.c.l.b16 %v2076
    %v2092 = vunpack.c.l.b16 %v2077
    %v2093 = vpack.c.b16 %v2090, %v2089
    %v2094 = vpack.c.b16 %v2092, %v2091
    %v2098 = vsel %vm751, %v2073, 0
    %2100 = vmatprep.subr.bf16.mxu0 0
    %2101 = vmatpush1.bf16.msra.mxu0 0
    %2102 = vmatprep.subr.bf16.mxu0 0
    %2103 = vmatpush1.bf16.msra.mxu0 0
    %2104 = vmatprep.subr.bf16.mxu0 0
    %2105 = vmatpush1.bf16.msra.mxu0 0
    %2106 = vmatprep.subr.bf16.mxu0 0
    %2107 = vmatpush1.bf16.msra.mxu0 0
    %2108 = vmatprep.subr.bf16.mxu0 0
    %2109 = vmatpush1.bf16.msra.mxu0 0
    %2110 = vmatprep.subr.bf16.mxu0 0
    %2111 = vmatpush1.bf16.msra.mxu0 0
    %2112 = vmatprep.subr.bf16.mxu0 0
    %2113 = vmatpush1.bf16.msra.mxu0 %v2094
    %2114 = vmatprep.subr.bf16.mxu0 0
    %2115 = vmatpush1.bf16.msra.mxu0 %v2093
    %2116 = vmatprep.subr.bf16.mxu0 0
    %2117 = vmatpush2.bf16.msra.mxu0 0
    %2118 = vmatprep.subr.bf16.mxu0 0
    %2119 = vmatpush2.bf16.msra.mxu0 0
    %2120 = vmatprep.subr.bf16.mxu0 0
    %2121 = vmatpush2.bf16.msra.mxu0 0
    %2122 = vmatprep.subr.bf16.mxu0 0
    %2123 = vmatpush2.bf16.msra.mxu0 0
    %2124 = vmatprep.subr.bf16.mxu0 0
    %2125 = vmatpush2.bf16.msra.mxu0 0
    %2126 = vmatprep.subr.bf16.mxu0 0
    %2127 = vmatpush2.bf16.msra.mxu0 0
    %2128 = vmatprep.subr.bf16.mxu0 0
    %2129 = vmatpush2.bf16.msra.mxu0 0
    %2130 = vmatprep.subr.bf16.mxu0 0
    %2131 = vmatpush2.bf16.msra.mxu0 0
    %2132 = vmatprep.mubr.bf16.mxu0 0
    %2133 = vmatmul.mubr.bf16.gmra.mxu0 %v2098
    %v2134 = vpop.f32.mrf.mxu0
    %v2135 = vadd.f32 %v2083, %v2134
    %v2136 = vpop.f32.mrf.mxu0
    %v2137 = vpop.f32.mrf.mxu0
    %v2138 = vadd.f32 %v2083, %v2137
    %v2139 = vpop.f32.mrf.mxu0
    %2140 = vdwg.mxu0
    %2141 = vst.msk [vmem:[#allocation4] sm:$0xff] %vm751, %v2135
    %2142 = vst.msk [vmem:[#allocation4 + $0x8] sm:$0x3] %vm863, %v2138
    %v2143 = vld [vmem:[#allocation36] sm:$0xf]
    %v2144 = vld [vmem:[#allocation36 + $0x4] sm:$0xf]
    %v2145 = vld [vmem:[#allocation36 + $0x8] sm:$0xf]
    %v2146 = vld [vmem:[#allocation36 + $0xc] sm:$0xf]
    %v2147 = vld [vmem:[#allocation45] sm:$0x1]
    %v2149 = vlaneseq
    %v2150 = vshrl.u32 %v2149, 7
    %v2151 = vsub.s32 0, %v2150
    %v2152 = vrot.slane %v2147, %v2151
    %v2158 = vunpack.c.l.b16 %v2143
    %v2159 = vunpack.c.l.b16 %v2144
    %v2160 = vunpack.c.l.b16 %v2145
    %v2161 = vunpack.c.l.b16 %v2146
    %v2162 = vpack.c.b16 %v2159, %v2158
    %v2163 = vpack.c.b16 %v2161, %v2160
    %2166 = vmatprep.subr.bf16.mxu0 0
    %2167 = vmatpush1.bf16.msra.mxu0 0
    %2168 = vmatprep.subr.bf16.mxu0 0
    %2169 = vmatpush1.bf16.msra.mxu0 0
    %2170 = vmatprep.subr.bf16.mxu0 0
    %2171 = vmatpush1.bf16.msra.mxu0 0
    %2172 = vmatprep.subr.bf16.mxu0 0
    %2173 = vmatpush1.bf16.msra.mxu0 0
    %2174 = vmatprep.subr.bf16.mxu0 0
    %2175 = vmatpush1.bf16.msra.mxu0 0
    %2176 = vmatprep.subr.bf16.mxu0 0
    %2177 = vmatpush1.bf16.msra.mxu0 0
    %2178 = vmatprep.subr.bf16.mxu0 0
    %2179 = vmatpush1.bf16.msra.mxu0 %v2163
    %2180 = vmatprep.subr.bf16.mxu0 0
    %2181 = vmatpush1.bf16.msra.mxu0 %v2162
    %2182 = vmatprep.subr.bf16.mxu0 0
    %2183 = vmatpush2.bf16.msra.mxu0 0
    %2184 = vmatprep.subr.bf16.mxu0 0
    %2185 = vmatpush2.bf16.msra.mxu0 0
    %2186 = vmatprep.subr.bf16.mxu0 0
    %2187 = vmatpush2.bf16.msra.mxu0 0
    %2188 = vmatprep.subr.bf16.mxu0 0
    %2189 = vmatpush2.bf16.msra.mxu0 0
    %2190 = vmatprep.subr.bf16.mxu0 0
    %2191 = vmatpush2.bf16.msra.mxu0 0
    %2192 = vmatprep.subr.bf16.mxu0 0
    %2193 = vmatpush2.bf16.msra.mxu0 0
    %2194 = vmatprep.subr.bf16.mxu0 0
    %2195 = vmatpush2.bf16.msra.mxu0 0
    %2196 = vmatprep.subr.bf16.mxu0 0
    %2197 = vmatpush2.bf16.msra.mxu0 0
    %2198 = vmatprep.mubr.bf16.mxu0 0
    %2199 = vmatmul.mubr.bf16.gmra.mxu0 %v2098
    %v2200 = vpop.f32.mrf.mxu0
    %v2201 = vadd.f32 %v2152, %v2200
    %v2202 = vpop.f32.mrf.mxu0
    %v2203 = vpop.f32.mrf.mxu0
    %v2204 = vadd.f32 %v2152, %v2203
    %v2205 = vpop.f32.mrf.mxu0
    %2206 = vdwg.mxu0
    %2207 = vst.msk [vmem:[#allocation5] sm:$0xff] %vm751, %v2201
    %2208 = vst.msk [vmem:[#allocation5 + $0x8] sm:$0x3] %vm863, %v2204
    %v2209 = vld [vmem:[#allocation37] sm:$0xf]
    %v2210 = vld [vmem:[#allocation37 + $0x4] sm:$0xf]
    %v2211 = vld [vmem:[#allocation37 + $0x8] sm:$0xf]
    %v2212 = vld [vmem:[#allocation37 + $0xc] sm:$0xf]
    %v2213 = vld [vmem:[%s57] sm:$0x1]
    %v2215 = vlaneseq
    %v2216 = vshrl.u32 %v2215, 7
    %v2217 = vsub.s32 0, %v2216
    %v2218 = vrot.slane %v2213, %v2217
    %v2224 = vunpack.c.l.b16 %v2209
    %v2225 = vunpack.c.l.b16 %v2210
    %v2226 = vunpack.c.l.b16 %v2211
    %v2227 = vunpack.c.l.b16 %v2212
    %v2228 = vpack.c.b16 %v2225, %v2224
    %v2229 = vpack.c.b16 %v2227, %v2226
    %2232 = vmatprep.subr.bf16.mxu0 0
    %2233 = vmatpush1.bf16.msra.mxu0 0
    %2234 = vmatprep.subr.bf16.mxu0 0
    %2235 = vmatpush1.bf16.msra.mxu0 0
    %2236 = vmatprep.subr.bf16.mxu0 0
    %2237 = vmatpush1.bf16.msra.mxu0 0
    %2238 = vmatprep.subr.bf16.mxu0 0
    %2239 = vmatpush1.bf16.msra.mxu0 0
    %2240 = vmatprep.subr.bf16.mxu0 0
    %2241 = vmatpush1.bf16.msra.mxu0 0
    %2242 = vmatprep.subr.bf16.mxu0 0
    %2243 = vmatpush1.bf16.msra.mxu0 0
    %2244 = vmatprep.subr.bf16.mxu0 0
    %2245 = vmatpush1.bf16.msra.mxu0 %v2229
    %2246 = vmatprep.subr.bf16.mxu0 0
    %2247 = vmatpush1.bf16.msra.mxu0 %v2228
    %2248 = vmatprep.subr.bf16.mxu0 0
    %2249 = vmatpush2.bf16.msra.mxu0 0
    %2250 = vmatprep.subr.bf16.mxu0 0
    %2251 = vmatpush2.bf16.msra.mxu0 0
    %2252 = vmatprep.subr.bf16.mxu0 0
    %2253 = vmatpush2.bf16.msra.mxu0 0
    %2254 = vmatprep.subr.bf16.mxu0 0
    %2255 = vmatpush2.bf16.msra.mxu0 0
    %2256 = vmatprep.subr.bf16.mxu0 0
    %2257 = vmatpush2.bf16.msra.mxu0 0
    %2258 = vmatprep.subr.bf16.mxu0 0
    %2259 = vmatpush2.bf16.msra.mxu0 0
    %2260 = vmatprep.subr.bf16.mxu0 0
    %2261 = vmatpush2.bf16.msra.mxu0 0
    %2262 = vmatprep.subr.bf16.mxu0 0
    %2263 = vmatpush2.bf16.msra.mxu0 0
    %2264 = vmatprep.mubr.bf16.mxu0 0
    %2265 = vmatmul.mubr.bf16.gmra.mxu0 %v2098
    %v2266 = vpop.f32.mrf.mxu0
    %v2267 = vadd.f32 %v2218, %v2266
    %v2268 = vpop.f32.mrf.mxu0
    %v2269 = vpop.f32.mrf.mxu0
    %v2270 = vadd.f32 %v2218, %v2269
    %v2271 = vpop.f32.mrf.mxu0
    %2272 = vdwg.mxu0
    %2273 = vst.msk [vmem:[#allocation6] sm:$0xff] %vm751, %v2267
    %2274 = vst.msk [vmem:[#allocation6 + $0x8] sm:$0x3] %vm863, %v2270
    %v2275 = vld [vmem:[%s59] sm:$0x1]
    %v2276 = vld [vmem:[#allocation39] sm:$0xf]
    %v2277 = vld [vmem:[#allocation39 + $0x4] sm:$0xf]
    %v2278 = vld [vmem:[#allocation39 + $0x8] sm:$0xf]
    %v2279 = vld [vmem:[#allocation39 + $0xc] sm:$0xf]
    %v2284 = vunpack.c.l.b16 %v2276
    %v2285 = vunpack.c.l.b16 %v2277
    %v2286 = vunpack.c.l.b16 %v2278
    %v2287 = vunpack.c.l.b16 %v2279
    %v2288 = vpack.c.b16 %v2285, %v2284
    %v2289 = vpack.c.b16 %v2287, %v2286
    %2292 = vmatprep.subr.bf16.mxu0 0
    %2293 = vmatpush1.bf16.msra.mxu0 0
    %2294 = vmatprep.subr.bf16.mxu0 0
    %2295 = vmatpush1.bf16.msra.mxu0 0
    %2296 = vmatprep.subr.bf16.mxu0 0
    %2297 = vmatpush1.bf16.msra.mxu0 0
    %2298 = vmatprep.subr.bf16.mxu0 0
    %2299 = vmatpush1.bf16.msra.mxu0 0
    %2300 = vmatprep.subr.bf16.mxu0 0
    %2301 = vmatpush1.bf16.msra.mxu0 0
    %2302 = vmatprep.subr.bf16.mxu0 0
    %2303 = vmatpush1.bf16.msra.mxu0 0
    %2304 = vmatprep.subr.bf16.mxu0 0
    %2305 = vmatpush1.bf16.msra.mxu0 %v2289
    %2306 = vmatprep.subr.bf16.mxu0 0
    %2307 = vmatpush1.bf16.msra.mxu0 %v2288
    %2308 = vmatprep.subr.bf16.mxu0 0
    %2309 = vmatpush2.bf16.msra.mxu0 0
    %2310 = vmatprep.subr.bf16.mxu0 0
    %2311 = vmatpush2.bf16.msra.mxu0 0
    %2312 = vmatprep.subr.bf16.mxu0 0
    %2313 = vmatpush2.bf16.msra.mxu0 0
    %2314 = vmatprep.subr.bf16.mxu0 0
    %2315 = vmatpush2.bf16.msra.mxu0 0
    %2316 = vmatprep.subr.bf16.mxu0 0
    %2317 = vmatpush2.bf16.msra.mxu0 0
    %2318 = vmatprep.subr.bf16.mxu0 0
    %2319 = vmatpush2.bf16.msra.mxu0 0
    %2320 = vmatprep.subr.bf16.mxu0 0
    %2321 = vmatpush2.bf16.msra.mxu0 0
    %2322 = vmatprep.subr.bf16.mxu0 0
    %2323 = vmatpush2.bf16.msra.mxu0 0
    %2324 = vmatprep.mubr.bf16.mxu0 0
    %2325 = vmatmul.mubr.bf16.gmra.mxu0 %v1103
    %v2326 = vpop.f32.mrf.mxu0
    %v2327 = vadd.f32 0.0, %v2326
    %v2328 = vpop.f32.mrf.mxu0
    %v2329 = vpop.f32.mrf.mxu0
    %v2330 = vpop.f32.mrf.mxu0
    %2331 = vdwg.mxu0
    %v2332 = vld [vmem:[#allocation40] sm:$0xf]
    %v2333 = vld [vmem:[#allocation40 + $0x4] sm:$0xf]
    %v2334 = vld [vmem:[#allocation40 + $0x8] sm:$0xf]
    %v2335 = vld [vmem:[#allocation40 + $0xc] sm:$0xf]
    %v2340 = vunpack.c.l.b16 %v2332
    %v2341 = vunpack.c.l.b16 %v2333
    %v2342 = vunpack.c.l.b16 %v2334
    %v2343 = vunpack.c.l.b16 %v2335
    %v2344 = vpack.c.b16 %v2341, %v2340
    %v2345 = vpack.c.b16 %v2343, %v2342
    %2348 = vmatprep.subr.bf16.mxu0 0
    %2349 = vmatpush1.bf16.msra.mxu0 0
    %2350 = vmatprep.subr.bf16.mxu0 0
    %2351 = vmatpush1.bf16.msra.mxu0 0
    %2352 = vmatprep.subr.bf16.mxu0 0
    %2353 = vmatpush1.bf16.msra.mxu0 0
    %2354 = vmatprep.subr.bf16.mxu0 0
    %2355 = vmatpush1.bf16.msra.mxu0 0
    %2356 = vmatprep.subr.bf16.mxu0 0
    %2357 = vmatpush1.bf16.msra.mxu0 0
    %2358 = vmatprep.subr.bf16.mxu0 0
    %2359 = vmatpush1.bf16.msra.mxu0 0
    %2360 = vmatprep.subr.bf16.mxu0 0
    %2361 = vmatpush1.bf16.msra.mxu0 %v2345
    %2362 = vmatprep.subr.bf16.mxu0 0
    %2363 = vmatpush1.bf16.msra.mxu0 %v2344
    %2364 = vmatprep.subr.bf16.mxu0 0
    %2365 = vmatpush2.bf16.msra.mxu0 0
    %2366 = vmatprep.subr.bf16.mxu0 0
    %2367 = vmatpush2.bf16.msra.mxu0 0
    %2368 = vmatprep.subr.bf16.mxu0 0
    %2369 = vmatpush2.bf16.msra.mxu0 0
    %2370 = vmatprep.subr.bf16.mxu0 0
    %2371 = vmatpush2.bf16.msra.mxu0 0
    %2372 = vmatprep.subr.bf16.mxu0 0
    %2373 = vmatpush2.bf16.msra.mxu0 0
    %2374 = vmatprep.subr.bf16.mxu0 0
    %2375 = vmatpush2.bf16.msra.mxu0 0
    %2376 = vmatprep.subr.bf16.mxu0 0
    %2377 = vmatpush2.bf16.msra.mxu0 0
    %2378 = vmatprep.subr.bf16.mxu0 0
    %2379 = vmatpush2.bf16.msra.mxu0 0
    %2380 = vmatprep.mubr.bf16.mxu0 0
    %2381 = vmatmul.mubr.bf16.gmra.mxu0 %v1103
    %v2382 = vpop.f32.mrf.mxu0
    %v2383 = vadd.f32 0.0, %v2382
    %v2384 = vpop.f32.mrf.mxu0
    %v2385 = vpop.f32.mrf.mxu0
    %v2386 = vpop.f32.mrf.mxu0
    %2387 = vdwg.mxu0
    %v2388 = vld [vmem:[#allocation42] sm:$0xf]
    %v2389 = vld [vmem:[#allocation42 + $0x4] sm:$0xf]
    %v2390 = vld [vmem:[#allocation42 + $0x8] sm:$0xf]
    %v2391 = vld [vmem:[#allocation42 + $0xc] sm:$0xf]
    %v2393 = vlaneseq
    %v2394 = vshrl.u32 %v2393, 7
    %v2395 = vsub.s32 0, %v2394
    %v2396 = vrot.slane %v2275, %v2395
    %v2402 = vunpack.c.l.b16 %v2388
    %v2403 = vunpack.c.l.b16 %v2389
    %v2404 = vunpack.c.l.b16 %v2390
    %v2405 = vunpack.c.l.b16 %v2391
    %v2406 = vpack.c.b16 %v2403, %v2402
    %v2407 = vpack.c.b16 %v2405, %v2404
    %2410 = vmatprep.subr.bf16.mxu0 0
    %2411 = vmatpush1.bf16.msra.mxu0 0
    %2412 = vmatprep.subr.bf16.mxu0 0
    %2413 = vmatpush1.bf16.msra.mxu0 0
    %2414 = vmatprep.subr.bf16.mxu0 0
    %2415 = vmatpush1.bf16.msra.mxu0 0
    %2416 = vmatprep.subr.bf16.mxu0 0
    %2417 = vmatpush1.bf16.msra.mxu0 0
    %2418 = vmatprep.subr.bf16.mxu0 0
    %2419 = vmatpush1.bf16.msra.mxu0 0
    %2420 = vmatprep.subr.bf16.mxu0 0
    %2421 = vmatpush1.bf16.msra.mxu0 0
    %2422 = vmatprep.subr.bf16.mxu0 0
    %2423 = vmatpush1.bf16.msra.mxu0 %v2407
    %2424 = vmatprep.subr.bf16.mxu0 0
    %2425 = vmatpush1.bf16.msra.mxu0 %v2406
    %2426 = vmatprep.subr.bf16.mxu0 0
    %2427 = vmatpush2.bf16.msra.mxu0 0
    %2428 = vmatprep.subr.bf16.mxu0 0
    %2429 = vmatpush2.bf16.msra.mxu0 0
    %2430 = vmatprep.subr.bf16.mxu0 0
    %2431 = vmatpush2.bf16.msra.mxu0 0
    %2432 = vmatprep.subr.bf16.mxu0 0
    %2433 = vmatpush2.bf16.msra.mxu0 0
    %2434 = vmatprep.subr.bf16.mxu0 0
    %2435 = vmatpush2.bf16.msra.mxu0 0
    %2436 = vmatprep.subr.bf16.mxu0 0
    %2437 = vmatpush2.bf16.msra.mxu0 0
    %2438 = vmatprep.subr.bf16.mxu0 0
    %2439 = vmatpush2.bf16.msra.mxu0 0
    %2440 = vmatprep.subr.bf16.mxu0 0
    %2441 = vmatpush2.bf16.msra.mxu0 0
    %2442 = vmatprep.mubr.bf16.mxu0 0
    %2443 = vmatmul.mubr.bf16.gmra.mxu0 %v1103
    %v2444 = vpop.f32.mrf.mxu0
    %v2445 = vadd.f32 %v2396, %v2444
    %v2446 = vpop.f32.mrf.mxu0
    %v2447 = vpop.f32.mrf.mxu0
    %v2448 = vpop.f32.mrf.mxu0
    %2449 = vdwg.mxu0
    %v2450 = vld [vmem:[#allocation4] sm:$0x3]
    %v2451 = vadd.f32 %v2450, %v2327
    %v2452 = vxor.u32 %v2451, 2147483648
    %v2453 = vmul.f32 %v2452, 1.442695
    %v2454 = vpow.pop %v2453
    %v2455 = vadd.f32 %v2454, 1.0
    %v2456 = vrcp.pop %v2455
    %v2457 = vmul.f32 1.0, %v2456
    %v2458 = vld [vmem:[#allocation5] sm:$0x3]
    %v2459 = vadd.f32 %v2458, %v2383
    %v2460 = vxor.u32 %v2459, 2147483648
    %v2461 = vmul.f32 %v2460, 1.442695
    %v2462 = vpow.pop %v2461
    %v2463 = vadd.f32 %v2462, 1.0
    %v2464 = vrcp.pop %v2463
    %v2465 = vmul.f32 1.0, %v2464
    %v2466 = vld [vmem:[#allocation6] sm:$0x3]
    %v2467 = vmul.f32 %v2457, %v2445
    %v2468 = vadd.f32 %v2466, %v2467
    %v2469 = vtanh.pop %v2468
    %v2470 = vsub.f32 0.0, %v2469
    %v2471 = vmul.f32 %v2465, %v2470
    %v2472 = vadd.f32 %v2471, %v2469
    %2473 = vst.msk [vmem:[#allocation3] sm:$0x3] %vm863, %v2472
    %v2474 = vpack.c.bf16 %v2472, %v2472
    %v2475 = vld [vmem:[#allocation39] sm:$0xf]
    %v2476 = vld [vmem:[#allocation39 + $0x4] sm:$0xf]
    %v2477 = vld [vmem:[#allocation39 + $0x8] sm:$0xf]
    %v2478 = vld [vmem:[#allocation39 + $0xc] sm:$0xf]
    %v2483 = vunpack.c.l.b16 %v2475
    %v2484 = vunpack.c.l.b16 %v2476
    %v2485 = vunpack.c.l.b16 %v2477
    %v2486 = vunpack.c.l.b16 %v2478
    %v2487 = vpack.c.b16 %v2484, %v2483
    %v2488 = vpack.c.b16 %v2486, %v2485
    %v2492 = vsel %vm751, %v2474, 0
    %2494 = vmatprep.subr.bf16.mxu0 0
    %2495 = vmatpush1.bf16.msra.mxu0 0
    %2496 = vmatprep.subr.bf16.mxu0 0
    %2497 = vmatpush1.bf16.msra.mxu0 0
    %2498 = vmatprep.subr.bf16.mxu0 0
    %2499 = vmatpush1.bf16.msra.mxu0 0
    %2500 = vmatprep.subr.bf16.mxu0 0
    %2501 = vmatpush1.bf16.msra.mxu0 0
    %2502 = vmatprep.subr.bf16.mxu0 0
    %2503 = vmatpush1.bf16.msra.mxu0 0
    %2504 = vmatprep.subr.bf16.mxu0 0
    %2505 = vmatpush1.bf16.msra.mxu0 0
    %2506 = vmatprep.subr.bf16.mxu0 0
    %2507 = vmatpush1.bf16.msra.mxu0 %v2488
    %2508 = vmatprep.subr.bf16.mxu0 0
    %2509 = vmatpush1.bf16.msra.mxu0 %v2487
    %2510 = vmatprep.subr.bf16.mxu0 0
    %2511 = vmatpush2.bf16.msra.mxu0 0
    %2512 = vmatprep.subr.bf16.mxu0 0
    %2513 = vmatpush2.bf16.msra.mxu0 0
    %2514 = vmatprep.subr.bf16.mxu0 0
    %2515 = vmatpush2.bf16.msra.mxu0 0
    %2516 = vmatprep.subr.bf16.mxu0 0
    %2517 = vmatpush2.bf16.msra.mxu0 0
    %2518 = vmatprep.subr.bf16.mxu0 0
    %2519 = vmatpush2.bf16.msra.mxu0 0
    %2520 = vmatprep.subr.bf16.mxu0 0
    %2521 = vmatpush2.bf16.msra.mxu0 0
    %2522 = vmatprep.subr.bf16.mxu0 0
    %2523 = vmatpush2.bf16.msra.mxu0 0
    %2524 = vmatprep.subr.bf16.mxu0 0
    %2525 = vmatpush2.bf16.msra.mxu0 0
    %2526 = vmatprep.mubr.bf16.mxu0 0
    %2527 = vmatmul.mubr.bf16.gmra.mxu0 %v2492
    %v2528 = vpop.f32.mrf.mxu0
    %v2529 = vadd.f32 0.0, %v2528
    %v2530 = vpop.f32.mrf.mxu0
    %v2531 = vpop.f32.mrf.mxu0
    %v2532 = vpop.f32.mrf.mxu0
    %2533 = vdwg.mxu0
    %v2534 = vld [vmem:[#allocation40] sm:$0xf]
    %v2535 = vld [vmem:[#allocation40 + $0x4] sm:$0xf]
    %v2536 = vld [vmem:[#allocation40 + $0x8] sm:$0xf]
    %v2537 = vld [vmem:[#allocation40 + $0xc] sm:$0xf]
    %v2542 = vunpack.c.l.b16 %v2534
    %v2543 = vunpack.c.l.b16 %v2535
    %v2544 = vunpack.c.l.b16 %v2536
    %v2545 = vunpack.c.l.b16 %v2537
    %v2546 = vpack.c.b16 %v2543, %v2542
    %v2547 = vpack.c.b16 %v2545, %v2544
    %2550 = vmatprep.subr.bf16.mxu0 0
    %2551 = vmatpush1.bf16.msra.mxu0 0
    %2552 = vmatprep.subr.bf16.mxu0 0
    %2553 = vmatpush1.bf16.msra.mxu0 0
    %2554 = vmatprep.subr.bf16.mxu0 0
    %2555 = vmatpush1.bf16.msra.mxu0 0
    %2556 = vmatprep.subr.bf16.mxu0 0
    %2557 = vmatpush1.bf16.msra.mxu0 0
    %2558 = vmatprep.subr.bf16.mxu0 0
    %2559 = vmatpush1.bf16.msra.mxu0 0
    %2560 = vmatprep.subr.bf16.mxu0 0
    %2561 = vmatpush1.bf16.msra.mxu0 0
    %2562 = vmatprep.subr.bf16.mxu0 0
    %2563 = vmatpush1.bf16.msra.mxu0 %v2547
    %2564 = vmatprep.subr.bf16.mxu0 0
    %2565 = vmatpush1.bf16.msra.mxu0 %v2546
    %2566 = vmatprep.subr.bf16.mxu0 0
    %2567 = vmatpush2.bf16.msra.mxu0 0
    %2568 = vmatprep.subr.bf16.mxu0 0
    %2569 = vmatpush2.bf16.msra.mxu0 0
    %2570 = vmatprep.subr.bf16.mxu0 0
    %2571 = vmatpush2.bf16.msra.mxu0 0
    %2572 = vmatprep.subr.bf16.mxu0 0
    %2573 = vmatpush2.bf16.msra.mxu0 0
    %2574 = vmatprep.subr.bf16.mxu0 0
    %2575 = vmatpush2.bf16.msra.mxu0 0
    %2576 = vmatprep.subr.bf16.mxu0 0
    %2577 = vmatpush2.bf16.msra.mxu0 0
    %2578 = vmatprep.subr.bf16.mxu0 0
    %2579 = vmatpush2.bf16.msra.mxu0 0
    %2580 = vmatprep.subr.bf16.mxu0 0
    %2581 = vmatpush2.bf16.msra.mxu0 0
    %2582 = vmatprep.mubr.bf16.mxu0 0
    %2583 = vmatmul.mubr.bf16.gmra.mxu0 %v2492
    %v2584 = vpop.f32.mrf.mxu0
    %v2585 = vadd.f32 0.0, %v2584
    %v2586 = vpop.f32.mrf.mxu0
    %v2587 = vpop.f32.mrf.mxu0
    %v2588 = vpop.f32.mrf.mxu0
    %2589 = vdwg.mxu0
    %v2590 = vld [vmem:[#allocation42] sm:$0xf]
    %v2591 = vld [vmem:[#allocation42 + $0x4] sm:$0xf]
    %v2592 = vld [vmem:[#allocation42 + $0x8] sm:$0xf]
    %v2593 = vld [vmem:[#allocation42 + $0xc] sm:$0xf]
    %v2598 = vunpack.c.l.b16 %v2590
    %v2599 = vunpack.c.l.b16 %v2591
    %v2600 = vunpack.c.l.b16 %v2592
    %v2601 = vunpack.c.l.b16 %v2593
    %v2602 = vpack.c.b16 %v2599, %v2598
    %v2603 = vpack.c.b16 %v2601, %v2600
    %2606 = vmatprep.subr.bf16.mxu0 0
    %2607 = vmatpush1.bf16.msra.mxu0 0
    %2608 = vmatprep.subr.bf16.mxu0 0
    %2609 = vmatpush1.bf16.msra.mxu0 0
    %2610 = vmatprep.subr.bf16.mxu0 0
    %2611 = vmatpush1.bf16.msra.mxu0 0
    %2612 = vmatprep.subr.bf16.mxu0 0
    %2613 = vmatpush1.bf16.msra.mxu0 0
    %2614 = vmatprep.subr.bf16.mxu0 0
    %2615 = vmatpush1.bf16.msra.mxu0 0
    %2616 = vmatprep.subr.bf16.mxu0 0
    %2617 = vmatpush1.bf16.msra.mxu0 0
    %2618 = vmatprep.subr.bf16.mxu0 0
    %2619 = vmatpush1.bf16.msra.mxu0 %v2603
    %2620 = vmatprep.subr.bf16.mxu0 0
    %2621 = vmatpush1.bf16.msra.mxu0 %v2602
    %2622 = vmatprep.subr.bf16.mxu0 0
    %2623 = vmatpush2.bf16.msra.mxu0 0
    %2624 = vmatprep.subr.bf16.mxu0 0
    %2625 = vmatpush2.bf16.msra.mxu0 0
    %2626 = vmatprep.subr.bf16.mxu0 0
    %2627 = vmatpush2.bf16.msra.mxu0 0
    %2628 = vmatprep.subr.bf16.mxu0 0
    %2629 = vmatpush2.bf16.msra.mxu0 0
    %2630 = vmatprep.subr.bf16.mxu0 0
    %2631 = vmatpush2.bf16.msra.mxu0 0
    %2632 = vmatprep.subr.bf16.mxu0 0
    %2633 = vmatpush2.bf16.msra.mxu0 0
    %2634 = vmatprep.subr.bf16.mxu0 0
    %2635 = vmatpush2.bf16.msra.mxu0 0
    %2636 = vmatprep.subr.bf16.mxu0 0
    %2637 = vmatpush2.bf16.msra.mxu0 0
    %2638 = vmatprep.mubr.bf16.mxu0 0
    %2639 = vmatmul.mubr.bf16.gmra.mxu0 %v2492
    %v2640 = vpop.f32.mrf.mxu0
    %v2641 = vadd.f32 %v2396, %v2640
    %v2642 = vpop.f32.mrf.mxu0
    %v2643 = vpop.f32.mrf.mxu0
    %v2644 = vpop.f32.mrf.mxu0
    %2645 = vdwg.mxu0
    %v2646 = vld [vmem:[#allocation4 + $0x2] sm:$0x3]
    %v2647 = vadd.f32 %v2646, %v2529
    %v2648 = vxor.u32 %v2647, 2147483648
    %v2649 = vmul.f32 %v2648, 1.442695
    %v2650 = vpow.pop %v2649
    %v2651 = vadd.f32 %v2650, 1.0
    %v2652 = vrcp.pop %v2651
    %v2653 = vmul.f32 1.0, %v2652
    %v2654 = vld [vmem:[#allocation5 + $0x2] sm:$0x3]
    %v2655 = vadd.f32 %v2654, %v2585
    %v2656 = vxor.u32 %v2655, 2147483648
    %v2657 = vmul.f32 %v2656, 1.442695
    %v2658 = vpow.pop %v2657
    %v2659 = vadd.f32 %v2658, 1.0
    %v2660 = vrcp.pop %v2659
    %v2661 = vmul.f32 1.0, %v2660
    %v2662 = vld [vmem:[#allocation6 + $0x2] sm:$0x3]
    %v2663 = vmul.f32 %v2653, %v2641
    %v2664 = vadd.f32 %v2662, %v2663
    %v2665 = vtanh.pop %v2664
    %v2666 = vsub.f32 %v2472, %v2665
    %v2667 = vmul.f32 %v2661, %v2666
    %v2668 = vadd.f32 %v2667, %v2665
    %2669 = vst.msk [vmem:[#allocation3 + $0x2] sm:$0x3] %vm863, %v2668
    %v2670 = vpack.c.bf16 %v2668, %v2668
    %v2671 = vld [vmem:[#allocation39] sm:$0xf]
    %v2672 = vld [vmem:[#allocation39 + $0x4] sm:$0xf]
    %v2673 = vld [vmem:[#allocation39 + $0x8] sm:$0xf]
    %v2674 = vld [vmem:[#allocation39 + $0xc] sm:$0xf]
    %v2679 = vunpack.c.l.b16 %v2671
    %v2680 = vunpack.c.l.b16 %v2672
    %v2681 = vunpack.c.l.b16 %v2673
    %v2682 = vunpack.c.l.b16 %v2674
    %v2683 = vpack.c.b16 %v2680, %v2679
    %v2684 = vpack.c.b16 %v2682, %v2681
    %v2688 = vsel %vm751, %v2670, 0
    %2690 = vmatprep.subr.bf16.mxu0 0
    %2691 = vmatpush1.bf16.msra.mxu0 0
    %2692 = vmatprep.subr.bf16.mxu0 0
    %2693 = vmatpush1.bf16.msra.mxu0 0
    %2694 = vmatprep.subr.bf16.mxu0 0
    %2695 = vmatpush1.bf16.msra.mxu0 0
    %2696 = vmatprep.subr.bf16.mxu0 0
    %2697 = vmatpush1.bf16.msra.mxu0 0
    %2698 = vmatprep.subr.bf16.mxu0 0
    %2699 = vmatpush1.bf16.msra.mxu0 0
    %2700 = vmatprep.subr.bf16.mxu0 0
    %2701 = vmatpush1.bf16.msra.mxu0 0
    %2702 = vmatprep.subr.bf16.mxu0 0
    %2703 = vmatpush1.bf16.msra.mxu0 %v2684
    %2704 = vmatprep.subr.bf16.mxu0 0
    %2705 = vmatpush1.bf16.msra.mxu0 %v2683
    %2706 = vmatprep.subr.bf16.mxu0 0
    %2707 = vmatpush2.bf16.msra.mxu0 0
    %2708 = vmatprep.subr.bf16.mxu0 0
    %2709 = vmatpush2.bf16.msra.mxu0 0
    %2710 = vmatprep.subr.bf16.mxu0 0
    %2711 = vmatpush2.bf16.msra.mxu0 0
    %2712 = vmatprep.subr.bf16.mxu0 0
    %2713 = vmatpush2.bf16.msra.mxu0 0
    %2714 = vmatprep.subr.bf16.mxu0 0
    %2715 = vmatpush2.bf16.msra.mxu0 0
    %2716 = vmatprep.subr.bf16.mxu0 0
    %2717 = vmatpush2.bf16.msra.mxu0 0
    %2718 = vmatprep.subr.bf16.mxu0 0
    %2719 = vmatpush2.bf16.msra.mxu0 0
    %2720 = vmatprep.subr.bf16.mxu0 0
    %2721 = vmatpush2.bf16.msra.mxu0 0
    %2722 = vmatprep.mubr.bf16.mxu0 0
    %2723 = vmatmul.mubr.bf16.gmra.mxu0 %v2688
    %v2724 = vpop.f32.mrf.mxu0
    %v2725 = vadd.f32 0.0, %v2724
    %v2726 = vpop.f32.mrf.mxu0
    %v2727 = vpop.f32.mrf.mxu0
    %v2728 = vpop.f32.mrf.mxu0
    %2729 = vdwg.mxu0
    %v2730 = vld [vmem:[#allocation40] sm:$0xf]
    %v2731 = vld [vmem:[#allocation40 + $0x4] sm:$0xf]
    %v2732 = vld [vmem:[#allocation40 + $0x8] sm:$0xf]
    %v2733 = vld [vmem:[#allocation40 + $0xc] sm:$0xf]
    %v2738 = vunpack.c.l.b16 %v2730
    %v2739 = vunpack.c.l.b16 %v2731
    %v2740 = vunpack.c.l.b16 %v2732
    %v2741 = vunpack.c.l.b16 %v2733
    %v2742 = vpack.c.b16 %v2739, %v2738
    %v2743 = vpack.c.b16 %v2741, %v2740
    %2746 = vmatprep.subr.bf16.mxu0 0
    %2747 = vmatpush1.bf16.msra.mxu0 0
    %2748 = vmatprep.subr.bf16.mxu0 0
    %2749 = vmatpush1.bf16.msra.mxu0 0
    %2750 = vmatprep.subr.bf16.mxu0 0
    %2751 = vmatpush1.bf16.msra.mxu0 0
    %2752 = vmatprep.subr.bf16.mxu0 0
    %2753 = vmatpush1.bf16.msra.mxu0 0
    %2754 = vmatprep.subr.bf16.mxu0 0
    %2755 = vmatpush1.bf16.msra.mxu0 0
    %2756 = vmatprep.subr.bf16.mxu0 0
    %2757 = vmatpush1.bf16.msra.mxu0 0
    %2758 = vmatprep.subr.bf16.mxu0 0
    %2759 = vmatpush1.bf16.msra.mxu0 %v2743
    %2760 = vmatprep.subr.bf16.mxu0 0
    %2761 = vmatpush1.bf16.msra.mxu0 %v2742
    %2762 = vmatprep.subr.bf16.mxu0 0
    %2763 = vmatpush2.bf16.msra.mxu0 0
    %2764 = vmatprep.subr.bf16.mxu0 0
    %2765 = vmatpush2.bf16.msra.mxu0 0
    %2766 = vmatprep.subr.bf16.mxu0 0
    %2767 = vmatpush2.bf16.msra.mxu0 0
    %2768 = vmatprep.subr.bf16.mxu0 0
    %2769 = vmatpush2.bf16.msra.mxu0 0
    %2770 = vmatprep.subr.bf16.mxu0 0
    %2771 = vmatpush2.bf16.msra.mxu0 0
    %2772 = vmatprep.subr.bf16.mxu0 0
    %2773 = vmatpush2.bf16.msra.mxu0 0
    %2774 = vmatprep.subr.bf16.mxu0 0
    %2775 = vmatpush2.bf16.msra.mxu0 0
    %2776 = vmatprep.subr.bf16.mxu0 0
    %2777 = vmatpush2.bf16.msra.mxu0 0
    %2778 = vmatprep.mubr.bf16.mxu0 0
    %2779 = vmatmul.mubr.bf16.gmra.mxu0 %v2688
    %v2780 = vpop.f32.mrf.mxu0
    %v2781 = vadd.f32 0.0, %v2780
    %v2782 = vpop.f32.mrf.mxu0
    %v2783 = vpop.f32.mrf.mxu0
    %v2784 = vpop.f32.mrf.mxu0
    %2785 = vdwg.mxu0
    %v2786 = vld [vmem:[#allocation42] sm:$0xf]
    %v2787 = vld [vmem:[#allocation42 + $0x4] sm:$0xf]
    %v2788 = vld [vmem:[#allocation42 + $0x8] sm:$0xf]
    %v2789 = vld [vmem:[#allocation42 + $0xc] sm:$0xf]
    %v2794 = vunpack.c.l.b16 %v2786
    %v2795 = vunpack.c.l.b16 %v2787
    %v2796 = vunpack.c.l.b16 %v2788
    %v2797 = vunpack.c.l.b16 %v2789
    %v2798 = vpack.c.b16 %v2795, %v2794
    %v2799 = vpack.c.b16 %v2797, %v2796
    %2802 = vmatprep.subr.bf16.mxu0 0
    %2803 = vmatpush1.bf16.msra.mxu0 0
    %2804 = vmatprep.subr.bf16.mxu0 0
    %2805 = vmatpush1.bf16.msra.mxu0 0
    %2806 = vmatprep.subr.bf16.mxu0 0
    %2807 = vmatpush1.bf16.msra.mxu0 0
    %2808 = vmatprep.subr.bf16.mxu0 0
    %2809 = vmatpush1.bf16.msra.mxu0 0
    %2810 = vmatprep.subr.bf16.mxu0 0
    %2811 = vmatpush1.bf16.msra.mxu0 0
    %2812 = vmatprep.subr.bf16.mxu0 0
    %2813 = vmatpush1.bf16.msra.mxu0 0
    %2814 = vmatprep.subr.bf16.mxu0 0
    %2815 = vmatpush1.bf16.msra.mxu0 %v2799
    %2816 = vmatprep.subr.bf16.mxu0 0
    %2817 = vmatpush1.bf16.msra.mxu0 %v2798
    %2818 = vmatprep.subr.bf16.mxu0 0
    %2819 = vmatpush2.bf16.msra.mxu0 0
    %2820 = vmatprep.subr.bf16.mxu0 0
    %2821 = vmatpush2.bf16.msra.mxu0 0
    %2822 = vmatprep.subr.bf16.mxu0 0
    %2823 = vmatpush2.bf16.msra.mxu0 0
    %2824 = vmatprep.subr.bf16.mxu0 0
    %2825 = vmatpush2.bf16.msra.mxu0 0
    %2826 = vmatprep.subr.bf16.mxu0 0
    %2827 = vmatpush2.bf16.msra.mxu0 0
    %2828 = vmatprep.subr.bf16.mxu0 0
    %2829 = vmatpush2.bf16.msra.mxu0 0
    %2830 = vmatprep.subr.bf16.mxu0 0
    %2831 = vmatpush2.bf16.msra.mxu0 0
    %2832 = vmatprep.subr.bf16.mxu0 0
    %2833 = vmatpush2.bf16.msra.mxu0 0
    %2834 = vmatprep.mubr.bf16.mxu0 0
    %2835 = vmatmul.mubr.bf16.gmra.mxu0 %v2688
    %v2836 = vpop.f32.mrf.mxu0
    %v2837 = vadd.f32 %v2396, %v2836
    %v2838 = vpop.f32.mrf.mxu0
    %v2839 = vpop.f32.mrf.mxu0
    %v2840 = vpop.f32.mrf.mxu0
    %2841 = vdwg.mxu0
    %v2842 = vld [vmem:[#allocation4 + $0x4] sm:$0x3]
    %v2843 = vadd.f32 %v2842, %v2725
    %v2844 = vxor.u32 %v2843, 2147483648
    %v2845 = vmul.f32 %v2844, 1.442695
    %v2846 = vpow.pop %v2845
    %v2847 = vadd.f32 %v2846, 1.0
    %v2848 = vrcp.pop %v2847
    %v2849 = vmul.f32 1.0, %v2848
    %v2850 = vld [vmem:[#allocation5 + $0x4] sm:$0x3]
    %v2851 = vadd.f32 %v2850, %v2781
    %v2852 = vxor.u32 %v2851, 2147483648
    %v2853 = vmul.f32 %v2852, 1.442695
    %v2854 = vpow.pop %v2853
    %v2855 = vadd.f32 %v2854, 1.0
    %v2856 = vrcp.pop %v2855
    %v2857 = vmul.f32 1.0, %v2856
    %v2858 = vld [vmem:[#allocation6 + $0x4] sm:$0x3]
    %v2859 = vmul.f32 %v2849, %v2837
    %v2860 = vadd.f32 %v2858, %v2859
    %v2861 = vtanh.pop %v2860
    %v2862 = vsub.f32 %v2668, %v2861
    %v2863 = vmul.f32 %v2857, %v2862
    %v2864 = vadd.f32 %v2863, %v2861
    %2865 = vst.msk [vmem:[#allocation3 + $0x4] sm:$0x3] %vm863, %v2864
    %v2866 = vpack.c.bf16 %v2864, %v2864
    %v2867 = vld [vmem:[#allocation39] sm:$0xf]
    %v2868 = vld [vmem:[#allocation39 + $0x4] sm:$0xf]
    %v2869 = vld [vmem:[#allocation39 + $0x8] sm:$0xf]
    %v2870 = vld [vmem:[#allocation39 + $0xc] sm:$0xf]
    %v2875 = vunpack.c.l.b16 %v2867
    %v2876 = vunpack.c.l.b16 %v2868
    %v2877 = vunpack.c.l.b16 %v2869
    %v2878 = vunpack.c.l.b16 %v2870
    %v2879 = vpack.c.b16 %v2876, %v2875
    %v2880 = vpack.c.b16 %v2878, %v2877
    %v2884 = vsel %vm751, %v2866, 0
    %2886 = vmatprep.subr.bf16.mxu0 0
    %2887 = vmatpush1.bf16.msra.mxu0 0
    %2888 = vmatprep.subr.bf16.mxu0 0
    %2889 = vmatpush1.bf16.msra.mxu0 0
    %2890 = vmatprep.subr.bf16.mxu0 0
    %2891 = vmatpush1.bf16.msra.mxu0 0
    %2892 = vmatprep.subr.bf16.mxu0 0
    %2893 = vmatpush1.bf16.msra.mxu0 0
    %2894 = vmatprep.subr.bf16.mxu0 0
    %2895 = vmatpush1.bf16.msra.mxu0 0
    %2896 = vmatprep.subr.bf16.mxu0 0
    %2897 = vmatpush1.bf16.msra.mxu0 0
    %2898 = vmatprep.subr.bf16.mxu0 0
    %2899 = vmatpush1.bf16.msra.mxu0 %v2880
    %2900 = vmatprep.subr.bf16.mxu0 0
    %2901 = vmatpush1.bf16.msra.mxu0 %v2879
    %2902 = vmatprep.subr.bf16.mxu0 0
    %2903 = vmatpush2.bf16.msra.mxu0 0
    %2904 = vmatprep.subr.bf16.mxu0 0
    %2905 = vmatpush2.bf16.msra.mxu0 0
    %2906 = vmatprep.subr.bf16.mxu0 0
    %2907 = vmatpush2.bf16.msra.mxu0 0
    %2908 = vmatprep.subr.bf16.mxu0 0
    %2909 = vmatpush2.bf16.msra.mxu0 0
    %2910 = vmatprep.subr.bf16.mxu0 0
    %2911 = vmatpush2.bf16.msra.mxu0 0
    %2912 = vmatprep.subr.bf16.mxu0 0
    %2913 = vmatpush2.bf16.msra.mxu0 0
    %2914 = vmatprep.subr.bf16.mxu0 0
    %2915 = vmatpush2.bf16.msra.mxu0 0
    %2916 = vmatprep.subr.bf16.mxu0 0
    %2917 = vmatpush2.bf16.msra.mxu0 0
    %2918 = vmatprep.mubr.bf16.mxu0 0
    %2919 = vmatmul.mubr.bf16.gmra.mxu0 %v2884
    %v2920 = vpop.f32.mrf.mxu0
    %v2921 = vadd.f32 0.0, %v2920
    %v2922 = vpop.f32.mrf.mxu0
    %v2923 = vpop.f32.mrf.mxu0
    %v2924 = vpop.f32.mrf.mxu0
    %2925 = vdwg.mxu0
    %v2926 = vld [vmem:[#allocation40] sm:$0xf]
    %v2927 = vld [vmem:[#allocation40 + $0x4] sm:$0xf]
    %v2928 = vld [vmem:[#allocation40 + $0x8] sm:$0xf]
    %v2929 = vld [vmem:[#allocation40 + $0xc] sm:$0xf]
    %v2934 = vunpack.c.l.b16 %v2926
    %v2935 = vunpack.c.l.b16 %v2927
    %v2936 = vunpack.c.l.b16 %v2928
    %v2937 = vunpack.c.l.b16 %v2929
    %v2938 = vpack.c.b16 %v2935, %v2934
    %v2939 = vpack.c.b16 %v2937, %v2936
    %2942 = vmatprep.subr.bf16.mxu0 0
    %2943 = vmatpush1.bf16.msra.mxu0 0
    %2944 = vmatprep.subr.bf16.mxu0 0
    %2945 = vmatpush1.bf16.msra.mxu0 0
    %2946 = vmatprep.subr.bf16.mxu0 0
    %2947 = vmatpush1.bf16.msra.mxu0 0
    %2948 = vmatprep.subr.bf16.mxu0 0
    %2949 = vmatpush1.bf16.msra.mxu0 0
    %2950 = vmatprep.subr.bf16.mxu0 0
    %2951 = vmatpush1.bf16.msra.mxu0 0
    %2952 = vmatprep.subr.bf16.mxu0 0
    %2953 = vmatpush1.bf16.msra.mxu0 0
    %2954 = vmatprep.subr.bf16.mxu0 0
    %2955 = vmatpush1.bf16.msra.mxu0 %v2939
    %2956 = vmatprep.subr.bf16.mxu0 0
    %2957 = vmatpush1.bf16.msra.mxu0 %v2938
    %2958 = vmatprep.subr.bf16.mxu0 0
    %2959 = vmatpush2.bf16.msra.mxu0 0
    %2960 = vmatprep.subr.bf16.mxu0 0
    %2961 = vmatpush2.bf16.msra.mxu0 0
    %2962 = vmatprep.subr.bf16.mxu0 0
    %2963 = vmatpush2.bf16.msra.mxu0 0
    %2964 = vmatprep.subr.bf16.mxu0 0
    %2965 = vmatpush2.bf16.msra.mxu0 0
    %2966 = vmatprep.subr.bf16.mxu0 0
    %2967 = vmatpush2.bf16.msra.mxu0 0
    %2968 = vmatprep.subr.bf16.mxu0 0
    %2969 = vmatpush2.bf16.msra.mxu0 0
    %2970 = vmatprep.subr.bf16.mxu0 0
    %2971 = vmatpush2.bf16.msra.mxu0 0
    %2972 = vmatprep.subr.bf16.mxu0 0
    %2973 = vmatpush2.bf16.msra.mxu0 0
    %2974 = vmatprep.mubr.bf16.mxu0 0
    %2975 = vmatmul.mubr.bf16.gmra.mxu0 %v2884
    %v2976 = vpop.f32.mrf.mxu0
    %v2977 = vadd.f32 0.0, %v2976
    %v2978 = vpop.f32.mrf.mxu0
    %v2979 = vpop.f32.mrf.mxu0
    %v2980 = vpop.f32.mrf.mxu0
    %2981 = vdwg.mxu0
    %v2982 = vld [vmem:[#allocation42] sm:$0xf]
    %v2983 = vld [vmem:[#allocation42 + $0x4] sm:$0xf]
    %v2984 = vld [vmem:[#allocation42 + $0x8] sm:$0xf]
    %v2985 = vld [vmem:[#allocation42 + $0xc] sm:$0xf]
    %v2990 = vunpack.c.l.b16 %v2982
    %v2991 = vunpack.c.l.b16 %v2983
    %v2992 = vunpack.c.l.b16 %v2984
    %v2993 = vunpack.c.l.b16 %v2985
    %v2994 = vpack.c.b16 %v2991, %v2990
    %v2995 = vpack.c.b16 %v2993, %v2992
    %2998 = vmatprep.subr.bf16.mxu0 0
    %2999 = vmatpush1.bf16.msra.mxu0 0
    %3000 = vmatprep.subr.bf16.mxu0 0
    %3001 = vmatpush1.bf16.msra.mxu0 0
    %3002 = vmatprep.subr.bf16.mxu0 0
    %3003 = vmatpush1.bf16.msra.mxu0 0
    %3004 = vmatprep.subr.bf16.mxu0 0
    %3005 = vmatpush1.bf16.msra.mxu0 0
    %3006 = vmatprep.subr.bf16.mxu0 0
    %3007 = vmatpush1.bf16.msra.mxu0 0
    %3008 = vmatprep.subr.bf16.mxu0 0
    %3009 = vmatpush1.bf16.msra.mxu0 0
    %3010 = vmatprep.subr.bf16.mxu0 0
    %3011 = vmatpush1.bf16.msra.mxu0 %v2995
    %3012 = vmatprep.subr.bf16.mxu0 0
    %3013 = vmatpush1.bf16.msra.mxu0 %v2994
    %3014 = vmatprep.subr.bf16.mxu0 0
    %3015 = vmatpush2.bf16.msra.mxu0 0
    %3016 = vmatprep.subr.bf16.mxu0 0
    %3017 = vmatpush2.bf16.msra.mxu0 0
    %3018 = vmatprep.subr.bf16.mxu0 0
    %3019 = vmatpush2.bf16.msra.mxu0 0
    %3020 = vmatprep.subr.bf16.mxu0 0
    %3021 = vmatpush2.bf16.msra.mxu0 0
    %3022 = vmatprep.subr.bf16.mxu0 0
    %3023 = vmatpush2.bf16.msra.mxu0 0
    %3024 = vmatprep.subr.bf16.mxu0 0
    %3025 = vmatpush2.bf16.msra.mxu0 0
    %3026 = vmatprep.subr.bf16.mxu0 0
    %3027 = vmatpush2.bf16.msra.mxu0 0
    %3028 = vmatprep.subr.bf16.mxu0 0
    %3029 = vmatpush2.bf16.msra.mxu0 0
    %3030 = vmatprep.mubr.bf16.mxu0 0
    %3031 = vmatmul.mubr.bf16.gmra.mxu0 %v2884
    %v3032 = vpop.f32.mrf.mxu0
    %v3033 = vadd.f32 %v2396, %v3032
    %v3034 = vpop.f32.mrf.mxu0
    %v3035 = vpop.f32.mrf.mxu0
    %v3036 = vpop.f32.mrf.mxu0
    %3037 = vdwg.mxu0
    %v3038 = vld [vmem:[#allocation4 + $0x6] sm:$0x3]
    %v3039 = vadd.f32 %v3038, %v2921
    %v3040 = vxor.u32 %v3039, 2147483648
    %v3041 = vmul.f32 %v3040, 1.442695
    %v3042 = vpow.pop %v3041
    %v3043 = vadd.f32 %v3042, 1.0
    %v3044 = vrcp.pop %v3043
    %v3045 = vmul.f32 1.0, %v3044
    %v3046 = vld [vmem:[#allocation5 + $0x6] sm:$0x3]
    %v3047 = vadd.f32 %v3046, %v2977
    %v3048 = vxor.u32 %v3047, 2147483648
    %v3049 = vmul.f32 %v3048, 1.442695
    %v3050 = vpow.pop %v3049
    %v3051 = vadd.f32 %v3050, 1.0
    %v3052 = vrcp.pop %v3051
    %v3053 = vmul.f32 1.0, %v3052
    %v3054 = vld [vmem:[#allocation6 + $0x6] sm:$0x3]
    %v3055 = vmul.f32 %v3045, %v3033
    %v3056 = vadd.f32 %v3054, %v3055
    %v3057 = vtanh.pop %v3056
    %v3058 = vsub.f32 %v2864, %v3057
    %v3059 = vmul.f32 %v3053, %v3058
    %v3060 = vadd.f32 %v3059, %v3057
    %3061 = vst.msk [vmem:[#allocation3 + $0x6] sm:$0x3] %vm863, %v3060
    %v3062 = vpack.c.bf16 %v3060, %v3060
    %v3063 = vld [vmem:[#allocation39] sm:$0xf]
    %v3064 = vld [vmem:[#allocation39 + $0x4] sm:$0xf]
    %v3065 = vld [vmem:[#allocation39 + $0x8] sm:$0xf]
    %v3066 = vld [vmem:[#allocation39 + $0xc] sm:$0xf]
    %v3071 = vunpack.c.l.b16 %v3063
    %v3072 = vunpack.c.l.b16 %v3064
    %v3073 = vunpack.c.l.b16 %v3065
    %v3074 = vunpack.c.l.b16 %v3066
    %v3075 = vpack.c.b16 %v3072, %v3071
    %v3076 = vpack.c.b16 %v3074, %v3073
    %v3080 = vsel %vm751, %v3062, 0
    %3082 = vmatprep.subr.bf16.mxu0 0
    %3083 = vmatpush1.bf16.msra.mxu0 0
    %3084 = vmatprep.subr.bf16.mxu0 0
    %3085 = vmatpush1.bf16.msra.mxu0 0
    %3086 = vmatprep.subr.bf16.mxu0 0
    %3087 = vmatpush1.bf16.msra.mxu0 0
    %3088 = vmatprep.subr.bf16.mxu0 0
    %3089 = vmatpush1.bf16.msra.mxu0 0
    %3090 = vmatprep.subr.bf16.mxu0 0
    %3091 = vmatpush1.bf16.msra.mxu0 0
    %3092 = vmatprep.subr.bf16.mxu0 0
    %3093 = vmatpush1.bf16.msra.mxu0 0
    %3094 = vmatprep.subr.bf16.mxu0 0
    %3095 = vmatpush1.bf16.msra.mxu0 %v3076
    %3096 = vmatprep.subr.bf16.mxu0 0
    %3097 = vmatpush1.bf16.msra.mxu0 %v3075
    %3098 = vmatprep.subr.bf16.mxu0 0
    %3099 = vmatpush2.bf16.msra.mxu0 0
    %3100 = vmatprep.subr.bf16.mxu0 0
    %3101 = vmatpush2.bf16.msra.mxu0 0
    %3102 = vmatprep.subr.bf16.mxu0 0
    %3103 = vmatpush2.bf16.msra.mxu0 0
    %3104 = vmatprep.subr.bf16.mxu0 0
    %3105 = vmatpush2.bf16.msra.mxu0 0
    %3106 = vmatprep.subr.bf16.mxu0 0
    %3107 = vmatpush2.bf16.msra.mxu0 0
    %3108 = vmatprep.subr.bf16.mxu0 0
    %3109 = vmatpush2.bf16.msra.mxu0 0
    %3110 = vmatprep.subr.bf16.mxu0 0
    %3111 = vmatpush2.bf16.msra.mxu0 0
    %3112 = vmatprep.subr.bf16.mxu0 0
    %3113 = vmatpush2.bf16.msra.mxu0 0
    %3114 = vmatprep.mubr.bf16.mxu0 0
    %3115 = vmatmul.mubr.bf16.gmra.mxu0 %v3080
    %v3116 = vpop.f32.mrf.mxu0
    %v3117 = vadd.f32 0.0, %v3116
    %v3118 = vpop.f32.mrf.mxu0
    %v3119 = vpop.f32.mrf.mxu0
    %v3120 = vpop.f32.mrf.mxu0
    %3121 = vdwg.mxu0
    %v3122 = vld [vmem:[#allocation40] sm:$0xf]
    %v3123 = vld [vmem:[#allocation40 + $0x4] sm:$0xf]
    %v3124 = vld [vmem:[#allocation40 + $0x8] sm:$0xf]
    %v3125 = vld [vmem:[#allocation40 + $0xc] sm:$0xf]
    %v3130 = vunpack.c.l.b16 %v3122
    %v3131 = vunpack.c.l.b16 %v3123
    %v3132 = vunpack.c.l.b16 %v3124
    %v3133 = vunpack.c.l.b16 %v3125
    %v3134 = vpack.c.b16 %v3131, %v3130
    %v3135 = vpack.c.b16 %v3133, %v3132
    %3138 = vmatprep.subr.bf16.mxu0 0
    %3139 = vmatpush1.bf16.msra.mxu0 0
    %3140 = vmatprep.subr.bf16.mxu0 0
    %3141 = vmatpush1.bf16.msra.mxu0 0
    %3142 = vmatprep.subr.bf16.mxu0 0
    %3143 = vmatpush1.bf16.msra.mxu0 0
    %3144 = vmatprep.subr.bf16.mxu0 0
    %3145 = vmatpush1.bf16.msra.mxu0 0
    %3146 = vmatprep.subr.bf16.mxu0 0
    %3147 = vmatpush1.bf16.msra.mxu0 0
    %3148 = vmatprep.subr.bf16.mxu0 0
    %3149 = vmatpush1.bf16.msra.mxu0 0
    %3150 = vmatprep.subr.bf16.mxu0 0
    %3151 = vmatpush1.bf16.msra.mxu0 %v3135
    %3152 = vmatprep.subr.bf16.mxu0 0
    %3153 = vmatpush1.bf16.msra.mxu0 %v3134
    %3154 = vmatprep.subr.bf16.mxu0 0
    %3155 = vmatpush2.bf16.msra.mxu0 0
    %3156 = vmatprep.subr.bf16.mxu0 0
    %3157 = vmatpush2.bf16.msra.mxu0 0
    %3158 = vmatprep.subr.bf16.mxu0 0
    %3159 = vmatpush2.bf16.msra.mxu0 0
    %3160 = vmatprep.subr.bf16.mxu0 0
    %3161 = vmatpush2.bf16.msra.mxu0 0
    %3162 = vmatprep.subr.bf16.mxu0 0
    %3163 = vmatpush2.bf16.msra.mxu0 0
    %3164 = vmatprep.subr.bf16.mxu0 0
    %3165 = vmatpush2.bf16.msra.mxu0 0
    %3166 = vmatprep.subr.bf16.mxu0 0
    %3167 = vmatpush2.bf16.msra.mxu0 0
    %3168 = vmatprep.subr.bf16.mxu0 0
    %3169 = vmatpush2.bf16.msra.mxu0 0
    %3170 = vmatprep.mubr.bf16.mxu0 0
    %3171 = vmatmul.mubr.bf16.gmra.mxu0 %v3080
    %v3172 = vpop.f32.mrf.mxu0
    %v3173 = vadd.f32 0.0, %v3172
    %v3174 = vpop.f32.mrf.mxu0
    %v3175 = vpop.f32.mrf.mxu0
    %v3176 = vpop.f32.mrf.mxu0
    %3177 = vdwg.mxu0
    %v3178 = vld [vmem:[#allocation42] sm:$0xf]
    %v3179 = vld [vmem:[#allocation42 + $0x4] sm:$0xf]
    %v3180 = vld [vmem:[#allocation42 + $0x8] sm:$0xf]
    %v3181 = vld [vmem:[#allocation42 + $0xc] sm:$0xf]
    %v3186 = vunpack.c.l.b16 %v3178
    %v3187 = vunpack.c.l.b16 %v3179
    %v3188 = vunpack.c.l.b16 %v3180
    %v3189 = vunpack.c.l.b16 %v3181
    %v3190 = vpack.c.b16 %v3187, %v3186
    %v3191 = vpack.c.b16 %v3189, %v3188
    %3194 = vmatprep.subr.bf16.mxu0 0
    %3195 = vmatpush1.bf16.msra.mxu0 0
    %3196 = vmatprep.subr.bf16.mxu0 0
    %3197 = vmatpush1.bf16.msra.mxu0 0
    %3198 = vmatprep.subr.bf16.mxu0 0
    %3199 = vmatpush1.bf16.msra.mxu0 0
    %3200 = vmatprep.subr.bf16.mxu0 0
    %3201 = vmatpush1.bf16.msra.mxu0 0
    %3202 = vmatprep.subr.bf16.mxu0 0
    %3203 = vmatpush1.bf16.msra.mxu0 0
    %3204 = vmatprep.subr.bf16.mxu0 0
    %3205 = vmatpush1.bf16.msra.mxu0 0
    %3206 = vmatprep.subr.bf16.mxu0 0
    %3207 = vmatpush1.bf16.msra.mxu0 %v3191
    %3208 = vmatprep.subr.bf16.mxu0 0
    %3209 = vmatpush1.bf16.msra.mxu0 %v3190
    %3210 = vmatprep.subr.bf16.mxu0 0
    %3211 = vmatpush2.bf16.msra.mxu0 0
    %3212 = vmatprep.subr.bf16.mxu0 0
    %3213 = vmatpush2.bf16.msra.mxu0 0
    %3214 = vmatprep.subr.bf16.mxu0 0
    %3215 = vmatpush2.bf16.msra.mxu0 0
    %3216 = vmatprep.subr.bf16.mxu0 0
    %3217 = vmatpush2.bf16.msra.mxu0 0
    %3218 = vmatprep.subr.bf16.mxu0 0
    %3219 = vmatpush2.bf16.msra.mxu0 0
    %3220 = vmatprep.subr.bf16.mxu0 0
    %3221 = vmatpush2.bf16.msra.mxu0 0
    %3222 = vmatprep.subr.bf16.mxu0 0
    %3223 = vmatpush2.bf16.msra.mxu0 0
    %3224 = vmatprep.subr.bf16.mxu0 0
    %3225 = vmatpush2.bf16.msra.mxu0 0
    %3226 = vmatprep.mubr.bf16.mxu0 0
    %3227 = vmatmul.mubr.bf16.gmra.mxu0 %v3080
    %v3228 = vpop.f32.mrf.mxu0
    %v3229 = vadd.f32 %v2396, %v3228
    %v3230 = vpop.f32.mrf.mxu0
    %v3231 = vpop.f32.mrf.mxu0
    %v3232 = vpop.f32.mrf.mxu0
    %3233 = vdwg.mxu0
    %v3234 = vld [vmem:[#allocation4 + $0x8] sm:$0x3]
    %v3235 = vadd.f32 %v3234, %v3117
    %v3236 = vxor.u32 %v3235, 2147483648
    %v3237 = vmul.f32 %v3236, 1.442695
    %v3238 = vpow.pop %v3237
    %v3239 = vadd.f32 %v3238, 1.0
    %v3240 = vrcp.pop %v3239
    %v3241 = vmul.f32 1.0, %v3240
    %v3242 = vld [vmem:[#allocation5 + $0x8] sm:$0x3]
    %v3243 = vadd.f32 %v3242, %v3173
    %v3244 = vxor.u32 %v3243, 2147483648
    %v3245 = vmul.f32 %v3244, 1.442695
    %v3246 = vpow.pop %v3245
    %v3247 = vadd.f32 %v3246, 1.0
    %v3248 = vrcp.pop %v3247
    %v3249 = vmul.f32 1.0, %v3248
    %v3250 = vld [vmem:[#allocation6 + $0x8] sm:$0x3]
    %v3251 = vmul.f32 %v3241, %v3229
    %v3252 = vadd.f32 %v3250, %v3251
    %v3253 = vtanh.pop %v3252
    %v3254 = vsub.f32 %v3060, %v3253
    %v3255 = vmul.f32 %v3249, %v3254
    %v3256 = vadd.f32 %v3255, %v3253
    %3257 = vst.msk [vmem:[#allocation3 + $0x8] sm:$0x3] %vm863, %v3256
    %v3258 = vpack.c.bf16 %v3256, %v3256
    %v3259 = vld [vmem:[%s61] sm:$0xf]
    %v3260 = vld [vmem:[%s61 + $0x4] sm:$0xf]
    %v3261 = vld [vmem:[%s61 + $0x8] sm:$0xf]
    %v3262 = vld [vmem:[%s61 + $0xc] sm:$0xf]
    %v3263 = vld [vmem:[%s63] sm:$0x1]
    %v3265 = vlaneseq
    %v3266 = vshrl.u32 %v3265, 7
    %v3267 = vsub.s32 0, %v3266
    %v3268 = vrot.slane %v3263, %v3267
    %v3274 = vunpack.c.l.b16 %v3259
    %v3275 = vunpack.c.l.b16 %v3260
    %v3276 = vunpack.c.l.b16 %v3261
    %v3277 = vunpack.c.l.b16 %v3262
    %v3278 = vpack.c.b16 %v3275, %v3274
    %v3279 = vpack.c.b16 %v3277, %v3276
    %v3283 = vsel %vm751, %v3258, 0
    %3285 = vmatprep.subr.bf16.mxu0 0
    %3286 = vmatpush1.bf16.msra.mxu0 0
    %3287 = vmatprep.subr.bf16.mxu0 0
    %3288 = vmatpush1.bf16.msra.mxu0 0
    %3289 = vmatprep.subr.bf16.mxu0 0
    %3290 = vmatpush1.bf16.msra.mxu0 0
    %3291 = vmatprep.subr.bf16.mxu0 0
    %3292 = vmatpush1.bf16.msra.mxu0 0
    %3293 = vmatprep.subr.bf16.mxu0 0
    %3294 = vmatpush1.bf16.msra.mxu0 0
    %3295 = vmatprep.subr.bf16.mxu0 0
    %3296 = vmatpush1.bf16.msra.mxu0 0
    %3297 = vmatprep.subr.bf16.mxu0 0
    %3298 = vmatpush1.bf16.msra.mxu0 %v3279
    %3299 = vmatprep.subr.bf16.mxu0 0
    %3300 = vmatpush1.bf16.msra.mxu0 %v3278
    %3301 = vmatprep.subr.bf16.mxu0 0
    %3302 = vmatpush2.bf16.msra.mxu0 0
    %3303 = vmatprep.subr.bf16.mxu0 0
    %3304 = vmatpush2.bf16.msra.mxu0 0
    %3305 = vmatprep.subr.bf16.mxu0 0
    %3306 = vmatpush2.bf16.msra.mxu0 0
    %3307 = vmatprep.subr.bf16.mxu0 0
    %3308 = vmatpush2.bf16.msra.mxu0 0
    %3309 = vmatprep.subr.bf16.mxu0 0
    %3310 = vmatpush2.bf16.msra.mxu0 0
    %3311 = vmatprep.subr.bf16.mxu0 0
    %3312 = vmatpush2.bf16.msra.mxu0 0
    %3313 = vmatprep.subr.bf16.mxu0 0
    %3314 = vmatpush2.bf16.msra.mxu0 0
    %3315 = vmatprep.subr.bf16.mxu0 0
    %3316 = vmatpush2.bf16.msra.mxu0 0
    %3317 = vmatprep.mubr.bf16.mxu0 0
    %3318 = vmatmul.mubr.bf16.gmra.mxu0 %v3283
    %v3319 = vpop.f32.mrf.mxu0
    %v3320 = vadd.f32 %v3268, %v3319
    %v3321 = vpop.f32.mrf.mxu0
    %v3322 = vpop.f32.mrf.mxu0
    %v3323 = vpop.f32.mrf.mxu0
    %3324 = vdwg.mxu0
    %vm3325 = vcmask 1041408
    %v3326 = vsel %vm3325, %v3320, -inf
    %3327 = vmax.xlane.f32.xlu0 %v3326
    %v3328 = vpop.xlane.xlu0 %3327
    %v3329 = vsub.f32 %v3320, %v3328
    %v3330 = vmul.f32 %v3329, 1.442695
    %v3331 = vpow.pop %v3330
    %v3332 = vsel %vm3325, %v3331, 0.0
    %3333 = vadd.xlane.f32.xlu0 %v3332
    %v3334 = vpop.xlane.xlu0 %3333
    %v3335 = vrcp.pop %v3334
    %v3336 = vmul.f32 %v3334, %v3335
    %v3337 = vsub.f32 2.0, %v3336
    %v3338 = vmul.f32 %v3335, %v3337
    %v3339 = vmul.f32 %v3331, %v3338
    %3340 = vst [vmem:[#allocation49] sm:$0x3] %v3339
    %v3341 = vld [vmem:[#allocation46] sm:$0xf]
    %v3342 = vld [vmem:[#allocation46 + $0x4] sm:$0xf]
    %v3343 = vld [vmem:[#allocation46 + $0x8] sm:$0xf]
    %v3344 = vld [vmem:[#allocation46 + $0xc] sm:$0xf]
    %v3345 = vld [vmem:[%s67] sm:$0x1]
    %v3347 = vlaneseq
    %v3348 = vshrl.u32 %v3347, 7
    %v3349 = vsub.s32 0, %v3348
    %v3350 = vrot.slane %v3345, %v3349
    %v3356 = vunpack.c.l.b16 %v3341
    %v3357 = vunpack.c.l.b16 %v3342
    %v3358 = vunpack.c.l.b16 %v3343
    %v3359 = vunpack.c.l.b16 %v3344
    %v3360 = vpack.c.b16 %v3357, %v3356
    %v3361 = vpack.c.b16 %v3359, %v3358
    %3364 = vmatprep.subr.bf16.mxu0 0
    %3365 = vmatpush1.bf16.msra.mxu0 0
    %3366 = vmatprep.subr.bf16.mxu0 0
    %3367 = vmatpush1.bf16.msra.mxu0 0
    %3368 = vmatprep.subr.bf16.mxu0 0
    %3369 = vmatpush1.bf16.msra.mxu0 0
    %3370 = vmatprep.subr.bf16.mxu0 0
    %3371 = vmatpush1.bf16.msra.mxu0 0
    %3372 = vmatprep.subr.bf16.mxu0 0
    %3373 = vmatpush1.bf16.msra.mxu0 0
    %3374 = vmatprep.subr.bf16.mxu0 0
    %3375 = vmatpush1.bf16.msra.mxu0 0
    %3376 = vmatprep.subr.bf16.mxu0 0
    %3377 = vmatpush1.bf16.msra.mxu0 %v3361
    %3378 = vmatprep.subr.bf16.mxu0 0
    %3379 = vmatpush1.bf16.msra.mxu0 %v3360
    %3380 = vmatprep.subr.bf16.mxu0 0
    %3381 = vmatpush2.bf16.msra.mxu0 0
    %3382 = vmatprep.subr.bf16.mxu0 0
    %3383 = vmatpush2.bf16.msra.mxu0 0
    %3384 = vmatprep.subr.bf16.mxu0 0
    %3385 = vmatpush2.bf16.msra.mxu0 0
    %3386 = vmatprep.subr.bf16.mxu0 0
    %3387 = vmatpush2.bf16.msra.mxu0 0
    %3388 = vmatprep.subr.bf16.mxu0 0
    %3389 = vmatpush2.bf16.msra.mxu0 0
    %3390 = vmatprep.subr.bf16.mxu0 0
    %3391 = vmatpush2.bf16.msra.mxu0 0
    %3392 = vmatprep.subr.bf16.mxu0 0
    %3393 = vmatpush2.bf16.msra.mxu0 0
    %3394 = vmatprep.subr.bf16.mxu0 0
    %3395 = vmatpush2.bf16.msra.mxu0 0
    %3396 = vmatprep.mubr.bf16.mxu0 0
    %3397 = vmatmul.mubr.bf16.gmra.mxu0 %v3283
    %v3398 = vpop.f32.mrf.mxu0
    %v3399 = vadd.f32 %v3350, %v3398
    %v3400 = vpop.f32.mrf.mxu0
    %v3401 = vpop.f32.mrf.mxu0
    %v3402 = vpop.f32.mrf.mxu0
    %3403 = vdwg.mxu0
    %v3404 = vmax.f32 %v3399, 0.0
    %v3405 = vpack.c.bf16 %v3404, %v3404
    %v3406 = vld [vmem:[#allocation48] sm:$0xf]
    %v3407 = vld [vmem:[#allocation48 + $0x4] sm:$0xf]
    %v3408 = vld [vmem:[#allocation48 + $0x8] sm:$0xf]
    %v3409 = vld [vmem:[#allocation48 + $0xc] sm:$0xf]
    %v3410 = vld [vmem:[%s71] sm:$0x1]
    %v3412 = vlaneseq
    %v3413 = vshrl.u32 %v3412, 7
    %v3414 = vsub.s32 0, %v3413
    %v3415 = vrot.slane %v3410, %v3414
    %v3421 = vunpack.c.l.b16 %v3406
    %v3422 = vunpack.c.l.b16 %v3407
    %v3423 = vunpack.c.l.b16 %v3408
    %v3424 = vunpack.c.l.b16 %v3409
    %v3425 = vpack.c.b16 %v3422, %v3421
    %v3426 = vpack.c.b16 %v3424, %v3423
    %v3430 = vsel %vm751, %v3405, 0
    %3432 = vmatprep.subr.bf16.mxu0 0
    %3433 = vmatpush1.bf16.msra.mxu0 0
    %3434 = vmatprep.subr.bf16.mxu0 0
    %3435 = vmatpush1.bf16.msra.mxu0 0
    %3436 = vmatprep.subr.bf16.mxu0 0
    %3437 = vmatpush1.bf16.msra.mxu0 0
    %3438 = vmatprep.subr.bf16.mxu0 0
    %3439 = vmatpush1.bf16.msra.mxu0 0
    %3440 = vmatprep.subr.bf16.mxu0 0
    %3441 = vmatpush1.bf16.msra.mxu0 0
    %3442 = vmatprep.subr.bf16.mxu0 0
    %3443 = vmatpush1.bf16.msra.mxu0 0
    %3444 = vmatprep.subr.bf16.mxu0 0
    %3445 = vmatpush1.bf16.msra.mxu0 %v3426
    %3446 = vmatprep.subr.bf16.mxu0 0
    %3447 = vmatpush1.bf16.msra.mxu0 %v3425
    %3448 = vmatprep.subr.bf16.mxu0 0
    %3449 = vmatpush2.bf16.msra.mxu0 0
    %3450 = vmatprep.subr.bf16.mxu0 0
    %3451 = vmatpush2.bf16.msra.mxu0 0
    %3452 = vmatprep.subr.bf16.mxu0 0
    %3453 = vmatpush2.bf16.msra.mxu0 0
    %3454 = vmatprep.subr.bf16.mxu0 0
    %3455 = vmatpush2.bf16.msra.mxu0 0
    %3456 = vmatprep.subr.bf16.mxu0 0
    %3457 = vmatpush2.bf16.msra.mxu0 0
    %3458 = vmatprep.subr.bf16.mxu0 0
    %3459 = vmatpush2.bf16.msra.mxu0 0
    %3460 = vmatprep.subr.bf16.mxu0 0
    %3461 = vmatpush2.bf16.msra.mxu0 0
    %3462 = vmatprep.subr.bf16.mxu0 0
    %3463 = vmatpush2.bf16.msra.mxu0 0
    %3464 = vmatprep.mubr.bf16.mxu0 0
    %3465 = vmatmul.mubr.bf16.gmra.mxu0 %v3430
    %v3466 = vpop.f32.mrf.mxu0
    %v3467 = vadd.f32 %v3415, %v3466
    %v3468 = vpop.f32.mrf.mxu0
    %v3469 = vpop.f32.mrf.mxu0
    %v3470 = vpop.f32.mrf.mxu0
    %3471 = vdwg.mxu0
    %3472 = vst [vmem:[#allocation50] sm:$0x3] %v3467
    // Predicated region
    $region270: #{tpu_custom_call.1} parent=1 // pred_check
      _
    $region271: #{tpu_custom_call.1} parent=1 // pred_check_branch
      %3474 = sbr.rel (0) target = $region273
    $region272: #{tpu_custom_call.1} parent=1 // pred_region
      %s3476 = ssub.s32 32, 32
      %3477 = vsyncadd [#allocation12], %s3476
      %s3479 = sshll.u32 [#allocation49], 4
      %s3480 = int_to_ptr.vmem [resolvable:$true] %s3479
      %3482 = dma.vmem_to_hbm [thread:$0]  %s3480, 32, %s73, [#allocation12]
    $region273: #{tpu_custom_call.1} parent=1 // pred_fallthru
      _
    // Predicated region
    $region274: #{tpu_custom_call.1} parent=1 // pred_check
      _
    $region275: #{tpu_custom_call.1} parent=1 // pred_check_branch
      %3484 = sbr.rel (0) target = $region277
    $region276: #{tpu_custom_call.1} parent=1 // pred_region
      %s3486 = ssub.s32 32, 32
      %3487 = vsyncadd [#allocation51], %s3486
      %s3489 = sshll.u32 [#allocation50], 4
      %s3490 = int_to_ptr.vmem [resolvable:$true] %s3489
      %3492 = dma.vmem_to_hbm [thread:$0]  %s3490, 32, %s75, [#allocation51]
    $region277: #{tpu_custom_call.1} parent=1 // pred_fallthru
      _
    // Predicated region
    $region278: #{tpu_custom_call.1} parent=1 // pred_check
      _
    $region279: #{tpu_custom_call.1} parent=1 // pred_check_branch
      %3494 = sbr.rel (0) target = $region281
    $region280: #{tpu_custom_call.1} parent=1 // pred_region
      %3495 = dma.done [#allocation12], 32
    $region281: #{tpu_custom_call.1} parent=1 // pred_fallthru
      _
    // Predicated region
    $region282: #{tpu_custom_call.1} parent=1 // pred_check
      _
    $region283: #{tpu_custom_call.1} parent=1 // pred_check_branch
      %3497 = sbr.rel (0) target = $region285
    $region284: #{tpu_custom_call.1} parent=1 // pred_region
      %3498 = dma.done [#allocation51], 32
    $region285: #{tpu_custom_call.1} parent=1 // pred_fallthru
      _
    %3499 = vsyncpa [#allocation11], 1
    %3500 = vsyncpa [#allocation14], 1
    %3501 = vsyncpa [#allocation17], 1
    %3502 = vsyncpa [#allocation20], 1
    %3503 = vsyncpa [#allocation23], 1
    %3504 = vsyncpa [#allocation26], 1
    %3505 = vsyncpa [#allocation29], 1
    %3506 = vsyncpa [#allocation32], 1
    %3507 = vsyncpa [#allocation35], 1
    %3508 = vsyncpa [#allocation38], 1
    %3509 = vsyncpa [#allocation41], 1
    %3510 = vsyncpa [#allocation44], 1
    %3511 = vsyncpa [#allocation47], 1
    %3512 = vsyncpa [#allocation12], 1
    %3513 = vsyncpa [#allocation51], 1
  %3514 = vsyncmov [#allocation7]
  %s3515 = vpop.sfrf %3514
  %p3516 = scmp.eq.s32.totalorder %s3515, 0
  %p3517 = pneg %p3516
  %3519 = shalt.err (%p3517)
  %s3520 = scalar_lea.sflag [#allocation7], 1
  %3521 = vsyncmov %s3520
  %s3522 = vpop.sfrf %3521
  %p3523 = scmp.eq.s32.totalorder %s3522, 0
  %p3524 = pneg %p3523
  %3526 = shalt.err (%p3524)
  %s3527 = scalar_lea.sflag [#allocation7], 2
  %3528 = vsyncmov %s3527
  %s3529 = vpop.sfrf %3528
  %p3530 = scmp.eq.s32.totalorder %s3529, 0
  %p3531 = pneg %p3530
  %3533 = shalt.err (%p3531)
  %s3534 = scalar_lea.sflag [#allocation7], 3
  %3535 = vsyncmov %s3534
  %s3536 = vpop.sfrf %3535
  %p3537 = scmp.eq.s32.totalorder %s3536, 0
  %p3538 = pneg %p3537
  %3540 = shalt.err (%p3538)
  %s3541 = scalar_lea.sflag [#allocation7], 4
  %3542 = vsyncmov %s3541
  %s3543 = vpop.sfrf %3542
  %p3544 = scmp.eq.s32.totalorder %s3543, 0
  %p3545 = pneg %p3544
  %3547 = shalt.err (%p3545)
  %s3548 = scalar_lea.sflag [#allocation7], 5
  %3549 = vsyncmov %s3548
  %s3550 = vpop.sfrf %3549
  %p3551 = scmp.eq.s32.totalorder %s3550, 0
  %p3552 = pneg %p3551
  %3554 = shalt.err (%p3552)
  %s3555 = scalar_lea.sflag [#allocation7], 6
  %3556 = vsyncmov %s3555
  %s3557 = vpop.sfrf %3556
  %p3558 = scmp.eq.s32.totalorder %s3557, 0
  %p3559 = pneg %p3558
  %3561 = shalt.err (%p3559)
  %s3562 = scalar_lea.sflag [#allocation7], 7
  %3563 = vsyncmov %s3562
  %s3564 = vpop.sfrf %3563
  %p3565 = scmp.eq.s32.totalorder %s3564, 0
  %p3566 = pneg %p3565
  %3568 = shalt.err (%p3566)

</llo_original>
